<compile_context>
chip_gen: v6e
topology: v6e:2x2x1
jax: 0.10.0
libtpu: 0.0.40
codegen_flags: <defaults>
</compile_context>

<pallas_src>
import jax
import jax.numpy as jnp
from jax.experimental import pallas as pl
from jax.experimental.pallas import tpu as pltpu

IN_FEATURES = 784          # 28 * 28
H1 = 512
H2 = 256


def _round_up(n, m):
    return ((n + m - 1) // m) * m


def _discriminator_kernel(x_ref, w1_ref, b1_ref, w2_ref, b2_ref,
                          w3_ref, b3_ref, o_ref):
    # x tile: (tb, 784) f32 -> cast once to bf16 for the MXU.
    x = x_ref[...].astype(jnp.bfloat16)

    # Layer 1: bf16 MXU matmul (K=784), f32 accumulate; bias + LeakyReLU in f32.
    h1 = jnp.dot(x, w1_ref[...], preferred_element_type=jnp.float32) + b1_ref[...]
    h1 = jnp.maximum(h1, 0.2 * h1)                       # LeakyReLU(0.2)

    # Layer 2.
    h2 = jnp.dot(h1.astype(jnp.bfloat16), w2_ref[...],
                 preferred_element_type=jnp.float32) + b2_ref[...]
    h2 = jnp.maximum(h2, 0.2 * h2)                       # LeakyReLU(0.2)

    # Layer 3 (256 -> 1): degenerate N=1, keep it off the MXU — VPU multiply
    # + cross-lane reduction in f32.
    h3 = jnp.sum(h2 * w3_ref[...], axis=-1, keepdims=True) + b3_ref[...]

    o_ref[...] = jax.nn.sigmoid(h3)                      # Sigmoid


def discriminator_forward(x, params, *, tb=None):
    """x: (B, 1, 28, 28) or (B, 784) float32. Returns (B, 1) float32."""
    w1, b1, w2, b2, w3_row, b3 = params
    B = x.shape[0]

    x2d = x.reshape(B, IN_FEATURES).astype(jnp.float32)  # == x.view(B, 784)

    if tb is None:
        # Aim for >= 2 grid steps when B is large enough (v7x has 2 TCs and
        # the batch axis is "parallel"), tiles in multiples of 256 rows,
        # capped at 1024 rows (~14 MiB/step incl. double-buffered x).
        tb = max(256, min(1024, _round_up(pl.cdiv(B, 2), 256)))

    # Ragged last block: Pallas masks the partial tile's loads/stores, so no
    # batch padding is needed.  (Garbage rows flow through per-row math only;
    # no cross-row reductions exist in this kernel.)
    grid = (pl.cdiv(B, tb),)

    out = pl.pallas_call(
        _discriminator_kernel,
        out_shape=jax.ShapeDtypeStruct((B, 1), jnp.float32),
        grid=grid,
        in_specs=[
            pl.BlockSpec((tb, IN_FEATURES), lambda i: (i, 0)),   # x tile
            pl.BlockSpec((IN_FEATURES, H1), lambda i: (0, 0)),   # w1 (resident)
            pl.BlockSpec((1, H1), lambda i: (0, 0)),             # b1
            pl.BlockSpec((H1, H2), lambda i: (0, 0)),            # w2
            pl.BlockSpec((1, H2), lambda i: (0, 0)),             # b2
            pl.BlockSpec((1, H2), lambda i: (0, 0)),             # w3 row
            pl.BlockSpec((1, 1), lambda i: (0, 0)),              # b3
        ],
        out_specs=pl.BlockSpec((tb, 1), lambda i: (i, 0)),
        compiler_params=pltpu.CompilerParams(
            dimension_semantics=("parallel",),
            vmem_limit_bytes=48 * 1024 * 1024,   # covers v5e's 16 MiB default
        ),
    )(x2d, w1, b1, w2, b2, w3_row, b3)

    return out


def init_params(key):
    """Init mimicking torch nn.Linear default (U[-1/sqrt(fan_in), +bound]).

    Weights stored (in, out); w1/w2 in bf16 (MXU operands, unpadded);
    w3 stored as an f32 row vector (1, 256); biases f32.
    """
    def linear(key, fan_in, fan_out):
        kw, kb = jax.random.split(key)
        bound = 1.0 / jnp.sqrt(fan_in)
        w = jax.random.uniform(kw, (fan_in, fan_out), jnp.float32, -bound, bound)
        b = jax.random.uniform(kb, (1, fan_out), jnp.float32, -bound, bound)
        return w, b

    k1, k2, k3 = jax.random.split(key, 3)
    w1, b1 = linear(k1, IN_FEATURES, H1)
    w2, b2 = linear(k2, H1, H2)
    w3, b3 = linear(k3, H2, 1)

    return (
        w1.astype(jnp.bfloat16),
        b1,
        w2.astype(jnp.bfloat16),
        b2,
        w3.reshape(1, H2),          # f32 row vector for the VPU final layer
        b3.reshape(1, 1),
    )


def _reference_forward(x, params):
    """Pure-JAX reference using identical numerics (bf16 matmuls, f32 accum).

    Note: bf16 matmuls deviate slightly (~1e-2 rel) from the f32 PyTorch
    module; acceptable for inference.
    """
    w1, b1, w2, b2, w3_row, b3 = params
    B = x.shape[0]
    h = x.reshape(B, IN_FEATURES).astype(jnp.float32)
    h = jnp.dot(h.astype(jnp.bfloat16), w1, preferred_element_type=jnp.float32) + b1
    h = jnp.maximum(h, 0.2 * h)
    h = jnp.dot(h.astype(jnp.bfloat16), w2, preferred_element_type=jnp.float32) + b2
    h = jnp.maximum(h, 0.2 * h)
    h = jnp.sum(h * w3_row, axis=-1, keepdims=True) + b3
    return jax.nn.sigmoid(h)


if __name__ == "__main__":
    key = jax.random.PRNGKey(0)
    kx, kp, kx2 = jax.random.split(key, 3)
    params = init_params(kp)

    # MNIST-like input: batch=2, NCHW (2, 1, 28, 28).
    x = jax.random.normal(kx, (2, 1, 28, 28), dtype=jnp.float32)
    out = jax.block_until_ready(discriminator_forward(x, params))
    ref = _reference_forward(x, params)
    assert out.shape == (2, 1), out.shape
    assert jnp.allclose(out, ref, atol=1e-4, rtol=1e-4), (out, ref)

    # Multi-step grid with a ragged last block (516 = 512 + 4, tb=256 -> 3 steps).
    x2 = jax.random.normal(kx2, (516, 784), dtype=jnp.float32)
    out2 = jax.block_until_ready(discriminator_forward(x2, params, tb=256))
    ref2 = _reference_forward(x2, params)
    assert out2.shape == (516, 1), out2.shape
    assert jnp.allclose(out2, ref2, atol=1e-4, rtol=1e-4)

    print("KERNEL_OK")
</pallas_src>

<mosaic_0001>
module attributes {stable_mosaic.version = 11 : i64} {
  func.func @_discriminator_kernel(%arg0: i32, %arg1: memref<256x784xf32, #tpu.memory_space<vmem>>, %arg2: memref<784x512xbf16, #tpu.memory_space<vmem>>, %arg3: memref<1x512xf32, #tpu.memory_space<vmem>>, %arg4: memref<512x256xbf16, #tpu.memory_space<vmem>>, %arg5: memref<1x256xf32, #tpu.memory_space<vmem>>, %arg6: memref<1x256xf32, #tpu.memory_space<vmem>>, %arg7: memref<1x1xf32, #tpu.memory_space<vmem>>, %arg8: memref<256x1xf32, #tpu.memory_space<vmem>>) attributes {dimension_semantics = [#tpu.dimension_semantics<parallel>], iteration_bounds = array<i64: 1>, scalar_prefetch = 0 : i64, scratch_operands = 0 : i64, tpu.core_type = #tpu.core_type<tc>, window_params = [{transform_indices = @transform_0, window_bounds = array<i64: 256, 784>}, {pipeline_mode = #tpu.pipeline_mode<synchronous>, transform_indices = @transform_1, window_bounds = array<i64: 784, 512>}, {pipeline_mode = #tpu.pipeline_mode<synchronous>, transform_indices = @transform_2, window_bounds = array<i64: 1, 512>}, {pipeline_mode = #tpu.pipeline_mode<synchronous>, transform_indices = @transform_3, window_bounds = array<i64: 512, 256>}, {pipeline_mode = #tpu.pipeline_mode<synchronous>, transform_indices = @transform_4, window_bounds = array<i64: 1, 256>}, {pipeline_mode = #tpu.pipeline_mode<synchronous>, transform_indices = @transform_5, window_bounds = array<i64: 1, 256>}, {pipeline_mode = #tpu.pipeline_mode<synchronous>, transform_indices = @transform_6, window_bounds = array<i64: 1, 1>}, {transform_indices = @transform_7, window_bounds = array<i64: 256, 1>}]} {
    %c0 = arith.constant 0 : index
    %c0_0 = arith.constant 0 : index
    %0 = vector.load %arg1[%c0, %c0_0] : memref<256x784xf32, #tpu.memory_space<vmem>>, vector<256x784xf32>
    %1 = arith.truncf %0 : vector<256x784xf32> to vector<256x784xbf16>
    %c0_1 = arith.constant 0 : index
    %c0_2 = arith.constant 0 : index
    %2 = vector.load %arg2[%c0_1, %c0_2] : memref<784x512xbf16, #tpu.memory_space<vmem>>, vector<784x512xbf16>
    %cst = arith.constant dense<0.000000e+00> : vector<256x512xf32>
    %3 = tpu.matmul %1, %2, %cst {dimension_numbers = #tpu.dot_dimension_numbers<[1], [0], [0], [1], [0, 0, 1, 1], [], []>} : vector<256x784xbf16>, vector<784x512xbf16>, vector<256x512xf32> -> vector<256x512xf32>
    %c0_3 = arith.constant 0 : index
    %c0_4 = arith.constant 0 : index
    %4 = vector.load %arg3[%c0_3, %c0_4] : memref<1x512xf32, #tpu.memory_space<vmem>>, vector<1x512xf32>
    %5 = vector.broadcast %4 : vector<1x512xf32> to vector<256x512xf32>
    %6 = arith.addf %3, %5 : vector<256x512xf32>
    %cst_5 = arith.constant 2.000000e-01 : f32
    %7 = vector.broadcast %cst_5 : f32 to vector<256x512xf32>
    %8 = arith.mulf %7, %6 : vector<256x512xf32>
    %9 = arith.maximumf %6, %8 : vector<256x512xf32>
    %10 = arith.truncf %9 : vector<256x512xf32> to vector<256x512xbf16>
    %c0_6 = arith.constant 0 : index
    %c0_7 = arith.constant 0 : index
    %11 = vector.load %arg4[%c0_6, %c0_7] : memref<512x256xbf16, #tpu.memory_space<vmem>>, vector<512x256xbf16>
    %cst_8 = arith.constant dense<0.000000e+00> : vector<256x256xf32>
    %12 = tpu.matmul %10, %11, %cst_8 {dimension_numbers = #tpu.dot_dimension_numbers<[1], [0], [0], [1], [0, 0, 1, 1], [], []>} : vector<256x512xbf16>, vector<512x256xbf16>, vector<256x256xf32> -> vector<256x256xf32>
    %c0_9 = arith.constant 0 : index
    %c0_10 = arith.constant 0 : index
    %13 = vector.load %arg5[%c0_9, %c0_10] : memref<1x256xf32, #tpu.memory_space<vmem>>, vector<1x256xf32>
    %14 = vector.broadcast %13 : vector<1x256xf32> to vector<256x256xf32>
    %15 = arith.addf %12, %14 : vector<256x256xf32>
    %cst_11 = arith.constant 2.000000e-01 : f32
    %16 = vector.broadcast %cst_11 : f32 to vector<256x256xf32>
    %17 = arith.mulf %16, %15 : vector<256x256xf32>
    %18 = arith.maximumf %15, %17 : vector<256x256xf32>
    %c0_12 = arith.constant 0 : index
    %c0_13 = arith.constant 0 : index
    %19 = vector.load %arg6[%c0_12, %c0_13] : memref<1x256xf32, #tpu.memory_space<vmem>>, vector<1x256xf32>
    %20 = vector.broadcast %19 : vector<1x256xf32> to vector<256x256xf32>
    %21 = arith.mulf %18, %20 : vector<256x256xf32>
    %cst_14 = arith.constant dense<0.000000e+00> : vector<256xf32>
    %22 = vector.multi_reduction <add>, %21, %cst_14 [1] : vector<256x256xf32> to vector<256xf32>
    %23 = vector.shape_cast %22 : vector<256xf32> to vector<256x1xf32>
    %c0_15 = arith.constant 0 : index
    %c0_16 = arith.constant 0 : index
    %24 = vector.load %arg7[%c0_15, %c0_16] : memref<1x1xf32, #tpu.memory_space<vmem>>, vector<1x1xf32>
    %25 = vector.broadcast %24 : vector<1x1xf32> to vector<256x1xf32>
    %26 = arith.addf %23, %25 : vector<256x1xf32>
    %27 = arith.negf %26 : vector<256x1xf32>
    %28 = math.exp %27 : vector<256x1xf32>
    %cst_17 = arith.constant 1.000000e+00 : f32
    %29 = vector.broadcast %cst_17 : f32 to vector<256x1xf32>
    %30 = arith.addf %29, %28 : vector<256x1xf32>
    %31 = arith.divf %29, %30 : vector<256x1xf32>
    %c0_18 = arith.constant 0 : index
    %c0_19 = arith.constant 0 : index
    %32 = vector.load %arg8[%c0_18, %c0_19] : memref<256x1xf32, #tpu.memory_space<vmem>>, vector<256x1xf32>
    tpu.vector_store %arg8[%c0_18, %c0_19], %31 {strides = array<i32>} : memref<256x1xf32, #tpu.memory_space<vmem>>, vector<256x1xf32>,
    return
  }
  func.func @transform_0(%arg0: i32) -> (i32, i32) {
    %c0_i32 = arith.constant 0 : i32
    %c0_i32_0 = arith.constant 0 : i32
    return %arg0, %c0_i32 : i32, i32
  }
  func.func @transform_1(%arg0: i32) -> (i32, i32) {
    %c0_i32 = arith.constant 0 : i32
    %c0_i32_0 = arith.constant 0 : i32
    %c0_i32_1 = arith.constant 0 : i32
    return %c0_i32, %c0_i32_0 : i32, i32
  }
  func.func @transform_2(%arg0: i32) -> (i32, i32) {
    %c0_i32 = arith.constant 0 : i32
    %c0_i32_0 = arith.constant 0 : i32
    %c0_i32_1 = arith.constant 0 : i32
    return %c0_i32, %c0_i32_0 : i32, i32
  }
  func.func @transform_3(%arg0: i32) -> (i32, i32) {
    %c0_i32 = arith.constant 0 : i32
    %c0_i32_0 = arith.constant 0 : i32
    %c0_i32_1 = arith.constant 0 : i32
    return %c0_i32, %c0_i32_0 : i32, i32
  }
  func.func @transform_4(%arg0: i32) -> (i32, i32) {
    %c0_i32 = arith.constant 0 : i32
    %c0_i32_0 = arith.constant 0 : i32
    %c0_i32_1 = arith.constant 0 : i32
    return %c0_i32, %c0_i32_0 : i32, i32
  }
  func.func @transform_5(%arg0: i32) -> (i32, i32) {
    %c0_i32 = arith.constant 0 : i32
    %c0_i32_0 = arith.constant 0 : i32
    %c0_i32_1 = arith.constant 0 : i32
    return %c0_i32, %c0_i32_0 : i32, i32
  }
  func.func @transform_6(%arg0: i32) -> (i32, i32) {
    %c0_i32 = arith.constant 0 : i32
    %c0_i32_0 = arith.constant 0 : i32
    %c0_i32_1 = arith.constant 0 : i32
    return %c0_i32, %c0_i32_0 : i32, i32
  }
  func.func @transform_7(%arg0: i32) -> (i32, i32) {
    %c0_i32 = arith.constant 0 : i32
    %c0_i32_0 = arith.constant 0 : i32
    return %arg0, %c0_i32 : i32, i32
  }
}

</mosaic_0001>

<llo_original>
// kernel: tpu_custom_call.1
$region0: #{tpu_custom_call.1}
  #allocation0 [shape = 'u32[]', space=smem, size = 0x4, offset = 0x4, fixed_abs, tag = 'smem constant byte address 0x4 - core index']
  #allocation1 [shape = 'u32[144,128]{1,0:T(1,128)}', space=vmem, size = 0x12000, scoped, tag = 'internal scratch']
  #allocation2 [shape = 'f32[1,1]{1,0:T(1,128)S(1)}', space=vmem, size = 0x200, scoped, tag = 'scoped memory for tpu_custom_call.1']
  %s0 = inlined_call_operand.hbm [shape: f32[2,784], index: 0, kind: input, shape index: {}]
  %s1 = inlined_call_operand.hbm [shape: bf16[784,512], index: 1, kind: input, shape index: {}]
  %s2 = inlined_call_operand.vmem [shape: f32[1,512], index: 2, kind: input, shape index: {}]
  %s3 = inlined_call_operand.hbm [shape: bf16[512,256], index: 3, kind: input, shape index: {}]
  %s4 = inlined_call_operand.vmem [shape: f32[1,256], index: 4, kind: input, shape index: {}]
  %s5 = inlined_call_operand.vmem [shape: f32[1,256], index: 5, kind: input, shape index: {}]
  %s6 = inlined_call_operand.<no memory space> [shape: f32[1,1], index: 6, kind: input, shape index: {}]
  %s7 = inlined_call_operand.vmem [shape: f32[2,1], index: 7, kind: output, shape index: {}]
  %s8 = sld [smem:[#allocation0]]
  $region80: #{tpu_custom_call.1} parent=0
    _
  %s10 = ssub.s32 1, %s8
  %s11 = scalar_select 0, %s10, %s8
  %v12 = vstv %s6
  %13 = vst [vmem:[#allocation2] sm:$0x1] %v12
  $region1: #{tpu_custom_call.1} parent=0
    #allocation3 [shape = 'u8[917504]{0}', space=vmem, size = 0xe0000, scoped, tag = 'input window, operand 0, single buffered']
    #allocation4 [shape = 's32[1]{0}', space=sflag, size = 0x4, scoped, tag = 'scoped memory for tpu_custom_call.1']
    #allocation5 [shape = 'u8[802816]{0}', space=vmem, size = 0xc4000, scoped, tag = 'input window, operand 1, single buffered']
    #allocation6 [shape = 's32[1]{0}', space=sflag, size = 0x4, scoped, tag = 'scoped memory for tpu_custom_call.1']
    #allocation7 [shape = 'u8[262144]{0}', space=vmem, size = 0x40000, scoped, tag = 'input window, operand 3, single buffered']
    #allocation8 [shape = 'u8[131072]{0}', space=vmem, size = 0x20000, scoped, tag = 'output window, operand 0, single buffered']
    %14 = vsyncpa [#allocation4], 0
    %15 = vsyncpa [#allocation6], 0
    // Predicated region
    $region2: #{tpu_custom_call.1} parent=1 // pred_check
      _
    $region3: #{tpu_custom_call.1} parent=1 // pred_check_branch
      %17 = sbr.rel (0) target = $region5
    $region4: #{tpu_custom_call.1} parent=1 // pred_region
      %s19 = ssub.s32 28672, 224
      %20 = vsyncadd [#allocation4], %s19
      %s21 = sshll.u32 [#allocation3], 4
      %s22 = int_to_ptr.vmem [resolvable:$true] %s21
      %27 = dma.hbm_to_vmem [thread:$0]  %s0, 224, %s22, [#allocation4], 224, 224, 14
    $region5: #{tpu_custom_call.1} parent=1 // pred_fallthru
      _
    // Predicated region
    $region6: #{tpu_custom_call.1} parent=1 // pred_check
      _
    $region7: #{tpu_custom_call.1} parent=1 // pred_check_branch
      %29 = sbr.rel (0) target = $region9
    $region8: #{tpu_custom_call.1} parent=1 // pred_region
      %s31 = ssub.s32 25088, 25088
      %32 = vsyncadd [#allocation6], %s31
      %s33 = sshll.u32 [#allocation5], 4
      %s34 = int_to_ptr.vmem [resolvable:$true] %s33
      %39 = dma.hbm_to_vmem [thread:$0]  %s1, 25088, %s34, [#allocation6], 256, 256, 16
    $region9: #{tpu_custom_call.1} parent=1 // pred_fallthru
      _
    // Predicated region
    $region10: #{tpu_custom_call.1} parent=1 // pred_check
      _
    $region11: #{tpu_custom_call.1} parent=1 // pred_check_branch
      %41 = sbr.rel (0) target = $region13
    $region12: #{tpu_custom_call.1} parent=1 // pred_region
      _
    $region13: #{tpu_custom_call.1} parent=1 // pred_fallthru
      _
    // Predicated region
    $region14: #{tpu_custom_call.1} parent=1 // pred_check
      _
    $region15: #{tpu_custom_call.1} parent=1 // pred_check_branch
      %43 = sbr.rel (0) target = $region17
    $region16: #{tpu_custom_call.1} parent=1 // pred_region
      %s45 = ssub.s32 8192, 8192
      %46 = vsyncadd [#allocation6], %s45
      %s47 = sshll.u32 [#allocation7], 4
      %s48 = int_to_ptr.vmem [resolvable:$true] %s47
      %53 = dma.hbm_to_vmem [thread:$0]  %s3, 8192, %s48, [#allocation6], 128, 128, 8
    $region17: #{tpu_custom_call.1} parent=1 // pred_fallthru
      _
    // Predicated region
    $region18: #{tpu_custom_call.1} parent=1 // pred_check
      _
    $region19: #{tpu_custom_call.1} parent=1 // pred_check_branch
      %55 = sbr.rel (0) target = $region21
    $region20: #{tpu_custom_call.1} parent=1 // pred_region
      _
    $region21: #{tpu_custom_call.1} parent=1 // pred_fallthru
      _
    // Predicated region
    $region22: #{tpu_custom_call.1} parent=1 // pred_check
      _
    $region23: #{tpu_custom_call.1} parent=1 // pred_check_branch
      %57 = sbr.rel (0) target = $region25
    $region24: #{tpu_custom_call.1} parent=1 // pred_region
      _
    $region25: #{tpu_custom_call.1} parent=1 // pred_fallthru
      _
    // Predicated region
    $region26: #{tpu_custom_call.1} parent=1 // pred_check
      _
    $region27: #{tpu_custom_call.1} parent=1 // pred_check_branch
      %59 = sbr.rel (0) target = $region29
    $region28: #{tpu_custom_call.1} parent=1 // pred_region
      _
    $region29: #{tpu_custom_call.1} parent=1 // pred_fallthru
      _
    // Predicated region
    $region30: #{tpu_custom_call.1} parent=1 // pred_check
      _
    $region31: #{tpu_custom_call.1} parent=1 // pred_check_branch
      %61 = sbr.rel (0) target = $region33
    $region32: #{tpu_custom_call.1} parent=1 // pred_region
      %62 = dma.done [#allocation4], 28672
    $region33: #{tpu_custom_call.1} parent=1 // pred_fallthru
      _
    // Predicated region
    $region34: #{tpu_custom_call.1} parent=1 // pred_check
      _
    $region35: #{tpu_custom_call.1} parent=1 // pred_check_branch
      %64 = sbr.rel (0) target = $region37
    $region36: #{tpu_custom_call.1} parent=1 // pred_region
      %65 = dma.done [#allocation6], 25088
    $region37: #{tpu_custom_call.1} parent=1 // pred_fallthru
      _
    // Predicated region
    $region38: #{tpu_custom_call.1} parent=1 // pred_check
      _
    $region39: #{tpu_custom_call.1} parent=1 // pred_check_branch
      %67 = sbr.rel (0) target = $region41
    $region40: #{tpu_custom_call.1} parent=1 // pred_region
      %68 = dma.done [#allocation6], 8192
    $region41: #{tpu_custom_call.1} parent=1 // pred_fallthru
      _
    %v70 = vld [vmem:[#allocation3] sm:$0xff]
    %v71 = vld [vmem:[#allocation3 + $0x8] sm:$0x3f]
    %v72 = vld [vmem:[#allocation3 + $0xe] sm:$0xff]
    %v73 = vld [vmem:[#allocation3 + $0x16] sm:$0x3f]
    %v74 = vld [vmem:[#allocation3 + $0x1c] sm:$0xff]
    %v75 = vld [vmem:[#allocation3 + $0x24] sm:$0x3f]
    %v76 = vld [vmem:[#allocation3 + $0x2a] sm:$0xff]
    %v77 = vld [vmem:[#allocation3 + $0x32] sm:$0x3f]
    %v78 = vld [vmem:[#allocation3 + $0x38] sm:$0xff]
    %v79 = vld [vmem:[#allocation3 + $0x40] sm:$0x3f]
    %v80 = vld [vmem:[#allocation3 + $0x46] sm:$0xff]
    %v81 = vld [vmem:[#allocation3 + $0x4e] sm:$0x3f]
    %v82 = vld [vmem:[#allocation3 + $0x54] sm:$0xff]
    %v83 = vld [vmem:[#allocation3 + $0x5c] sm:$0x3f]
    %v84 = vld [vmem:[#allocation3 + $0x62] sm:$0xff]
    %v85 = vld [vmem:[#allocation3 + $0x6a] sm:$0x3f]
    %v86 = vld [vmem:[#allocation3 + $0x70] sm:$0xff]
    %v87 = vld [vmem:[#allocation3 + $0x78] sm:$0x3f]
    %v88 = vld [vmem:[#allocation3 + $0x7e] sm:$0xff]
    %v89 = vld [vmem:[#allocation3 + $0x86] sm:$0x3f]
    %v90 = vld [vmem:[#allocation3 + $0x8c] sm:$0xff]
    %v91 = vld [vmem:[#allocation3 + $0x94] sm:$0x3f]
    %v92 = vld [vmem:[#allocation3 + $0x9a] sm:$0xff]
    %v93 = vld [vmem:[#allocation3 + $0xa2] sm:$0x3f]
    %v94 = vld [vmem:[#allocation3 + $0xa8] sm:$0xff]
    %v95 = vld [vmem:[#allocation3 + $0xb0] sm:$0x3f]
    %v96 = vld [vmem:[#allocation3 + $0xb6] sm:$0xff]
    %v97 = vld [vmem:[#allocation3 + $0xbe] sm:$0x3f]
    %v98 = vld [vmem:[#allocation3 + $0xc4] sm:$0xff]
    %v99 = vld [vmem:[#allocation3 + $0xcc] sm:$0x3f]
    %v100 = vld [vmem:[#allocation3 + $0xd2] sm:$0xff]
    %v101 = vld [vmem:[#allocation3 + $0xda] sm:$0x3f]
    %v102 = vld [vmem:[#allocation3 + $0xe0] sm:$0xff]
    %v103 = vld [vmem:[#allocation3 + $0xe8] sm:$0x3f]
    %v104 = vld [vmem:[#allocation3 + $0xee] sm:$0xff]
    %v105 = vld [vmem:[#allocation3 + $0xf6] sm:$0x3f]
    %v106 = vld [vmem:[#allocation3 + $0xfc] sm:$0xff]
    %v107 = vld [vmem:[#allocation3 + $0x104] sm:$0x3f]
    %v108 = vld [vmem:[#allocation3 + $0x10a] sm:$0xff]
    %v109 = vld [vmem:[#allocation3 + $0x112] sm:$0x3f]
    %v110 = vld [vmem:[#allocation3 + $0x118] sm:$0xff]
    %v111 = vld [vmem:[#allocation3 + $0x120] sm:$0x3f]
    %v112 = vld [vmem:[#allocation3 + $0x126] sm:$0xff]
    %v113 = vld [vmem:[#allocation3 + $0x12e] sm:$0x3f]
    %v114 = vld [vmem:[#allocation3 + $0x134] sm:$0xff]
    %v115 = vld [vmem:[#allocation3 + $0x13c] sm:$0x3f]
    %v116 = vld [vmem:[#allocation3 + $0x142] sm:$0xff]
    %v117 = vld [vmem:[#allocation3 + $0x14a] sm:$0x3f]
    %v118 = vld [vmem:[#allocation3 + $0x150] sm:$0xff]
    %v119 = vld [vmem:[#allocation3 + $0x158] sm:$0x3f]
    %v120 = vld [vmem:[#allocation3 + $0x15e] sm:$0xff]
    %v121 = vld [vmem:[#allocation3 + $0x166] sm:$0x3f]
    %v122 = vld [vmem:[#allocation3 + $0x16c] sm:$0xff]
    %v123 = vld [vmem:[#allocation3 + $0x174] sm:$0x3f]
    %v124 = vld [vmem:[#allocation3 + $0x17a] sm:$0xff]
    %v125 = vld [vmem:[#allocation3 + $0x182] sm:$0x3f]
    %v126 = vld [vmem:[#allocation3 + $0x188] sm:$0xff]
    %v127 = vld [vmem:[#allocation3 + $0x190] sm:$0x3f]
    %v128 = vld [vmem:[#allocation3 + $0x196] sm:$0xff]
    %v129 = vld [vmem:[#allocation3 + $0x19e] sm:$0x3f]
    %v130 = vld [vmem:[#allocation3 + $0x1a4] sm:$0xff]
    %v131 = vld [vmem:[#allocation3 + $0x1ac] sm:$0x3f]
    %v132 = vld [vmem:[#allocation3 + $0x1b2] sm:$0xff]
    %v133 = vld [vmem:[#allocation3 + $0x1ba] sm:$0x3f]
    %v134 = vld [vmem:[#allocation3 + $0x1c0] sm:$0xff]
    %v135 = vld [vmem:[#allocation3 + $0x1c8] sm:$0x3f]
    %v136 = vld [vmem:[#allocation3 + $0x1ce] sm:$0xff]
    %v137 = vld [vmem:[#allocation3 + $0x1d6] sm:$0x3f]
    %v138 = vld [vmem:[#allocation3 + $0x1dc] sm:$0xff]
    %v139 = vld [vmem:[#allocation3 + $0x1e4] sm:$0x3f]
    %v140 = vld [vmem:[#allocation3 + $0x1ea] sm:$0xff]
    %v141 = vld [vmem:[#allocation3 + $0x1f2] sm:$0x3f]
    %v142 = vld [vmem:[#allocation3 + $0x1f8] sm:$0xff]
    %v143 = vld [vmem:[#allocation3 + $0x200] sm:$0x3f]
    %v144 = vld [vmem:[#allocation3 + $0x206] sm:$0xff]
    %v145 = vld [vmem:[#allocation3 + $0x20e] sm:$0x3f]
    %v146 = vld [vmem:[#allocation3 + $0x214] sm:$0xff]
    %v147 = vld [vmem:[#allocation3 + $0x21c] sm:$0x3f]
    %v148 = vld [vmem:[#allocation3 + $0x222] sm:$0xff]
    %v149 = vld [vmem:[#allocation3 + $0x22a] sm:$0x3f]
    %v150 = vld [vmem:[#allocation3 + $0x230] sm:$0xff]
    %v151 = vld [vmem:[#allocation3 + $0x238] sm:$0x3f]
    %v152 = vld [vmem:[#allocation3 + $0x23e] sm:$0xff]
    %v153 = vld [vmem:[#allocation3 + $0x246] sm:$0x3f]
    %v154 = vld [vmem:[#allocation3 + $0x24c] sm:$0xff]
    %v155 = vld [vmem:[#allocation3 + $0x254] sm:$0x3f]
    %v156 = vld [vmem:[#allocation3 + $0x25a] sm:$0xff]
    %v157 = vld [vmem:[#allocation3 + $0x262] sm:$0x3f]
    %v158 = vld [vmem:[#allocation3 + $0x268] sm:$0xff]
    %v159 = vld [vmem:[#allocation3 + $0x270] sm:$0x3f]
    %v160 = vld [vmem:[#allocation3 + $0x276] sm:$0xff]
    %v161 = vld [vmem:[#allocation3 + $0x27e] sm:$0x3f]
    %v162 = vld [vmem:[#allocation3 + $0x284] sm:$0xff]
    %v163 = vld [vmem:[#allocation3 + $0x28c] sm:$0x3f]
    %v164 = vld [vmem:[#allocation3 + $0x292] sm:$0xff]
    %v165 = vld [vmem:[#allocation3 + $0x29a] sm:$0x3f]
    %v166 = vld [vmem:[#allocation3 + $0x2a0] sm:$0xff]
    %v167 = vld [vmem:[#allocation3 + $0x2a8] sm:$0x3f]
    %v168 = vld [vmem:[#allocation3 + $0x2ae] sm:$0xff]
    %v169 = vld [vmem:[#allocation3 + $0x2b6] sm:$0x3f]
    %v170 = vld [vmem:[#allocation3 + $0x2bc] sm:$0xff]
    %v171 = vld [vmem:[#allocation3 + $0x2c4] sm:$0x3f]
    %v172 = vld [vmem:[#allocation3 + $0x2ca] sm:$0xff]
    %v173 = vld [vmem:[#allocation3 + $0x2d2] sm:$0x3f]
    %v174 = vld [vmem:[#allocation3 + $0x2d8] sm:$0xff]
    %v175 = vld [vmem:[#allocation3 + $0x2e0] sm:$0x3f]
    %v176 = vld [vmem:[#allocation3 + $0x2e6] sm:$0xff]
    %v177 = vld [vmem:[#allocation3 + $0x2ee] sm:$0x3f]
    %v178 = vld [vmem:[#allocation3 + $0x2f4] sm:$0xff]
    %v179 = vld [vmem:[#allocation3 + $0x2fc] sm:$0x3f]
    %v180 = vld [vmem:[#allocation3 + $0x302] sm:$0xff]
    %v181 = vld [vmem:[#allocation3 + $0x30a] sm:$0x3f]
    %v182 = vld [vmem:[#allocation3 + $0x310] sm:$0xff]
    %v183 = vld [vmem:[#allocation3 + $0x318] sm:$0x3f]
    %v184 = vld [vmem:[#allocation3 + $0x31e] sm:$0xff]
    %v185 = vld [vmem:[#allocation3 + $0x326] sm:$0x3f]
    %v186 = vld [vmem:[#allocation3 + $0x32c] sm:$0xff]
    %v187 = vld [vmem:[#allocation3 + $0x334] sm:$0x3f]
    %v188 = vld [vmem:[#allocation3 + $0x33a] sm:$0xff]
    %v189 = vld [vmem:[#allocation3 + $0x342] sm:$0x3f]
    %v190 = vld [vmem:[#allocation3 + $0x348] sm:$0xff]
    %v191 = vld [vmem:[#allocation3 + $0x350] sm:$0x3f]
    %v192 = vld [vmem:[#allocation3 + $0x356] sm:$0xff]
    %v193 = vld [vmem:[#allocation3 + $0x35e] sm:$0x3f]
    %v194 = vld [vmem:[#allocation3 + $0x364] sm:$0xff]
    %v195 = vld [vmem:[#allocation3 + $0x36c] sm:$0x3f]
    %v196 = vld [vmem:[#allocation3 + $0x372] sm:$0xff]
    %v197 = vld [vmem:[#allocation3 + $0x37a] sm:$0x3f]
    %v198 = vld [vmem:[#allocation3 + $0x380] sm:$0xff]
    %v199 = vld [vmem:[#allocation3 + $0x388] sm:$0x3f]
    %v200 = vld [vmem:[#allocation3 + $0x38e] sm:$0xff]
    %v201 = vld [vmem:[#allocation3 + $0x396] sm:$0x3f]
    %v202 = vld [vmem:[#allocation3 + $0x39c] sm:$0xff]
    %v203 = vld [vmem:[#allocation3 + $0x3a4] sm:$0x3f]
    %v204 = vld [vmem:[#allocation3 + $0x3aa] sm:$0xff]
    %v205 = vld [vmem:[#allocation3 + $0x3b2] sm:$0x3f]
    %v206 = vld [vmem:[#allocation3 + $0x3b8] sm:$0xff]
    %v207 = vld [vmem:[#allocation3 + $0x3c0] sm:$0x3f]
    %v208 = vld [vmem:[#allocation3 + $0x3c6] sm:$0xff]
    %v209 = vld [vmem:[#allocation3 + $0x3ce] sm:$0x3f]
    %v210 = vld [vmem:[#allocation3 + $0x3d4] sm:$0xff]
    %v211 = vld [vmem:[#allocation3 + $0x3dc] sm:$0x3f]
    %v212 = vld [vmem:[#allocation3 + $0x3e2] sm:$0xff]
    %v213 = vld [vmem:[#allocation3 + $0x3ea] sm:$0x3f]
    %v214 = vld [vmem:[#allocation3 + $0x3f0] sm:$0xff]
    %v215 = vld [vmem:[#allocation3 + $0x3f8] sm:$0x3f]
    %v216 = vld [vmem:[#allocation3 + $0x3fe] sm:$0xff]
    %v217 = vld [vmem:[#allocation3 + $0x406] sm:$0x3f]
    %v218 = vld [vmem:[#allocation3 + $0x40c] sm:$0xff]
    %v219 = vld [vmem:[#allocation3 + $0x414] sm:$0x3f]
    %v220 = vld [vmem:[#allocation3 + $0x41a] sm:$0xff]
    %v221 = vld [vmem:[#allocation3 + $0x422] sm:$0x3f]
    %v222 = vld [vmem:[#allocation3 + $0x428] sm:$0xff]
    %v223 = vld [vmem:[#allocation3 + $0x430] sm:$0x3f]
    %v224 = vld [vmem:[#allocation3 + $0x436] sm:$0xff]
    %v225 = vld [vmem:[#allocation3 + $0x43e] sm:$0x3f]
    %v226 = vld [vmem:[#allocation3 + $0x444] sm:$0xff]
    %v227 = vld [vmem:[#allocation3 + $0x44c] sm:$0x3f]
    %v228 = vld [vmem:[#allocation3 + $0x452] sm:$0xff]
    %v229 = vld [vmem:[#allocation3 + $0x45a] sm:$0x3f]
    %v230 = vld [vmem:[#allocation3 + $0x460] sm:$0xff]
    %v231 = vld [vmem:[#allocation3 + $0x468] sm:$0x3f]
    %v232 = vld [vmem:[#allocation3 + $0x46e] sm:$0xff]
    %v233 = vld [vmem:[#allocation3 + $0x476] sm:$0x3f]
    %v234 = vld [vmem:[#allocation3 + $0x47c] sm:$0xff]
    %v235 = vld [vmem:[#allocation3 + $0x484] sm:$0x3f]
    %v236 = vld [vmem:[#allocation3 + $0x48a] sm:$0xff]
    %v237 = vld [vmem:[#allocation3 + $0x492] sm:$0x3f]
    %v238 = vld [vmem:[#allocation3 + $0x498] sm:$0xff]
    %v239 = vld [vmem:[#allocation3 + $0x4a0] sm:$0x3f]
    %v240 = vld [vmem:[#allocation3 + $0x4a6] sm:$0xff]
    %v241 = vld [vmem:[#allocation3 + $0x4ae] sm:$0x3f]
    %v242 = vld [vmem:[#allocation3 + $0x4b4] sm:$0xff]
    %v243 = vld [vmem:[#allocation3 + $0x4bc] sm:$0x3f]
    %v244 = vld [vmem:[#allocation3 + $0x4c2] sm:$0xff]
    %v245 = vld [vmem:[#allocation3 + $0x4ca] sm:$0x3f]
    %v246 = vld [vmem:[#allocation3 + $0x4d0] sm:$0xff]
    %v247 = vld [vmem:[#allocation3 + $0x4d8] sm:$0x3f]
    %v248 = vld [vmem:[#allocation3 + $0x4de] sm:$0xff]
    %v249 = vld [vmem:[#allocation3 + $0x4e6] sm:$0x3f]
    %v250 = vld [vmem:[#allocation3 + $0x4ec] sm:$0xff]
    %v251 = vld [vmem:[#allocation3 + $0x4f4] sm:$0x3f]
    %v252 = vld [vmem:[#allocation3 + $0x4fa] sm:$0xff]
    %v253 = vld [vmem:[#allocation3 + $0x502] sm:$0x3f]
    %v254 = vld [vmem:[#allocation3 + $0x508] sm:$0xff]
    %v255 = vld [vmem:[#allocation3 + $0x510] sm:$0x3f]
    %v256 = vld [vmem:[#allocation3 + $0x516] sm:$0xff]
    %v257 = vld [vmem:[#allocation3 + $0x51e] sm:$0x3f]
    %v258 = vld [vmem:[#allocation3 + $0x524] sm:$0xff]
    %v259 = vld [vmem:[#allocation3 + $0x52c] sm:$0x3f]
    %v260 = vld [vmem:[#allocation3 + $0x532] sm:$0xff]
    %v261 = vld [vmem:[#allocation3 + $0x53a] sm:$0x3f]
    %v262 = vld [vmem:[#allocation3 + $0x540] sm:$0xff]
    %v263 = vld [vmem:[#allocation3 + $0x548] sm:$0x3f]
    %v264 = vld [vmem:[#allocation3 + $0x54e] sm:$0xff]
    %v265 = vld [vmem:[#allocation3 + $0x556] sm:$0x3f]
    %v266 = vld [vmem:[#allocation3 + $0x55c] sm:$0xff]
    %v267 = vld [vmem:[#allocation3 + $0x564] sm:$0x3f]
    %v268 = vld [vmem:[#allocation3 + $0x56a] sm:$0xff]
    %v269 = vld [vmem:[#allocation3 + $0x572] sm:$0x3f]
    %v270 = vld [vmem:[#allocation3 + $0x578] sm:$0xff]
    %v271 = vld [vmem:[#allocation3 + $0x580] sm:$0x3f]
    %v272 = vld [vmem:[#allocation3 + $0x586] sm:$0xff]
    %v273 = vld [vmem:[#allocation3 + $0x58e] sm:$0x3f]
    %v274 = vld [vmem:[#allocation3 + $0x594] sm:$0xff]
    %v275 = vld [vmem:[#allocation3 + $0x59c] sm:$0x3f]
    %v276 = vld [vmem:[#allocation3 + $0x5a2] sm:$0xff]
    %v277 = vld [vmem:[#allocation3 + $0x5aa] sm:$0x3f]
    %v278 = vld [vmem:[#allocation3 + $0x5b0] sm:$0xff]
    %v279 = vld [vmem:[#allocation3 + $0x5b8] sm:$0x3f]
    %v280 = vld [vmem:[#allocation3 + $0x5be] sm:$0xff]
    %v281 = vld [vmem:[#allocation3 + $0x5c6] sm:$0x3f]
    %v282 = vld [vmem:[#allocation3 + $0x5cc] sm:$0xff]
    %v283 = vld [vmem:[#allocation3 + $0x5d4] sm:$0x3f]
    %v284 = vld [vmem:[#allocation3 + $0x5da] sm:$0xff]
    %v285 = vld [vmem:[#allocation3 + $0x5e2] sm:$0x3f]
    %v286 = vld [vmem:[#allocation3 + $0x5e8] sm:$0xff]
    %v287 = vld [vmem:[#allocation3 + $0x5f0] sm:$0x3f]
    %v288 = vld [vmem:[#allocation3 + $0x5f6] sm:$0xff]
    %v289 = vld [vmem:[#allocation3 + $0x5fe] sm:$0x3f]
    %v290 = vld [vmem:[#allocation3 + $0x604] sm:$0xff]
    %v291 = vld [vmem:[#allocation3 + $0x60c] sm:$0x3f]
    %v292 = vld [vmem:[#allocation3 + $0x612] sm:$0xff]
    %v293 = vld [vmem:[#allocation3 + $0x61a] sm:$0x3f]
    %v294 = vld [vmem:[#allocation3 + $0x620] sm:$0xff]
    %v295 = vld [vmem:[#allocation3 + $0x628] sm:$0x3f]
    %v296 = vld [vmem:[#allocation3 + $0x62e] sm:$0xff]
    %v297 = vld [vmem:[#allocation3 + $0x636] sm:$0x3f]
    %v298 = vld [vmem:[#allocation3 + $0x63c] sm:$0xff]
    %v299 = vld [vmem:[#allocation3 + $0x644] sm:$0x3f]
    %v300 = vld [vmem:[#allocation3 + $0x64a] sm:$0xff]
    %v301 = vld [vmem:[#allocation3 + $0x652] sm:$0x3f]
    %v302 = vld [vmem:[#allocation3 + $0x658] sm:$0xff]
    %v303 = vld [vmem:[#allocation3 + $0x660] sm:$0x3f]
    %v304 = vld [vmem:[#allocation3 + $0x666] sm:$0xff]
    %v305 = vld [vmem:[#allocation3 + $0x66e] sm:$0x3f]
    %v306 = vld [vmem:[#allocation3 + $0x674] sm:$0xff]
    %v307 = vld [vmem:[#allocation3 + $0x67c] sm:$0x3f]
    %v308 = vld [vmem:[#allocation3 + $0x682] sm:$0xff]
    %v309 = vld [vmem:[#allocation3 + $0x68a] sm:$0x3f]
    %v310 = vld [vmem:[#allocation3 + $0x690] sm:$0xff]
    %v311 = vld [vmem:[#allocation3 + $0x698] sm:$0x3f]
    %v312 = vld [vmem:[#allocation3 + $0x69e] sm:$0xff]
    %v313 = vld [vmem:[#allocation3 + $0x6a6] sm:$0x3f]
    %v314 = vld [vmem:[#allocation3 + $0x6ac] sm:$0xff]
    %v315 = vld [vmem:[#allocation3 + $0x6b4] sm:$0x3f]
    %v316 = vld [vmem:[#allocation3 + $0x6ba] sm:$0xff]
    %v317 = vld [vmem:[#allocation3 + $0x6c2] sm:$0x3f]
    %v318 = vld [vmem:[#allocation3 + $0x6c8] sm:$0xff]
    %v319 = vld [vmem:[#allocation3 + $0x6d0] sm:$0x3f]
    %v320 = vld [vmem:[#allocation3 + $0x6d6] sm:$0xff]
    %v321 = vld [vmem:[#allocation3 + $0x6de] sm:$0x3f]
    %v322 = vld [vmem:[#allocation3 + $0x6e4] sm:$0xff]
    %v323 = vld [vmem:[#allocation3 + $0x6ec] sm:$0x3f]
    %v324 = vld [vmem:[#allocation3 + $0x6f2] sm:$0xff]
    %v325 = vld [vmem:[#allocation3 + $0x6fa] sm:$0x3f]
    %v582 = vcombine.low %v70, %v72
    %v583 = vcombine.high %v70, %v72
    %v584 = vcombine.low %v74, %v76
    %v585 = vcombine.high %v74, %v76
    %v587 = vunpack.c.l.s4 1983009808
    %v588 = vunpack.c.0.s8 %v587
    %v589 = vlaneseq
    %v590 = vshrl.u32 %v589, 7
    %v591 = vsub.s32 %v588, %v590
    %v592 = vrot.slane %v582, %v591
    %v594 = vunpack.c.l.s4 1983009808
    %v595 = vunpack.c.0.s8 %v594
    %v596 = vlaneseq
    %v597 = vshrl.u32 %v596, 7
    %v598 = vsub.s32 %v595, %v597
    %v599 = vrot.slane %v583, %v598
    %v601 = vunpack.c.l.s4 1983009808
    %v602 = vunpack.c.0.s8 %v601
    %v603 = vlaneseq
    %v604 = vshrl.u32 %v603, 7
    %v605 = vsub.s32 %v602, %v604
    %v606 = vrot.slane %v584, %v605
    %v608 = vunpack.c.l.s4 1983009808
    %v609 = vunpack.c.0.s8 %v608
    %v610 = vlaneseq
    %v611 = vshrl.u32 %v610, 7
    %v612 = vsub.s32 %v609, %v611
    %v613 = vrot.slane %v585, %v612
    %v614 = vcombine.low %v592, %v606
    %v615 = vcombine.high %v592, %v606
    %v616 = vcombine.low %v599, %v613
    %v617 = vcombine.high %v599, %v613
    %v618 = vcombine.low %v71, %v73
    %v619 = vcombine.high %v71, %v73
    %v620 = vcombine.low %v75, %v77
    %v621 = vcombine.high %v75, %v77
    %v623 = vunpack.c.l.s4 1983009808
    %v624 = vunpack.c.0.s8 %v623
    %v625 = vlaneseq
    %v626 = vshrl.u32 %v625, 7
    %v627 = vsub.s32 %v624, %v626
    %v628 = vrot.slane %v618, %v627
    %v630 = vunpack.c.l.s4 1983009808
    %v631 = vunpack.c.0.s8 %v630
    %v632 = vlaneseq
    %v633 = vshrl.u32 %v632, 7
    %v634 = vsub.s32 %v631, %v633
    %v635 = vrot.slane %v619, %v634
    %v637 = vunpack.c.l.s4 1983009808
    %v638 = vunpack.c.0.s8 %v637
    %v639 = vlaneseq
    %v640 = vshrl.u32 %v639, 7
    %v641 = vsub.s32 %v638, %v640
    %v642 = vrot.slane %v620, %v641
    %v644 = vunpack.c.l.s4 1983009808
    %v645 = vunpack.c.0.s8 %v644
    %v646 = vlaneseq
    %v647 = vshrl.u32 %v646, 7
    %v648 = vsub.s32 %v645, %v647
    %v649 = vrot.slane %v621, %v648
    %v650 = vcombine.low %v628, %v642
    %v651 = vcombine.high %v628, %v642
    %v652 = vcombine.low %v635, %v649
    %v653 = vcombine.low %v78, %v80
    %v654 = vcombine.high %v78, %v80
    %v655 = vcombine.low %v82, %v84
    %v656 = vcombine.high %v82, %v84
    %v658 = vunpack.c.l.s4 1983009808
    %v659 = vunpack.c.0.s8 %v658
    %v660 = vlaneseq
    %v661 = vshrl.u32 %v660, 7
    %v662 = vsub.s32 %v659, %v661
    %v663 = vrot.slane %v653, %v662
    %v665 = vunpack.c.l.s4 1983009808
    %v666 = vunpack.c.0.s8 %v665
    %v667 = vlaneseq
    %v668 = vshrl.u32 %v667, 7
    %v669 = vsub.s32 %v666, %v668
    %v670 = vrot.slane %v654, %v669
    %v672 = vunpack.c.l.s4 1983009808
    %v673 = vunpack.c.0.s8 %v672
    %v674 = vlaneseq
    %v675 = vshrl.u32 %v674, 7
    %v676 = vsub.s32 %v673, %v675
    %v677 = vrot.slane %v655, %v676
    %v679 = vunpack.c.l.s4 1983009808
    %v680 = vunpack.c.0.s8 %v679
    %v681 = vlaneseq
    %v682 = vshrl.u32 %v681, 7
    %v683 = vsub.s32 %v680, %v682
    %v684 = vrot.slane %v656, %v683
    %v685 = vcombine.low %v663, %v677
    %v686 = vcombine.high %v663, %v677
    %v687 = vcombine.low %v670, %v684
    %v688 = vcombine.high %v670, %v684
    %v689 = vcombine.low %v79, %v81
    %v690 = vcombine.high %v79, %v81
    %v691 = vcombine.low %v83, %v85
    %v692 = vcombine.high %v83, %v85
    %v694 = vunpack.c.l.s4 1983009808
    %v695 = vunpack.c.0.s8 %v694
    %v696 = vlaneseq
    %v697 = vshrl.u32 %v696, 7
    %v698 = vsub.s32 %v695, %v697
    %v699 = vrot.slane %v689, %v698
    %v701 = vunpack.c.l.s4 1983009808
    %v702 = vunpack.c.0.s8 %v701
    %v703 = vlaneseq
    %v704 = vshrl.u32 %v703, 7
    %v705 = vsub.s32 %v702, %v704
    %v706 = vrot.slane %v690, %v705
    %v708 = vunpack.c.l.s4 1983009808
    %v709 = vunpack.c.0.s8 %v708
    %v710 = vlaneseq
    %v711 = vshrl.u32 %v710, 7
    %v712 = vsub.s32 %v709, %v711
    %v713 = vrot.slane %v691, %v712
    %v715 = vunpack.c.l.s4 1983009808
    %v716 = vunpack.c.0.s8 %v715
    %v717 = vlaneseq
    %v718 = vshrl.u32 %v717, 7
    %v719 = vsub.s32 %v716, %v718
    %v720 = vrot.slane %v692, %v719
    %v721 = vcombine.low %v699, %v713
    %v722 = vcombine.high %v699, %v713
    %v723 = vcombine.low %v706, %v720
    %v724 = vcombine.low %v86, %v88
    %v725 = vcombine.high %v86, %v88
    %v726 = vcombine.low %v90, %v92
    %v727 = vcombine.high %v90, %v92
    %v729 = vunpack.c.l.s4 1983009808
    %v730 = vunpack.c.0.s8 %v729
    %v731 = vlaneseq
    %v732 = vshrl.u32 %v731, 7
    %v733 = vsub.s32 %v730, %v732
    %v734 = vrot.slane %v724, %v733
    %v736 = vunpack.c.l.s4 1983009808
    %v737 = vunpack.c.0.s8 %v736
    %v738 = vlaneseq
    %v739 = vshrl.u32 %v738, 7
    %v740 = vsub.s32 %v737, %v739
    %v741 = vrot.slane %v725, %v740
    %v743 = vunpack.c.l.s4 1983009808
    %v744 = vunpack.c.0.s8 %v743
    %v745 = vlaneseq
    %v746 = vshrl.u32 %v745, 7
    %v747 = vsub.s32 %v744, %v746
    %v748 = vrot.slane %v726, %v747
    %v750 = vunpack.c.l.s4 1983009808
    %v751 = vunpack.c.0.s8 %v750
    %v752 = vlaneseq
    %v753 = vshrl.u32 %v752, 7
    %v754 = vsub.s32 %v751, %v753
    %v755 = vrot.slane %v727, %v754
    %v756 = vcombine.low %v734, %v748
    %v757 = vcombine.high %v734, %v748
    %v758 = vcombine.low %v741, %v755
    %v759 = vcombine.high %v741, %v755
    %v760 = vcombine.low %v87, %v89
    %v761 = vcombine.high %v87, %v89
    %v762 = vcombine.low %v91, %v93
    %v763 = vcombine.high %v91, %v93
    %v765 = vunpack.c.l.s4 1983009808
    %v766 = vunpack.c.0.s8 %v765
    %v767 = vlaneseq
    %v768 = vshrl.u32 %v767, 7
    %v769 = vsub.s32 %v766, %v768
    %v770 = vrot.slane %v760, %v769
    %v772 = vunpack.c.l.s4 1983009808
    %v773 = vunpack.c.0.s8 %v772
    %v774 = vlaneseq
    %v775 = vshrl.u32 %v774, 7
    %v776 = vsub.s32 %v773, %v775
    %v777 = vrot.slane %v761, %v776
    %v779 = vunpack.c.l.s4 1983009808
    %v780 = vunpack.c.0.s8 %v779
    %v781 = vlaneseq
    %v782 = vshrl.u32 %v781, 7
    %v783 = vsub.s32 %v780, %v782
    %v784 = vrot.slane %v762, %v783
    %v786 = vunpack.c.l.s4 1983009808
    %v787 = vunpack.c.0.s8 %v786
    %v788 = vlaneseq
    %v789 = vshrl.u32 %v788, 7
    %v790 = vsub.s32 %v787, %v789
    %v791 = vrot.slane %v763, %v790
    %v792 = vcombine.low %v770, %v784
    %v793 = vcombine.high %v770, %v784
    %v794 = vcombine.low %v777, %v791
    %v795 = vcombine.low %v94, %v96
    %v796 = vcombine.high %v94, %v96
    %v797 = vcombine.low %v98, %v100
    %v798 = vcombine.high %v98, %v100
    %v800 = vunpack.c.l.s4 1983009808
    %v801 = vunpack.c.0.s8 %v800
    %v802 = vlaneseq
    %v803 = vshrl.u32 %v802, 7
    %v804 = vsub.s32 %v801, %v803
    %v805 = vrot.slane %v795, %v804
    %v807 = vunpack.c.l.s4 1983009808
    %v808 = vunpack.c.0.s8 %v807
    %v809 = vlaneseq
    %v810 = vshrl.u32 %v809, 7
    %v811 = vsub.s32 %v808, %v810
    %v812 = vrot.slane %v796, %v811
    %v814 = vunpack.c.l.s4 1983009808
    %v815 = vunpack.c.0.s8 %v814
    %v816 = vlaneseq
    %v817 = vshrl.u32 %v816, 7
    %v818 = vsub.s32 %v815, %v817
    %v819 = vrot.slane %v797, %v818
    %v821 = vunpack.c.l.s4 1983009808
    %v822 = vunpack.c.0.s8 %v821
    %v823 = vlaneseq
    %v824 = vshrl.u32 %v823, 7
    %v825 = vsub.s32 %v822, %v824
    %v826 = vrot.slane %v798, %v825
    %v827 = vcombine.low %v805, %v819
    %v828 = vcombine.high %v805, %v819
    %v829 = vcombine.low %v812, %v826
    %v830 = vcombine.high %v812, %v826
    %v831 = vcombine.low %v95, %v97
    %v832 = vcombine.high %v95, %v97
    %v833 = vcombine.low %v99, %v101
    %v834 = vcombine.high %v99, %v101
    %v836 = vunpack.c.l.s4 1983009808
    %v837 = vunpack.c.0.s8 %v836
    %v838 = vlaneseq
    %v839 = vshrl.u32 %v838, 7
    %v840 = vsub.s32 %v837, %v839
    %v841 = vrot.slane %v831, %v840
    %v843 = vunpack.c.l.s4 1983009808
    %v844 = vunpack.c.0.s8 %v843
    %v845 = vlaneseq
    %v846 = vshrl.u32 %v845, 7
    %v847 = vsub.s32 %v844, %v846
    %v848 = vrot.slane %v832, %v847
    %v850 = vunpack.c.l.s4 1983009808
    %v851 = vunpack.c.0.s8 %v850
    %v852 = vlaneseq
    %v853 = vshrl.u32 %v852, 7
    %v854 = vsub.s32 %v851, %v853
    %v855 = vrot.slane %v833, %v854
    %v857 = vunpack.c.l.s4 1983009808
    %v858 = vunpack.c.0.s8 %v857
    %v859 = vlaneseq
    %v860 = vshrl.u32 %v859, 7
    %v861 = vsub.s32 %v858, %v860
    %v862 = vrot.slane %v834, %v861
    %v863 = vcombine.low %v841, %v855
    %v864 = vcombine.high %v841, %v855
    %v865 = vcombine.low %v848, %v862
    %v866 = vcombine.low %v102, %v104
    %v867 = vcombine.high %v102, %v104
    %v868 = vcombine.low %v106, %v108
    %v869 = vcombine.high %v106, %v108
    %v871 = vunpack.c.l.s4 1983009808
    %v872 = vunpack.c.0.s8 %v871
    %v873 = vlaneseq
    %v874 = vshrl.u32 %v873, 7
    %v875 = vsub.s32 %v872, %v874
    %v876 = vrot.slane %v866, %v875
    %v878 = vunpack.c.l.s4 1983009808
    %v879 = vunpack.c.0.s8 %v878
    %v880 = vlaneseq
    %v881 = vshrl.u32 %v880, 7
    %v882 = vsub.s32 %v879, %v881
    %v883 = vrot.slane %v867, %v882
    %v885 = vunpack.c.l.s4 1983009808
    %v886 = vunpack.c.0.s8 %v885
    %v887 = vlaneseq
    %v888 = vshrl.u32 %v887, 7
    %v889 = vsub.s32 %v886, %v888
    %v890 = vrot.slane %v868, %v889
    %v892 = vunpack.c.l.s4 1983009808
    %v893 = vunpack.c.0.s8 %v892
    %v894 = vlaneseq
    %v895 = vshrl.u32 %v894, 7
    %v896 = vsub.s32 %v893, %v895
    %v897 = vrot.slane %v869, %v896
    %v898 = vcombine.low %v876, %v890
    %v899 = vcombine.high %v876, %v890
    %v900 = vcombine.low %v883, %v897
    %v901 = vcombine.high %v883, %v897
    %v902 = vcombine.low %v103, %v105
    %v903 = vcombine.high %v103, %v105
    %v904 = vcombine.low %v107, %v109
    %v905 = vcombine.high %v107, %v109
    %v907 = vunpack.c.l.s4 1983009808
    %v908 = vunpack.c.0.s8 %v907
    %v909 = vlaneseq
    %v910 = vshrl.u32 %v909, 7
    %v911 = vsub.s32 %v908, %v910
    %v912 = vrot.slane %v902, %v911
    %v914 = vunpack.c.l.s4 1983009808
    %v915 = vunpack.c.0.s8 %v914
    %v916 = vlaneseq
    %v917 = vshrl.u32 %v916, 7
    %v918 = vsub.s32 %v915, %v917
    %v919 = vrot.slane %v903, %v918
    %v921 = vunpack.c.l.s4 1983009808
    %v922 = vunpack.c.0.s8 %v921
    %v923 = vlaneseq
    %v924 = vshrl.u32 %v923, 7
    %v925 = vsub.s32 %v922, %v924
    %v926 = vrot.slane %v904, %v925
    %v928 = vunpack.c.l.s4 1983009808
    %v929 = vunpack.c.0.s8 %v928
    %v930 = vlaneseq
    %v931 = vshrl.u32 %v930, 7
    %v932 = vsub.s32 %v929, %v931
    %v933 = vrot.slane %v905, %v932
    %v934 = vcombine.low %v912, %v926
    %v935 = vcombine.high %v912, %v926
    %v936 = vcombine.low %v919, %v933
    %v937 = vcombine.low %v110, %v112
    %v938 = vcombine.high %v110, %v112
    %v939 = vcombine.low %v114, %v116
    %v940 = vcombine.high %v114, %v116
    %v942 = vunpack.c.l.s4 1983009808
    %v943 = vunpack.c.0.s8 %v942
    %v944 = vlaneseq
    %v945 = vshrl.u32 %v944, 7
    %v946 = vsub.s32 %v943, %v945
    %v947 = vrot.slane %v937, %v946
    %v949 = vunpack.c.l.s4 1983009808
    %v950 = vunpack.c.0.s8 %v949
    %v951 = vlaneseq
    %v952 = vshrl.u32 %v951, 7
    %v953 = vsub.s32 %v950, %v952
    %v954 = vrot.slane %v938, %v953
    %v956 = vunpack.c.l.s4 1983009808
    %v957 = vunpack.c.0.s8 %v956
    %v958 = vlaneseq
    %v959 = vshrl.u32 %v958, 7
    %v960 = vsub.s32 %v957, %v959
    %v961 = vrot.slane %v939, %v960
    %v963 = vunpack.c.l.s4 1983009808
    %v964 = vunpack.c.0.s8 %v963
    %v965 = vlaneseq
    %v966 = vshrl.u32 %v965, 7
    %v967 = vsub.s32 %v964, %v966
    %v968 = vrot.slane %v940, %v967
    %v969 = vcombine.low %v947, %v961
    %v970 = vcombine.high %v947, %v961
    %v971 = vcombine.low %v954, %v968
    %v972 = vcombine.high %v954, %v968
    %v973 = vcombine.low %v111, %v113
    %v974 = vcombine.high %v111, %v113
    %v975 = vcombine.low %v115, %v117
    %v976 = vcombine.high %v115, %v117
    %v978 = vunpack.c.l.s4 1983009808
    %v979 = vunpack.c.0.s8 %v978
    %v980 = vlaneseq
    %v981 = vshrl.u32 %v980, 7
    %v982 = vsub.s32 %v979, %v981
    %v983 = vrot.slane %v973, %v982
    %v985 = vunpack.c.l.s4 1983009808
    %v986 = vunpack.c.0.s8 %v985
    %v987 = vlaneseq
    %v988 = vshrl.u32 %v987, 7
    %v989 = vsub.s32 %v986, %v988
    %v990 = vrot.slane %v974, %v989
    %v992 = vunpack.c.l.s4 1983009808
    %v993 = vunpack.c.0.s8 %v992
    %v994 = vlaneseq
    %v995 = vshrl.u32 %v994, 7
    %v996 = vsub.s32 %v993, %v995
    %v997 = vrot.slane %v975, %v996
    %v999 = vunpack.c.l.s4 1983009808
    %v1000 = vunpack.c.0.s8 %v999
    %v1001 = vlaneseq
    %v1002 = vshrl.u32 %v1001, 7
    %v1003 = vsub.s32 %v1000, %v1002
    %v1004 = vrot.slane %v976, %v1003
    %v1005 = vcombine.low %v983, %v997
    %v1006 = vcombine.high %v983, %v997
    %v1007 = vcombine.low %v990, %v1004
    %v1008 = vcombine.low %v118, %v120
    %v1009 = vcombine.high %v118, %v120
    %v1010 = vcombine.low %v122, %v124
    %v1011 = vcombine.high %v122, %v124
    %v1013 = vunpack.c.l.s4 1983009808
    %v1014 = vunpack.c.0.s8 %v1013
    %v1015 = vlaneseq
    %v1016 = vshrl.u32 %v1015, 7
    %v1017 = vsub.s32 %v1014, %v1016
    %v1018 = vrot.slane %v1008, %v1017
    %v1020 = vunpack.c.l.s4 1983009808
    %v1021 = vunpack.c.0.s8 %v1020
    %v1022 = vlaneseq
    %v1023 = vshrl.u32 %v1022, 7
    %v1024 = vsub.s32 %v1021, %v1023
    %v1025 = vrot.slane %v1009, %v1024
    %v1027 = vunpack.c.l.s4 1983009808
    %v1028 = vunpack.c.0.s8 %v1027
    %v1029 = vlaneseq
    %v1030 = vshrl.u32 %v1029, 7
    %v1031 = vsub.s32 %v1028, %v1030
    %v1032 = vrot.slane %v1010, %v1031
    %v1034 = vunpack.c.l.s4 1983009808
    %v1035 = vunpack.c.0.s8 %v1034
    %v1036 = vlaneseq
    %v1037 = vshrl.u32 %v1036, 7
    %v1038 = vsub.s32 %v1035, %v1037
    %v1039 = vrot.slane %v1011, %v1038
    %v1040 = vcombine.low %v1018, %v1032
    %v1041 = vcombine.high %v1018, %v1032
    %v1042 = vcombine.low %v1025, %v1039
    %v1043 = vcombine.high %v1025, %v1039
    %v1044 = vcombine.low %v119, %v121
    %v1045 = vcombine.high %v119, %v121
    %v1046 = vcombine.low %v123, %v125
    %v1047 = vcombine.high %v123, %v125
    %v1049 = vunpack.c.l.s4 1983009808
    %v1050 = vunpack.c.0.s8 %v1049
    %v1051 = vlaneseq
    %v1052 = vshrl.u32 %v1051, 7
    %v1053 = vsub.s32 %v1050, %v1052
    %v1054 = vrot.slane %v1044, %v1053
    %v1056 = vunpack.c.l.s4 1983009808
    %v1057 = vunpack.c.0.s8 %v1056
    %v1058 = vlaneseq
    %v1059 = vshrl.u32 %v1058, 7
    %v1060 = vsub.s32 %v1057, %v1059
    %v1061 = vrot.slane %v1045, %v1060
    %v1063 = vunpack.c.l.s4 1983009808
    %v1064 = vunpack.c.0.s8 %v1063
    %v1065 = vlaneseq
    %v1066 = vshrl.u32 %v1065, 7
    %v1067 = vsub.s32 %v1064, %v1066
    %v1068 = vrot.slane %v1046, %v1067
    %v1070 = vunpack.c.l.s4 1983009808
    %v1071 = vunpack.c.0.s8 %v1070
    %v1072 = vlaneseq
    %v1073 = vshrl.u32 %v1072, 7
    %v1074 = vsub.s32 %v1071, %v1073
    %v1075 = vrot.slane %v1047, %v1074
    %v1076 = vcombine.low %v1054, %v1068
    %v1077 = vcombine.high %v1054, %v1068
    %v1078 = vcombine.low %v1061, %v1075
    %v1079 = vcombine.low %v126, %v128
    %v1080 = vcombine.high %v126, %v128
    %v1081 = vcombine.low %v130, %v132
    %v1082 = vcombine.high %v130, %v132
    %v1084 = vunpack.c.l.s4 1983009808
    %v1085 = vunpack.c.0.s8 %v1084
    %v1086 = vlaneseq
    %v1087 = vshrl.u32 %v1086, 7
    %v1088 = vsub.s32 %v1085, %v1087
    %v1089 = vrot.slane %v1079, %v1088
    %v1091 = vunpack.c.l.s4 1983009808
    %v1092 = vunpack.c.0.s8 %v1091
    %v1093 = vlaneseq
    %v1094 = vshrl.u32 %v1093, 7
    %v1095 = vsub.s32 %v1092, %v1094
    %v1096 = vrot.slane %v1080, %v1095
    %v1098 = vunpack.c.l.s4 1983009808
    %v1099 = vunpack.c.0.s8 %v1098
    %v1100 = vlaneseq
    %v1101 = vshrl.u32 %v1100, 7
    %v1102 = vsub.s32 %v1099, %v1101
    %v1103 = vrot.slane %v1081, %v1102
    %v1105 = vunpack.c.l.s4 1983009808
    %v1106 = vunpack.c.0.s8 %v1105
    %v1107 = vlaneseq
    %v1108 = vshrl.u32 %v1107, 7
    %v1109 = vsub.s32 %v1106, %v1108
    %v1110 = vrot.slane %v1082, %v1109
    %v1111 = vcombine.low %v1089, %v1103
    %v1112 = vcombine.high %v1089, %v1103
    %v1113 = vcombine.low %v1096, %v1110
    %v1114 = vcombine.high %v1096, %v1110
    %v1115 = vcombine.low %v127, %v129
    %v1116 = vcombine.high %v127, %v129
    %v1117 = vcombine.low %v131, %v133
    %v1118 = vcombine.high %v131, %v133
    %v1120 = vunpack.c.l.s4 1983009808
    %v1121 = vunpack.c.0.s8 %v1120
    %v1122 = vlaneseq
    %v1123 = vshrl.u32 %v1122, 7
    %v1124 = vsub.s32 %v1121, %v1123
    %v1125 = vrot.slane %v1115, %v1124
    %v1127 = vunpack.c.l.s4 1983009808
    %v1128 = vunpack.c.0.s8 %v1127
    %v1129 = vlaneseq
    %v1130 = vshrl.u32 %v1129, 7
    %v1131 = vsub.s32 %v1128, %v1130
    %v1132 = vrot.slane %v1116, %v1131
    %v1134 = vunpack.c.l.s4 1983009808
    %v1135 = vunpack.c.0.s8 %v1134
    %v1136 = vlaneseq
    %v1137 = vshrl.u32 %v1136, 7
    %v1138 = vsub.s32 %v1135, %v1137
    %v1139 = vrot.slane %v1117, %v1138
    %v1141 = vunpack.c.l.s4 1983009808
    %v1142 = vunpack.c.0.s8 %v1141
    %v1143 = vlaneseq
    %v1144 = vshrl.u32 %v1143, 7
    %v1145 = vsub.s32 %v1142, %v1144
    %v1146 = vrot.slane %v1118, %v1145
    %v1147 = vcombine.low %v1125, %v1139
    %v1148 = vcombine.high %v1125, %v1139
    %v1149 = vcombine.low %v1132, %v1146
    %v1150 = vcombine.low %v134, %v136
    %v1151 = vcombine.high %v134, %v136
    %v1152 = vcombine.low %v138, %v140
    %v1153 = vcombine.high %v138, %v140
    %v1155 = vunpack.c.l.s4 1983009808
    %v1156 = vunpack.c.0.s8 %v1155
    %v1157 = vlaneseq
    %v1158 = vshrl.u32 %v1157, 7
    %v1159 = vsub.s32 %v1156, %v1158
    %v1160 = vrot.slane %v1150, %v1159
    %v1162 = vunpack.c.l.s4 1983009808
    %v1163 = vunpack.c.0.s8 %v1162
    %v1164 = vlaneseq
    %v1165 = vshrl.u32 %v1164, 7
    %v1166 = vsub.s32 %v1163, %v1165
    %v1167 = vrot.slane %v1151, %v1166
    %v1169 = vunpack.c.l.s4 1983009808
    %v1170 = vunpack.c.0.s8 %v1169
    %v1171 = vlaneseq
    %v1172 = vshrl.u32 %v1171, 7
    %v1173 = vsub.s32 %v1170, %v1172
    %v1174 = vrot.slane %v1152, %v1173
    %v1176 = vunpack.c.l.s4 1983009808
    %v1177 = vunpack.c.0.s8 %v1176
    %v1178 = vlaneseq
    %v1179 = vshrl.u32 %v1178, 7
    %v1180 = vsub.s32 %v1177, %v1179
    %v1181 = vrot.slane %v1153, %v1180
    %v1182 = vcombine.low %v1160, %v1174
    %v1183 = vcombine.high %v1160, %v1174
    %v1184 = vcombine.low %v1167, %v1181
    %v1185 = vcombine.high %v1167, %v1181
    %v1186 = vcombine.low %v135, %v137
    %v1187 = vcombine.high %v135, %v137
    %v1188 = vcombine.low %v139, %v141
    %v1189 = vcombine.high %v139, %v141
    %v1191 = vunpack.c.l.s4 1983009808
    %v1192 = vunpack.c.0.s8 %v1191
    %v1193 = vlaneseq
    %v1194 = vshrl.u32 %v1193, 7
    %v1195 = vsub.s32 %v1192, %v1194
    %v1196 = vrot.slane %v1186, %v1195
    %v1198 = vunpack.c.l.s4 1983009808
    %v1199 = vunpack.c.0.s8 %v1198
    %v1200 = vlaneseq
    %v1201 = vshrl.u32 %v1200, 7
    %v1202 = vsub.s32 %v1199, %v1201
    %v1203 = vrot.slane %v1187, %v1202
    %v1205 = vunpack.c.l.s4 1983009808
    %v1206 = vunpack.c.0.s8 %v1205
    %v1207 = vlaneseq
    %v1208 = vshrl.u32 %v1207, 7
    %v1209 = vsub.s32 %v1206, %v1208
    %v1210 = vrot.slane %v1188, %v1209
    %v1212 = vunpack.c.l.s4 1983009808
    %v1213 = vunpack.c.0.s8 %v1212
    %v1214 = vlaneseq
    %v1215 = vshrl.u32 %v1214, 7
    %v1216 = vsub.s32 %v1213, %v1215
    %v1217 = vrot.slane %v1189, %v1216
    %v1218 = vcombine.low %v1196, %v1210
    %v1219 = vcombine.high %v1196, %v1210
    %v1220 = vcombine.low %v1203, %v1217
    %v1221 = vcombine.low %v142, %v144
    %v1222 = vcombine.high %v142, %v144
    %v1223 = vcombine.low %v146, %v148
    %v1224 = vcombine.high %v146, %v148
    %v1226 = vunpack.c.l.s4 1983009808
    %v1227 = vunpack.c.0.s8 %v1226
    %v1228 = vlaneseq
    %v1229 = vshrl.u32 %v1228, 7
    %v1230 = vsub.s32 %v1227, %v1229
    %v1231 = vrot.slane %v1221, %v1230
    %v1233 = vunpack.c.l.s4 1983009808
    %v1234 = vunpack.c.0.s8 %v1233
    %v1235 = vlaneseq
    %v1236 = vshrl.u32 %v1235, 7
    %v1237 = vsub.s32 %v1234, %v1236
    %v1238 = vrot.slane %v1222, %v1237
    %v1240 = vunpack.c.l.s4 1983009808
    %v1241 = vunpack.c.0.s8 %v1240
    %v1242 = vlaneseq
    %v1243 = vshrl.u32 %v1242, 7
    %v1244 = vsub.s32 %v1241, %v1243
    %v1245 = vrot.slane %v1223, %v1244
    %v1247 = vunpack.c.l.s4 1983009808
    %v1248 = vunpack.c.0.s8 %v1247
    %v1249 = vlaneseq
    %v1250 = vshrl.u32 %v1249, 7
    %v1251 = vsub.s32 %v1248, %v1250
    %v1252 = vrot.slane %v1224, %v1251
    %v1253 = vcombine.low %v1231, %v1245
    %v1254 = vcombine.high %v1231, %v1245
    %v1255 = vcombine.low %v1238, %v1252
    %v1256 = vcombine.high %v1238, %v1252
    %v1257 = vcombine.low %v143, %v145
    %v1258 = vcombine.high %v143, %v145
    %v1259 = vcombine.low %v147, %v149
    %v1260 = vcombine.high %v147, %v149
    %v1262 = vunpack.c.l.s4 1983009808
    %v1263 = vunpack.c.0.s8 %v1262
    %v1264 = vlaneseq
    %v1265 = vshrl.u32 %v1264, 7
    %v1266 = vsub.s32 %v1263, %v1265
    %v1267 = vrot.slane %v1257, %v1266
    %v1269 = vunpack.c.l.s4 1983009808
    %v1270 = vunpack.c.0.s8 %v1269
    %v1271 = vlaneseq
    %v1272 = vshrl.u32 %v1271, 7
    %v1273 = vsub.s32 %v1270, %v1272
    %v1274 = vrot.slane %v1258, %v1273
    %v1276 = vunpack.c.l.s4 1983009808
    %v1277 = vunpack.c.0.s8 %v1276
    %v1278 = vlaneseq
    %v1279 = vshrl.u32 %v1278, 7
    %v1280 = vsub.s32 %v1277, %v1279
    %v1281 = vrot.slane %v1259, %v1280
    %v1283 = vunpack.c.l.s4 1983009808
    %v1284 = vunpack.c.0.s8 %v1283
    %v1285 = vlaneseq
    %v1286 = vshrl.u32 %v1285, 7
    %v1287 = vsub.s32 %v1284, %v1286
    %v1288 = vrot.slane %v1260, %v1287
    %v1289 = vcombine.low %v1267, %v1281
    %v1290 = vcombine.high %v1267, %v1281
    %v1291 = vcombine.low %v1274, %v1288
    %v1292 = vcombine.low %v150, %v152
    %v1293 = vcombine.high %v150, %v152
    %v1294 = vcombine.low %v154, %v156
    %v1295 = vcombine.high %v154, %v156
    %v1297 = vunpack.c.l.s4 1983009808
    %v1298 = vunpack.c.0.s8 %v1297
    %v1299 = vlaneseq
    %v1300 = vshrl.u32 %v1299, 7
    %v1301 = vsub.s32 %v1298, %v1300
    %v1302 = vrot.slane %v1292, %v1301
    %v1304 = vunpack.c.l.s4 1983009808
    %v1305 = vunpack.c.0.s8 %v1304
    %v1306 = vlaneseq
    %v1307 = vshrl.u32 %v1306, 7
    %v1308 = vsub.s32 %v1305, %v1307
    %v1309 = vrot.slane %v1293, %v1308
    %v1311 = vunpack.c.l.s4 1983009808
    %v1312 = vunpack.c.0.s8 %v1311
    %v1313 = vlaneseq
    %v1314 = vshrl.u32 %v1313, 7
    %v1315 = vsub.s32 %v1312, %v1314
    %v1316 = vrot.slane %v1294, %v1315
    %v1318 = vunpack.c.l.s4 1983009808
    %v1319 = vunpack.c.0.s8 %v1318
    %v1320 = vlaneseq
    %v1321 = vshrl.u32 %v1320, 7
    %v1322 = vsub.s32 %v1319, %v1321
    %v1323 = vrot.slane %v1295, %v1322
    %v1324 = vcombine.low %v1302, %v1316
    %v1325 = vcombine.high %v1302, %v1316
    %v1326 = vcombine.low %v1309, %v1323
    %v1327 = vcombine.high %v1309, %v1323
    %v1328 = vcombine.low %v151, %v153
    %v1329 = vcombine.high %v151, %v153
    %v1330 = vcombine.low %v155, %v157
    %v1331 = vcombine.high %v155, %v157
    %v1333 = vunpack.c.l.s4 1983009808
    %v1334 = vunpack.c.0.s8 %v1333
    %v1335 = vlaneseq
    %v1336 = vshrl.u32 %v1335, 7
    %v1337 = vsub.s32 %v1334, %v1336
    %v1338 = vrot.slane %v1328, %v1337
    %v1340 = vunpack.c.l.s4 1983009808
    %v1341 = vunpack.c.0.s8 %v1340
    %v1342 = vlaneseq
    %v1343 = vshrl.u32 %v1342, 7
    %v1344 = vsub.s32 %v1341, %v1343
    %v1345 = vrot.slane %v1329, %v1344
    %v1347 = vunpack.c.l.s4 1983009808
    %v1348 = vunpack.c.0.s8 %v1347
    %v1349 = vlaneseq
    %v1350 = vshrl.u32 %v1349, 7
    %v1351 = vsub.s32 %v1348, %v1350
    %v1352 = vrot.slane %v1330, %v1351
    %v1354 = vunpack.c.l.s4 1983009808
    %v1355 = vunpack.c.0.s8 %v1354
    %v1356 = vlaneseq
    %v1357 = vshrl.u32 %v1356, 7
    %v1358 = vsub.s32 %v1355, %v1357
    %v1359 = vrot.slane %v1331, %v1358
    %v1360 = vcombine.low %v1338, %v1352
    %v1361 = vcombine.high %v1338, %v1352
    %v1362 = vcombine.low %v1345, %v1359
    %v1363 = vcombine.low %v158, %v160
    %v1364 = vcombine.high %v158, %v160
    %v1365 = vcombine.low %v162, %v164
    %v1366 = vcombine.high %v162, %v164
    %v1368 = vunpack.c.l.s4 1983009808
    %v1369 = vunpack.c.0.s8 %v1368
    %v1370 = vlaneseq
    %v1371 = vshrl.u32 %v1370, 7
    %v1372 = vsub.s32 %v1369, %v1371
    %v1373 = vrot.slane %v1363, %v1372
    %v1375 = vunpack.c.l.s4 1983009808
    %v1376 = vunpack.c.0.s8 %v1375
    %v1377 = vlaneseq
    %v1378 = vshrl.u32 %v1377, 7
    %v1379 = vsub.s32 %v1376, %v1378
    %v1380 = vrot.slane %v1364, %v1379
    %v1382 = vunpack.c.l.s4 1983009808
    %v1383 = vunpack.c.0.s8 %v1382
    %v1384 = vlaneseq
    %v1385 = vshrl.u32 %v1384, 7
    %v1386 = vsub.s32 %v1383, %v1385
    %v1387 = vrot.slane %v1365, %v1386
    %v1389 = vunpack.c.l.s4 1983009808
    %v1390 = vunpack.c.0.s8 %v1389
    %v1391 = vlaneseq
    %v1392 = vshrl.u32 %v1391, 7
    %v1393 = vsub.s32 %v1390, %v1392
    %v1394 = vrot.slane %v1366, %v1393
    %v1395 = vcombine.low %v1373, %v1387
    %v1396 = vcombine.high %v1373, %v1387
    %v1397 = vcombine.low %v1380, %v1394
    %v1398 = vcombine.high %v1380, %v1394
    %v1399 = vcombine.low %v159, %v161
    %v1400 = vcombine.high %v159, %v161
    %v1401 = vcombine.low %v163, %v165
    %v1402 = vcombine.high %v163, %v165
    %v1404 = vunpack.c.l.s4 1983009808
    %v1405 = vunpack.c.0.s8 %v1404
    %v1406 = vlaneseq
    %v1407 = vshrl.u32 %v1406, 7
    %v1408 = vsub.s32 %v1405, %v1407
    %v1409 = vrot.slane %v1399, %v1408
    %v1411 = vunpack.c.l.s4 1983009808
    %v1412 = vunpack.c.0.s8 %v1411
    %v1413 = vlaneseq
    %v1414 = vshrl.u32 %v1413, 7
    %v1415 = vsub.s32 %v1412, %v1414
    %v1416 = vrot.slane %v1400, %v1415
    %v1418 = vunpack.c.l.s4 1983009808
    %v1419 = vunpack.c.0.s8 %v1418
    %v1420 = vlaneseq
    %v1421 = vshrl.u32 %v1420, 7
    %v1422 = vsub.s32 %v1419, %v1421
    %v1423 = vrot.slane %v1401, %v1422
    %v1425 = vunpack.c.l.s4 1983009808
    %v1426 = vunpack.c.0.s8 %v1425
    %v1427 = vlaneseq
    %v1428 = vshrl.u32 %v1427, 7
    %v1429 = vsub.s32 %v1426, %v1428
    %v1430 = vrot.slane %v1402, %v1429
    %v1431 = vcombine.low %v1409, %v1423
    %v1432 = vcombine.high %v1409, %v1423
    %v1433 = vcombine.low %v1416, %v1430
    %v1434 = vcombine.low %v166, %v168
    %v1435 = vcombine.high %v166, %v168
    %v1436 = vcombine.low %v170, %v172
    %v1437 = vcombine.high %v170, %v172
    %v1439 = vunpack.c.l.s4 1983009808
    %v1440 = vunpack.c.0.s8 %v1439
    %v1441 = vlaneseq
    %v1442 = vshrl.u32 %v1441, 7
    %v1443 = vsub.s32 %v1440, %v1442
    %v1444 = vrot.slane %v1434, %v1443
    %v1446 = vunpack.c.l.s4 1983009808
    %v1447 = vunpack.c.0.s8 %v1446
    %v1448 = vlaneseq
    %v1449 = vshrl.u32 %v1448, 7
    %v1450 = vsub.s32 %v1447, %v1449
    %v1451 = vrot.slane %v1435, %v1450
    %v1453 = vunpack.c.l.s4 1983009808
    %v1454 = vunpack.c.0.s8 %v1453
    %v1455 = vlaneseq
    %v1456 = vshrl.u32 %v1455, 7
    %v1457 = vsub.s32 %v1454, %v1456
    %v1458 = vrot.slane %v1436, %v1457
    %v1460 = vunpack.c.l.s4 1983009808
    %v1461 = vunpack.c.0.s8 %v1460
    %v1462 = vlaneseq
    %v1463 = vshrl.u32 %v1462, 7
    %v1464 = vsub.s32 %v1461, %v1463
    %v1465 = vrot.slane %v1437, %v1464
    %v1466 = vcombine.low %v1444, %v1458
    %v1467 = vcombine.high %v1444, %v1458
    %v1468 = vcombine.low %v1451, %v1465
    %v1469 = vcombine.high %v1451, %v1465
    %v1470 = vcombine.low %v167, %v169
    %v1471 = vcombine.high %v167, %v169
    %v1472 = vcombine.low %v171, %v173
    %v1473 = vcombine.high %v171, %v173
    %v1475 = vunpack.c.l.s4 1983009808
    %v1476 = vunpack.c.0.s8 %v1475
    %v1477 = vlaneseq
    %v1478 = vshrl.u32 %v1477, 7
    %v1479 = vsub.s32 %v1476, %v1478
    %v1480 = vrot.slane %v1470, %v1479
    %v1482 = vunpack.c.l.s4 1983009808
    %v1483 = vunpack.c.0.s8 %v1482
    %v1484 = vlaneseq
    %v1485 = vshrl.u32 %v1484, 7
    %v1486 = vsub.s32 %v1483, %v1485
    %v1487 = vrot.slane %v1471, %v1486
    %v1489 = vunpack.c.l.s4 1983009808
    %v1490 = vunpack.c.0.s8 %v1489
    %v1491 = vlaneseq
    %v1492 = vshrl.u32 %v1491, 7
    %v1493 = vsub.s32 %v1490, %v1492
    %v1494 = vrot.slane %v1472, %v1493
    %v1496 = vunpack.c.l.s4 1983009808
    %v1497 = vunpack.c.0.s8 %v1496
    %v1498 = vlaneseq
    %v1499 = vshrl.u32 %v1498, 7
    %v1500 = vsub.s32 %v1497, %v1499
    %v1501 = vrot.slane %v1473, %v1500
    %v1502 = vcombine.low %v1480, %v1494
    %v1503 = vcombine.high %v1480, %v1494
    %v1504 = vcombine.low %v1487, %v1501
    %v1505 = vcombine.low %v174, %v176
    %v1506 = vcombine.high %v174, %v176
    %v1507 = vcombine.low %v178, %v180
    %v1508 = vcombine.high %v178, %v180
    %v1510 = vunpack.c.l.s4 1983009808
    %v1511 = vunpack.c.0.s8 %v1510
    %v1512 = vlaneseq
    %v1513 = vshrl.u32 %v1512, 7
    %v1514 = vsub.s32 %v1511, %v1513
    %v1515 = vrot.slane %v1505, %v1514
    %v1517 = vunpack.c.l.s4 1983009808
    %v1518 = vunpack.c.0.s8 %v1517
    %v1519 = vlaneseq
    %v1520 = vshrl.u32 %v1519, 7
    %v1521 = vsub.s32 %v1518, %v1520
    %v1522 = vrot.slane %v1506, %v1521
    %v1524 = vunpack.c.l.s4 1983009808
    %v1525 = vunpack.c.0.s8 %v1524
    %v1526 = vlaneseq
    %v1527 = vshrl.u32 %v1526, 7
    %v1528 = vsub.s32 %v1525, %v1527
    %v1529 = vrot.slane %v1507, %v1528
    %v1531 = vunpack.c.l.s4 1983009808
    %v1532 = vunpack.c.0.s8 %v1531
    %v1533 = vlaneseq
    %v1534 = vshrl.u32 %v1533, 7
    %v1535 = vsub.s32 %v1532, %v1534
    %v1536 = vrot.slane %v1508, %v1535
    %v1537 = vcombine.low %v1515, %v1529
    %v1538 = vcombine.high %v1515, %v1529
    %v1539 = vcombine.low %v1522, %v1536
    %v1540 = vcombine.high %v1522, %v1536
    %v1541 = vcombine.low %v175, %v177
    %v1542 = vcombine.high %v175, %v177
    %v1543 = vcombine.low %v179, %v181
    %v1544 = vcombine.high %v179, %v181
    %v1546 = vunpack.c.l.s4 1983009808
    %v1547 = vunpack.c.0.s8 %v1546
    %v1548 = vlaneseq
    %v1549 = vshrl.u32 %v1548, 7
    %v1550 = vsub.s32 %v1547, %v1549
    %v1551 = vrot.slane %v1541, %v1550
    %v1553 = vunpack.c.l.s4 1983009808
    %v1554 = vunpack.c.0.s8 %v1553
    %v1555 = vlaneseq
    %v1556 = vshrl.u32 %v1555, 7
    %v1557 = vsub.s32 %v1554, %v1556
    %v1558 = vrot.slane %v1542, %v1557
    %v1560 = vunpack.c.l.s4 1983009808
    %v1561 = vunpack.c.0.s8 %v1560
    %v1562 = vlaneseq
    %v1563 = vshrl.u32 %v1562, 7
    %v1564 = vsub.s32 %v1561, %v1563
    %v1565 = vrot.slane %v1543, %v1564
    %v1567 = vunpack.c.l.s4 1983009808
    %v1568 = vunpack.c.0.s8 %v1567
    %v1569 = vlaneseq
    %v1570 = vshrl.u32 %v1569, 7
    %v1571 = vsub.s32 %v1568, %v1570
    %v1572 = vrot.slane %v1544, %v1571
    %v1573 = vcombine.low %v1551, %v1565
    %v1574 = vcombine.high %v1551, %v1565
    %v1575 = vcombine.low %v1558, %v1572
    %v1576 = vcombine.low %v182, %v184
    %v1577 = vcombine.high %v182, %v184
    %v1578 = vcombine.low %v186, %v188
    %v1579 = vcombine.high %v186, %v188
    %v1581 = vunpack.c.l.s4 1983009808
    %v1582 = vunpack.c.0.s8 %v1581
    %v1583 = vlaneseq
    %v1584 = vshrl.u32 %v1583, 7
    %v1585 = vsub.s32 %v1582, %v1584
    %v1586 = vrot.slane %v1576, %v1585
    %v1588 = vunpack.c.l.s4 1983009808
    %v1589 = vunpack.c.0.s8 %v1588
    %v1590 = vlaneseq
    %v1591 = vshrl.u32 %v1590, 7
    %v1592 = vsub.s32 %v1589, %v1591
    %v1593 = vrot.slane %v1577, %v1592
    %v1595 = vunpack.c.l.s4 1983009808
    %v1596 = vunpack.c.0.s8 %v1595
    %v1597 = vlaneseq
    %v1598 = vshrl.u32 %v1597, 7
    %v1599 = vsub.s32 %v1596, %v1598
    %v1600 = vrot.slane %v1578, %v1599
    %v1602 = vunpack.c.l.s4 1983009808
    %v1603 = vunpack.c.0.s8 %v1602
    %v1604 = vlaneseq
    %v1605 = vshrl.u32 %v1604, 7
    %v1606 = vsub.s32 %v1603, %v1605
    %v1607 = vrot.slane %v1579, %v1606
    %v1608 = vcombine.low %v1586, %v1600
    %v1609 = vcombine.high %v1586, %v1600
    %v1610 = vcombine.low %v1593, %v1607
    %v1611 = vcombine.high %v1593, %v1607
    %v1612 = vcombine.low %v183, %v185
    %v1613 = vcombine.high %v183, %v185
    %v1614 = vcombine.low %v187, %v189
    %v1615 = vcombine.high %v187, %v189
    %v1617 = vunpack.c.l.s4 1983009808
    %v1618 = vunpack.c.0.s8 %v1617
    %v1619 = vlaneseq
    %v1620 = vshrl.u32 %v1619, 7
    %v1621 = vsub.s32 %v1618, %v1620
    %v1622 = vrot.slane %v1612, %v1621
    %v1624 = vunpack.c.l.s4 1983009808
    %v1625 = vunpack.c.0.s8 %v1624
    %v1626 = vlaneseq
    %v1627 = vshrl.u32 %v1626, 7
    %v1628 = vsub.s32 %v1625, %v1627
    %v1629 = vrot.slane %v1613, %v1628
    %v1631 = vunpack.c.l.s4 1983009808
    %v1632 = vunpack.c.0.s8 %v1631
    %v1633 = vlaneseq
    %v1634 = vshrl.u32 %v1633, 7
    %v1635 = vsub.s32 %v1632, %v1634
    %v1636 = vrot.slane %v1614, %v1635
    %v1638 = vunpack.c.l.s4 1983009808
    %v1639 = vunpack.c.0.s8 %v1638
    %v1640 = vlaneseq
    %v1641 = vshrl.u32 %v1640, 7
    %v1642 = vsub.s32 %v1639, %v1641
    %v1643 = vrot.slane %v1615, %v1642
    %v1644 = vcombine.low %v1622, %v1636
    %v1645 = vcombine.high %v1622, %v1636
    %v1646 = vcombine.low %v1629, %v1643
    %v1647 = vcombine.low %v190, %v192
    %v1648 = vcombine.high %v190, %v192
    %v1649 = vcombine.low %v194, %v196
    %v1650 = vcombine.high %v194, %v196
    %v1652 = vunpack.c.l.s4 1983009808
    %v1653 = vunpack.c.0.s8 %v1652
    %v1654 = vlaneseq
    %v1655 = vshrl.u32 %v1654, 7
    %v1656 = vsub.s32 %v1653, %v1655
    %v1657 = vrot.slane %v1647, %v1656
    %v1659 = vunpack.c.l.s4 1983009808
    %v1660 = vunpack.c.0.s8 %v1659
    %v1661 = vlaneseq
    %v1662 = vshrl.u32 %v1661, 7
    %v1663 = vsub.s32 %v1660, %v1662
    %v1664 = vrot.slane %v1648, %v1663
    %v1666 = vunpack.c.l.s4 1983009808
    %v1667 = vunpack.c.0.s8 %v1666
    %v1668 = vlaneseq
    %v1669 = vshrl.u32 %v1668, 7
    %v1670 = vsub.s32 %v1667, %v1669
    %v1671 = vrot.slane %v1649, %v1670
    %v1673 = vunpack.c.l.s4 1983009808
    %v1674 = vunpack.c.0.s8 %v1673
    %v1675 = vlaneseq
    %v1676 = vshrl.u32 %v1675, 7
    %v1677 = vsub.s32 %v1674, %v1676
    %v1678 = vrot.slane %v1650, %v1677
    %v1679 = vcombine.low %v1657, %v1671
    %v1680 = vcombine.high %v1657, %v1671
    %v1681 = vcombine.low %v1664, %v1678
    %v1682 = vcombine.high %v1664, %v1678
    %v1683 = vcombine.low %v191, %v193
    %v1684 = vcombine.high %v191, %v193
    %v1685 = vcombine.low %v195, %v197
    %v1686 = vcombine.high %v195, %v197
    %v1688 = vunpack.c.l.s4 1983009808
    %v1689 = vunpack.c.0.s8 %v1688
    %v1690 = vlaneseq
    %v1691 = vshrl.u32 %v1690, 7
    %v1692 = vsub.s32 %v1689, %v1691
    %v1693 = vrot.slane %v1683, %v1692
    %v1695 = vunpack.c.l.s4 1983009808
    %v1696 = vunpack.c.0.s8 %v1695
    %v1697 = vlaneseq
    %v1698 = vshrl.u32 %v1697, 7
    %v1699 = vsub.s32 %v1696, %v1698
    %v1700 = vrot.slane %v1684, %v1699
    %v1702 = vunpack.c.l.s4 1983009808
    %v1703 = vunpack.c.0.s8 %v1702
    %v1704 = vlaneseq
    %v1705 = vshrl.u32 %v1704, 7
    %v1706 = vsub.s32 %v1703, %v1705
    %v1707 = vrot.slane %v1685, %v1706
    %v1709 = vunpack.c.l.s4 1983009808
    %v1710 = vunpack.c.0.s8 %v1709
    %v1711 = vlaneseq
    %v1712 = vshrl.u32 %v1711, 7
    %v1713 = vsub.s32 %v1710, %v1712
    %v1714 = vrot.slane %v1686, %v1713
    %v1715 = vcombine.low %v1693, %v1707
    %v1716 = vcombine.high %v1693, %v1707
    %v1717 = vcombine.low %v1700, %v1714
    %v1718 = vcombine.low %v198, %v200
    %v1719 = vcombine.high %v198, %v200
    %v1720 = vcombine.low %v202, %v204
    %v1721 = vcombine.high %v202, %v204
    %v1723 = vunpack.c.l.s4 1983009808
    %v1724 = vunpack.c.0.s8 %v1723
    %v1725 = vlaneseq
    %v1726 = vshrl.u32 %v1725, 7
    %v1727 = vsub.s32 %v1724, %v1726
    %v1728 = vrot.slane %v1718, %v1727
    %v1730 = vunpack.c.l.s4 1983009808
    %v1731 = vunpack.c.0.s8 %v1730
    %v1732 = vlaneseq
    %v1733 = vshrl.u32 %v1732, 7
    %v1734 = vsub.s32 %v1731, %v1733
    %v1735 = vrot.slane %v1719, %v1734
    %v1737 = vunpack.c.l.s4 1983009808
    %v1738 = vunpack.c.0.s8 %v1737
    %v1739 = vlaneseq
    %v1740 = vshrl.u32 %v1739, 7
    %v1741 = vsub.s32 %v1738, %v1740
    %v1742 = vrot.slane %v1720, %v1741
    %v1744 = vunpack.c.l.s4 1983009808
    %v1745 = vunpack.c.0.s8 %v1744
    %v1746 = vlaneseq
    %v1747 = vshrl.u32 %v1746, 7
    %v1748 = vsub.s32 %v1745, %v1747
    %v1749 = vrot.slane %v1721, %v1748
    %v1750 = vcombine.low %v1728, %v1742
    %v1751 = vcombine.high %v1728, %v1742
    %v1752 = vcombine.low %v1735, %v1749
    %v1753 = vcombine.high %v1735, %v1749
    %v1754 = vcombine.low %v199, %v201
    %v1755 = vcombine.high %v199, %v201
    %v1756 = vcombine.low %v203, %v205
    %v1757 = vcombine.high %v203, %v205
    %v1759 = vunpack.c.l.s4 1983009808
    %v1760 = vunpack.c.0.s8 %v1759
    %v1761 = vlaneseq
    %v1762 = vshrl.u32 %v1761, 7
    %v1763 = vsub.s32 %v1760, %v1762
    %v1764 = vrot.slane %v1754, %v1763
    %v1766 = vunpack.c.l.s4 1983009808
    %v1767 = vunpack.c.0.s8 %v1766
    %v1768 = vlaneseq
    %v1769 = vshrl.u32 %v1768, 7
    %v1770 = vsub.s32 %v1767, %v1769
    %v1771 = vrot.slane %v1755, %v1770
    %v1773 = vunpack.c.l.s4 1983009808
    %v1774 = vunpack.c.0.s8 %v1773
    %v1775 = vlaneseq
    %v1776 = vshrl.u32 %v1775, 7
    %v1777 = vsub.s32 %v1774, %v1776
    %v1778 = vrot.slane %v1756, %v1777
    %v1780 = vunpack.c.l.s4 1983009808
    %v1781 = vunpack.c.0.s8 %v1780
    %v1782 = vlaneseq
    %v1783 = vshrl.u32 %v1782, 7
    %v1784 = vsub.s32 %v1781, %v1783
    %v1785 = vrot.slane %v1757, %v1784
    %v1786 = vcombine.low %v1764, %v1778
    %v1787 = vcombine.high %v1764, %v1778
    %v1788 = vcombine.low %v1771, %v1785
    %v1789 = vcombine.low %v206, %v208
    %v1790 = vcombine.high %v206, %v208
    %v1791 = vcombine.low %v210, %v212
    %v1792 = vcombine.high %v210, %v212
    %v1794 = vunpack.c.l.s4 1983009808
    %v1795 = vunpack.c.0.s8 %v1794
    %v1796 = vlaneseq
    %v1797 = vshrl.u32 %v1796, 7
    %v1798 = vsub.s32 %v1795, %v1797
    %v1799 = vrot.slane %v1789, %v1798
    %v1801 = vunpack.c.l.s4 1983009808
    %v1802 = vunpack.c.0.s8 %v1801
    %v1803 = vlaneseq
    %v1804 = vshrl.u32 %v1803, 7
    %v1805 = vsub.s32 %v1802, %v1804
    %v1806 = vrot.slane %v1790, %v1805
    %v1808 = vunpack.c.l.s4 1983009808
    %v1809 = vunpack.c.0.s8 %v1808
    %v1810 = vlaneseq
    %v1811 = vshrl.u32 %v1810, 7
    %v1812 = vsub.s32 %v1809, %v1811
    %v1813 = vrot.slane %v1791, %v1812
    %v1815 = vunpack.c.l.s4 1983009808
    %v1816 = vunpack.c.0.s8 %v1815
    %v1817 = vlaneseq
    %v1818 = vshrl.u32 %v1817, 7
    %v1819 = vsub.s32 %v1816, %v1818
    %v1820 = vrot.slane %v1792, %v1819
    %v1821 = vcombine.low %v1799, %v1813
    %v1822 = vcombine.high %v1799, %v1813
    %v1823 = vcombine.low %v1806, %v1820
    %v1824 = vcombine.high %v1806, %v1820
    %v1825 = vcombine.low %v207, %v209
    %v1826 = vcombine.high %v207, %v209
    %v1827 = vcombine.low %v211, %v213
    %v1828 = vcombine.high %v211, %v213
    %v1830 = vunpack.c.l.s4 1983009808
    %v1831 = vunpack.c.0.s8 %v1830
    %v1832 = vlaneseq
    %v1833 = vshrl.u32 %v1832, 7
    %v1834 = vsub.s32 %v1831, %v1833
    %v1835 = vrot.slane %v1825, %v1834
    %v1837 = vunpack.c.l.s4 1983009808
    %v1838 = vunpack.c.0.s8 %v1837
    %v1839 = vlaneseq
    %v1840 = vshrl.u32 %v1839, 7
    %v1841 = vsub.s32 %v1838, %v1840
    %v1842 = vrot.slane %v1826, %v1841
    %v1844 = vunpack.c.l.s4 1983009808
    %v1845 = vunpack.c.0.s8 %v1844
    %v1846 = vlaneseq
    %v1847 = vshrl.u32 %v1846, 7
    %v1848 = vsub.s32 %v1845, %v1847
    %v1849 = vrot.slane %v1827, %v1848
    %v1851 = vunpack.c.l.s4 1983009808
    %v1852 = vunpack.c.0.s8 %v1851
    %v1853 = vlaneseq
    %v1854 = vshrl.u32 %v1853, 7
    %v1855 = vsub.s32 %v1852, %v1854
    %v1856 = vrot.slane %v1828, %v1855
    %v1857 = vcombine.low %v1835, %v1849
    %v1858 = vcombine.high %v1835, %v1849
    %v1859 = vcombine.low %v1842, %v1856
    %v1860 = vcombine.low %v214, %v216
    %v1861 = vcombine.high %v214, %v216
    %v1862 = vcombine.low %v218, %v220
    %v1863 = vcombine.high %v218, %v220
    %v1865 = vunpack.c.l.s4 1983009808
    %v1866 = vunpack.c.0.s8 %v1865
    %v1867 = vlaneseq
    %v1868 = vshrl.u32 %v1867, 7
    %v1869 = vsub.s32 %v1866, %v1868
    %v1870 = vrot.slane %v1860, %v1869
    %v1872 = vunpack.c.l.s4 1983009808
    %v1873 = vunpack.c.0.s8 %v1872
    %v1874 = vlaneseq
    %v1875 = vshrl.u32 %v1874, 7
    %v1876 = vsub.s32 %v1873, %v1875
    %v1877 = vrot.slane %v1861, %v1876
    %v1879 = vunpack.c.l.s4 1983009808
    %v1880 = vunpack.c.0.s8 %v1879
    %v1881 = vlaneseq
    %v1882 = vshrl.u32 %v1881, 7
    %v1883 = vsub.s32 %v1880, %v1882
    %v1884 = vrot.slane %v1862, %v1883
    %v1886 = vunpack.c.l.s4 1983009808
    %v1887 = vunpack.c.0.s8 %v1886
    %v1888 = vlaneseq
    %v1889 = vshrl.u32 %v1888, 7
    %v1890 = vsub.s32 %v1887, %v1889
    %v1891 = vrot.slane %v1863, %v1890
    %v1892 = vcombine.low %v1870, %v1884
    %v1893 = vcombine.high %v1870, %v1884
    %v1894 = vcombine.low %v1877, %v1891
    %v1895 = vcombine.high %v1877, %v1891
    %v1896 = vcombine.low %v215, %v217
    %v1897 = vcombine.high %v215, %v217
    %v1898 = vcombine.low %v219, %v221
    %v1899 = vcombine.high %v219, %v221
    %v1901 = vunpack.c.l.s4 1983009808
    %v1902 = vunpack.c.0.s8 %v1901
    %v1903 = vlaneseq
    %v1904 = vshrl.u32 %v1903, 7
    %v1905 = vsub.s32 %v1902, %v1904
    %v1906 = vrot.slane %v1896, %v1905
    %v1908 = vunpack.c.l.s4 1983009808
    %v1909 = vunpack.c.0.s8 %v1908
    %v1910 = vlaneseq
    %v1911 = vshrl.u32 %v1910, 7
    %v1912 = vsub.s32 %v1909, %v1911
    %v1913 = vrot.slane %v1897, %v1912
    %v1915 = vunpack.c.l.s4 1983009808
    %v1916 = vunpack.c.0.s8 %v1915
    %v1917 = vlaneseq
    %v1918 = vshrl.u32 %v1917, 7
    %v1919 = vsub.s32 %v1916, %v1918
    %v1920 = vrot.slane %v1898, %v1919
    %v1922 = vunpack.c.l.s4 1983009808
    %v1923 = vunpack.c.0.s8 %v1922
    %v1924 = vlaneseq
    %v1925 = vshrl.u32 %v1924, 7
    %v1926 = vsub.s32 %v1923, %v1925
    %v1927 = vrot.slane %v1899, %v1926
    %v1928 = vcombine.low %v1906, %v1920
    %v1929 = vcombine.high %v1906, %v1920
    %v1930 = vcombine.low %v1913, %v1927
    %v1931 = vcombine.low %v222, %v224
    %v1932 = vcombine.high %v222, %v224
    %v1933 = vcombine.low %v226, %v228
    %v1934 = vcombine.high %v226, %v228
    %v1936 = vunpack.c.l.s4 1983009808
    %v1937 = vunpack.c.0.s8 %v1936
    %v1938 = vlaneseq
    %v1939 = vshrl.u32 %v1938, 7
    %v1940 = vsub.s32 %v1937, %v1939
    %v1941 = vrot.slane %v1931, %v1940
    %v1943 = vunpack.c.l.s4 1983009808
    %v1944 = vunpack.c.0.s8 %v1943
    %v1945 = vlaneseq
    %v1946 = vshrl.u32 %v1945, 7
    %v1947 = vsub.s32 %v1944, %v1946
    %v1948 = vrot.slane %v1932, %v1947
    %v1950 = vunpack.c.l.s4 1983009808
    %v1951 = vunpack.c.0.s8 %v1950
    %v1952 = vlaneseq
    %v1953 = vshrl.u32 %v1952, 7
    %v1954 = vsub.s32 %v1951, %v1953
    %v1955 = vrot.slane %v1933, %v1954
    %v1957 = vunpack.c.l.s4 1983009808
    %v1958 = vunpack.c.0.s8 %v1957
    %v1959 = vlaneseq
    %v1960 = vshrl.u32 %v1959, 7
    %v1961 = vsub.s32 %v1958, %v1960
    %v1962 = vrot.slane %v1934, %v1961
    %v1963 = vcombine.low %v1941, %v1955
    %v1964 = vcombine.high %v1941, %v1955
    %v1965 = vcombine.low %v1948, %v1962
    %v1966 = vcombine.high %v1948, %v1962
    %v1967 = vcombine.low %v223, %v225
    %v1968 = vcombine.high %v223, %v225
    %v1969 = vcombine.low %v227, %v229
    %v1970 = vcombine.high %v227, %v229
    %v1972 = vunpack.c.l.s4 1983009808
    %v1973 = vunpack.c.0.s8 %v1972
    %v1974 = vlaneseq
    %v1975 = vshrl.u32 %v1974, 7
    %v1976 = vsub.s32 %v1973, %v1975
    %v1977 = vrot.slane %v1967, %v1976
    %v1979 = vunpack.c.l.s4 1983009808
    %v1980 = vunpack.c.0.s8 %v1979
    %v1981 = vlaneseq
    %v1982 = vshrl.u32 %v1981, 7
    %v1983 = vsub.s32 %v1980, %v1982
    %v1984 = vrot.slane %v1968, %v1983
    %v1986 = vunpack.c.l.s4 1983009808
    %v1987 = vunpack.c.0.s8 %v1986
    %v1988 = vlaneseq
    %v1989 = vshrl.u32 %v1988, 7
    %v1990 = vsub.s32 %v1987, %v1989
    %v1991 = vrot.slane %v1969, %v1990
    %v1993 = vunpack.c.l.s4 1983009808
    %v1994 = vunpack.c.0.s8 %v1993
    %v1995 = vlaneseq
    %v1996 = vshrl.u32 %v1995, 7
    %v1997 = vsub.s32 %v1994, %v1996
    %v1998 = vrot.slane %v1970, %v1997
    %v1999 = vcombine.low %v1977, %v1991
    %v2000 = vcombine.high %v1977, %v1991
    %v2001 = vcombine.low %v1984, %v1998
    %v2002 = vcombine.low %v230, %v232
    %v2003 = vcombine.high %v230, %v232
    %v2004 = vcombine.low %v234, %v236
    %v2005 = vcombine.high %v234, %v236
    %v2007 = vunpack.c.l.s4 1983009808
    %v2008 = vunpack.c.0.s8 %v2007
    %v2009 = vlaneseq
    %v2010 = vshrl.u32 %v2009, 7
    %v2011 = vsub.s32 %v2008, %v2010
    %v2012 = vrot.slane %v2002, %v2011
    %v2014 = vunpack.c.l.s4 1983009808
    %v2015 = vunpack.c.0.s8 %v2014
    %v2016 = vlaneseq
    %v2017 = vshrl.u32 %v2016, 7
    %v2018 = vsub.s32 %v2015, %v2017
    %v2019 = vrot.slane %v2003, %v2018
    %v2021 = vunpack.c.l.s4 1983009808
    %v2022 = vunpack.c.0.s8 %v2021
    %v2023 = vlaneseq
    %v2024 = vshrl.u32 %v2023, 7
    %v2025 = vsub.s32 %v2022, %v2024
    %v2026 = vrot.slane %v2004, %v2025
    %v2028 = vunpack.c.l.s4 1983009808
    %v2029 = vunpack.c.0.s8 %v2028
    %v2030 = vlaneseq
    %v2031 = vshrl.u32 %v2030, 7
    %v2032 = vsub.s32 %v2029, %v2031
    %v2033 = vrot.slane %v2005, %v2032
    %v2034 = vcombine.low %v2012, %v2026
    %v2035 = vcombine.high %v2012, %v2026
    %v2036 = vcombine.low %v2019, %v2033
    %v2037 = vcombine.high %v2019, %v2033
    %v2038 = vcombine.low %v231, %v233
    %v2039 = vcombine.high %v231, %v233
    %v2040 = vcombine.low %v235, %v237
    %v2041 = vcombine.high %v235, %v237
    %v2043 = vunpack.c.l.s4 1983009808
    %v2044 = vunpack.c.0.s8 %v2043
    %v2045 = vlaneseq
    %v2046 = vshrl.u32 %v2045, 7
    %v2047 = vsub.s32 %v2044, %v2046
    %v2048 = vrot.slane %v2038, %v2047
    %v2050 = vunpack.c.l.s4 1983009808
    %v2051 = vunpack.c.0.s8 %v2050
    %v2052 = vlaneseq
    %v2053 = vshrl.u32 %v2052, 7
    %v2054 = vsub.s32 %v2051, %v2053
    %v2055 = vrot.slane %v2039, %v2054
    %v2057 = vunpack.c.l.s4 1983009808
    %v2058 = vunpack.c.0.s8 %v2057
    %v2059 = vlaneseq
    %v2060 = vshrl.u32 %v2059, 7
    %v2061 = vsub.s32 %v2058, %v2060
    %v2062 = vrot.slane %v2040, %v2061
    %v2064 = vunpack.c.l.s4 1983009808
    %v2065 = vunpack.c.0.s8 %v2064
    %v2066 = vlaneseq
    %v2067 = vshrl.u32 %v2066, 7
    %v2068 = vsub.s32 %v2065, %v2067
    %v2069 = vrot.slane %v2041, %v2068
    %v2070 = vcombine.low %v2048, %v2062
    %v2071 = vcombine.high %v2048, %v2062
    %v2072 = vcombine.low %v2055, %v2069
    %v2073 = vcombine.low %v238, %v240
    %v2074 = vcombine.high %v238, %v240
    %v2075 = vcombine.low %v242, %v244
    %v2076 = vcombine.high %v242, %v244
    %v2078 = vunpack.c.l.s4 1983009808
    %v2079 = vunpack.c.0.s8 %v2078
    %v2080 = vlaneseq
    %v2081 = vshrl.u32 %v2080, 7
    %v2082 = vsub.s32 %v2079, %v2081
    %v2083 = vrot.slane %v2073, %v2082
    %v2085 = vunpack.c.l.s4 1983009808
    %v2086 = vunpack.c.0.s8 %v2085
    %v2087 = vlaneseq
    %v2088 = vshrl.u32 %v2087, 7
    %v2089 = vsub.s32 %v2086, %v2088
    %v2090 = vrot.slane %v2074, %v2089
    %v2092 = vunpack.c.l.s4 1983009808
    %v2093 = vunpack.c.0.s8 %v2092
    %v2094 = vlaneseq
    %v2095 = vshrl.u32 %v2094, 7
    %v2096 = vsub.s32 %v2093, %v2095
    %v2097 = vrot.slane %v2075, %v2096
    %v2099 = vunpack.c.l.s4 1983009808
    %v2100 = vunpack.c.0.s8 %v2099
    %v2101 = vlaneseq
    %v2102 = vshrl.u32 %v2101, 7
    %v2103 = vsub.s32 %v2100, %v2102
    %v2104 = vrot.slane %v2076, %v2103
    %v2105 = vcombine.low %v2083, %v2097
    %v2106 = vcombine.high %v2083, %v2097
    %v2107 = vcombine.low %v2090, %v2104
    %v2108 = vcombine.high %v2090, %v2104
    %v2109 = vcombine.low %v239, %v241
    %v2110 = vcombine.high %v239, %v241
    %v2111 = vcombine.low %v243, %v245
    %v2112 = vcombine.high %v243, %v245
    %v2114 = vunpack.c.l.s4 1983009808
    %v2115 = vunpack.c.0.s8 %v2114
    %v2116 = vlaneseq
    %v2117 = vshrl.u32 %v2116, 7
    %v2118 = vsub.s32 %v2115, %v2117
    %v2119 = vrot.slane %v2109, %v2118
    %v2121 = vunpack.c.l.s4 1983009808
    %v2122 = vunpack.c.0.s8 %v2121
    %v2123 = vlaneseq
    %v2124 = vshrl.u32 %v2123, 7
    %v2125 = vsub.s32 %v2122, %v2124
    %v2126 = vrot.slane %v2110, %v2125
    %v2128 = vunpack.c.l.s4 1983009808
    %v2129 = vunpack.c.0.s8 %v2128
    %v2130 = vlaneseq
    %v2131 = vshrl.u32 %v2130, 7
    %v2132 = vsub.s32 %v2129, %v2131
    %v2133 = vrot.slane %v2111, %v2132
    %v2135 = vunpack.c.l.s4 1983009808
    %v2136 = vunpack.c.0.s8 %v2135
    %v2137 = vlaneseq
    %v2138 = vshrl.u32 %v2137, 7
    %v2139 = vsub.s32 %v2136, %v2138
    %v2140 = vrot.slane %v2112, %v2139
    %v2141 = vcombine.low %v2119, %v2133
    %v2142 = vcombine.high %v2119, %v2133
    %v2143 = vcombine.low %v2126, %v2140
    %v2144 = vcombine.low %v246, %v248
    %v2145 = vcombine.high %v246, %v248
    %v2146 = vcombine.low %v250, %v252
    %v2147 = vcombine.high %v250, %v252
    %v2149 = vunpack.c.l.s4 1983009808
    %v2150 = vunpack.c.0.s8 %v2149
    %v2151 = vlaneseq
    %v2152 = vshrl.u32 %v2151, 7
    %v2153 = vsub.s32 %v2150, %v2152
    %v2154 = vrot.slane %v2144, %v2153
    %v2156 = vunpack.c.l.s4 1983009808
    %v2157 = vunpack.c.0.s8 %v2156
    %v2158 = vlaneseq
    %v2159 = vshrl.u32 %v2158, 7
    %v2160 = vsub.s32 %v2157, %v2159
    %v2161 = vrot.slane %v2145, %v2160
    %v2163 = vunpack.c.l.s4 1983009808
    %v2164 = vunpack.c.0.s8 %v2163
    %v2165 = vlaneseq
    %v2166 = vshrl.u32 %v2165, 7
    %v2167 = vsub.s32 %v2164, %v2166
    %v2168 = vrot.slane %v2146, %v2167
    %v2170 = vunpack.c.l.s4 1983009808
    %v2171 = vunpack.c.0.s8 %v2170
    %v2172 = vlaneseq
    %v2173 = vshrl.u32 %v2172, 7
    %v2174 = vsub.s32 %v2171, %v2173
    %v2175 = vrot.slane %v2147, %v2174
    %v2176 = vcombine.low %v2154, %v2168
    %v2177 = vcombine.high %v2154, %v2168
    %v2178 = vcombine.low %v2161, %v2175
    %v2179 = vcombine.high %v2161, %v2175
    %v2180 = vcombine.low %v247, %v249
    %v2181 = vcombine.high %v247, %v249
    %v2182 = vcombine.low %v251, %v253
    %v2183 = vcombine.high %v251, %v253
    %v2185 = vunpack.c.l.s4 1983009808
    %v2186 = vunpack.c.0.s8 %v2185
    %v2187 = vlaneseq
    %v2188 = vshrl.u32 %v2187, 7
    %v2189 = vsub.s32 %v2186, %v2188
    %v2190 = vrot.slane %v2180, %v2189
    %v2192 = vunpack.c.l.s4 1983009808
    %v2193 = vunpack.c.0.s8 %v2192
    %v2194 = vlaneseq
    %v2195 = vshrl.u32 %v2194, 7
    %v2196 = vsub.s32 %v2193, %v2195
    %v2197 = vrot.slane %v2181, %v2196
    %v2199 = vunpack.c.l.s4 1983009808
    %v2200 = vunpack.c.0.s8 %v2199
    %v2201 = vlaneseq
    %v2202 = vshrl.u32 %v2201, 7
    %v2203 = vsub.s32 %v2200, %v2202
    %v2204 = vrot.slane %v2182, %v2203
    %v2206 = vunpack.c.l.s4 1983009808
    %v2207 = vunpack.c.0.s8 %v2206
    %v2208 = vlaneseq
    %v2209 = vshrl.u32 %v2208, 7
    %v2210 = vsub.s32 %v2207, %v2209
    %v2211 = vrot.slane %v2183, %v2210
    %v2212 = vcombine.low %v2190, %v2204
    %v2213 = vcombine.high %v2190, %v2204
    %v2214 = vcombine.low %v2197, %v2211
    %v2215 = vcombine.low %v254, %v256
    %v2216 = vcombine.high %v254, %v256
    %v2217 = vcombine.low %v258, %v260
    %v2218 = vcombine.high %v258, %v260
    %v2220 = vunpack.c.l.s4 1983009808
    %v2221 = vunpack.c.0.s8 %v2220
    %v2222 = vlaneseq
    %v2223 = vshrl.u32 %v2222, 7
    %v2224 = vsub.s32 %v2221, %v2223
    %v2225 = vrot.slane %v2215, %v2224
    %v2227 = vunpack.c.l.s4 1983009808
    %v2228 = vunpack.c.0.s8 %v2227
    %v2229 = vlaneseq
    %v2230 = vshrl.u32 %v2229, 7
    %v2231 = vsub.s32 %v2228, %v2230
    %v2232 = vrot.slane %v2216, %v2231
    %v2234 = vunpack.c.l.s4 1983009808
    %v2235 = vunpack.c.0.s8 %v2234
    %v2236 = vlaneseq
    %v2237 = vshrl.u32 %v2236, 7
    %v2238 = vsub.s32 %v2235, %v2237
    %v2239 = vrot.slane %v2217, %v2238
    %v2241 = vunpack.c.l.s4 1983009808
    %v2242 = vunpack.c.0.s8 %v2241
    %v2243 = vlaneseq
    %v2244 = vshrl.u32 %v2243, 7
    %v2245 = vsub.s32 %v2242, %v2244
    %v2246 = vrot.slane %v2218, %v2245
    %v2247 = vcombine.low %v2225, %v2239
    %v2248 = vcombine.high %v2225, %v2239
    %v2249 = vcombine.low %v2232, %v2246
    %v2250 = vcombine.high %v2232, %v2246
    %v2251 = vcombine.low %v255, %v257
    %v2252 = vcombine.high %v255, %v257
    %v2253 = vcombine.low %v259, %v261
    %v2254 = vcombine.high %v259, %v261
    %v2256 = vunpack.c.l.s4 1983009808
    %v2257 = vunpack.c.0.s8 %v2256
    %v2258 = vlaneseq
    %v2259 = vshrl.u32 %v2258, 7
    %v2260 = vsub.s32 %v2257, %v2259
    %v2261 = vrot.slane %v2251, %v2260
    %v2263 = vunpack.c.l.s4 1983009808
    %v2264 = vunpack.c.0.s8 %v2263
    %v2265 = vlaneseq
    %v2266 = vshrl.u32 %v2265, 7
    %v2267 = vsub.s32 %v2264, %v2266
    %v2268 = vrot.slane %v2252, %v2267
    %v2270 = vunpack.c.l.s4 1983009808
    %v2271 = vunpack.c.0.s8 %v2270
    %v2272 = vlaneseq
    %v2273 = vshrl.u32 %v2272, 7
    %v2274 = vsub.s32 %v2271, %v2273
    %v2275 = vrot.slane %v2253, %v2274
    %v2277 = vunpack.c.l.s4 1983009808
    %v2278 = vunpack.c.0.s8 %v2277
    %v2279 = vlaneseq
    %v2280 = vshrl.u32 %v2279, 7
    %v2281 = vsub.s32 %v2278, %v2280
    %v2282 = vrot.slane %v2254, %v2281
    %v2283 = vcombine.low %v2261, %v2275
    %v2284 = vcombine.high %v2261, %v2275
    %v2285 = vcombine.low %v2268, %v2282
    %v2286 = vcombine.low %v262, %v264
    %v2287 = vcombine.high %v262, %v264
    %v2288 = vcombine.low %v266, %v268
    %v2289 = vcombine.high %v266, %v268
    %v2291 = vunpack.c.l.s4 1983009808
    %v2292 = vunpack.c.0.s8 %v2291
    %v2293 = vlaneseq
    %v2294 = vshrl.u32 %v2293, 7
    %v2295 = vsub.s32 %v2292, %v2294
    %v2296 = vrot.slane %v2286, %v2295
    %v2298 = vunpack.c.l.s4 1983009808
    %v2299 = vunpack.c.0.s8 %v2298
    %v2300 = vlaneseq
    %v2301 = vshrl.u32 %v2300, 7
    %v2302 = vsub.s32 %v2299, %v2301
    %v2303 = vrot.slane %v2287, %v2302
    %v2305 = vunpack.c.l.s4 1983009808
    %v2306 = vunpack.c.0.s8 %v2305
    %v2307 = vlaneseq
    %v2308 = vshrl.u32 %v2307, 7
    %v2309 = vsub.s32 %v2306, %v2308
    %v2310 = vrot.slane %v2288, %v2309
    %v2312 = vunpack.c.l.s4 1983009808
    %v2313 = vunpack.c.0.s8 %v2312
    %v2314 = vlaneseq
    %v2315 = vshrl.u32 %v2314, 7
    %v2316 = vsub.s32 %v2313, %v2315
    %v2317 = vrot.slane %v2289, %v2316
    %v2318 = vcombine.low %v2296, %v2310
    %v2319 = vcombine.high %v2296, %v2310
    %v2320 = vcombine.low %v2303, %v2317
    %v2321 = vcombine.high %v2303, %v2317
    %v2322 = vcombine.low %v263, %v265
    %v2323 = vcombine.high %v263, %v265
    %v2324 = vcombine.low %v267, %v269
    %v2325 = vcombine.high %v267, %v269
    %v2327 = vunpack.c.l.s4 1983009808
    %v2328 = vunpack.c.0.s8 %v2327
    %v2329 = vlaneseq
    %v2330 = vshrl.u32 %v2329, 7
    %v2331 = vsub.s32 %v2328, %v2330
    %v2332 = vrot.slane %v2322, %v2331
    %v2334 = vunpack.c.l.s4 1983009808
    %v2335 = vunpack.c.0.s8 %v2334
    %v2336 = vlaneseq
    %v2337 = vshrl.u32 %v2336, 7
    %v2338 = vsub.s32 %v2335, %v2337
    %v2339 = vrot.slane %v2323, %v2338
    %v2341 = vunpack.c.l.s4 1983009808
    %v2342 = vunpack.c.0.s8 %v2341
    %v2343 = vlaneseq
    %v2344 = vshrl.u32 %v2343, 7
    %v2345 = vsub.s32 %v2342, %v2344
    %v2346 = vrot.slane %v2324, %v2345
    %v2348 = vunpack.c.l.s4 1983009808
    %v2349 = vunpack.c.0.s8 %v2348
    %v2350 = vlaneseq
    %v2351 = vshrl.u32 %v2350, 7
    %v2352 = vsub.s32 %v2349, %v2351
    %v2353 = vrot.slane %v2325, %v2352
    %v2354 = vcombine.low %v2332, %v2346
    %v2355 = vcombine.high %v2332, %v2346
    %v2356 = vcombine.low %v2339, %v2353
    %v2357 = vcombine.low %v270, %v272
    %v2358 = vcombine.high %v270, %v272
    %v2359 = vcombine.low %v274, %v276
    %v2360 = vcombine.high %v274, %v276
    %v2362 = vunpack.c.l.s4 1983009808
    %v2363 = vunpack.c.0.s8 %v2362
    %v2364 = vlaneseq
    %v2365 = vshrl.u32 %v2364, 7
    %v2366 = vsub.s32 %v2363, %v2365
    %v2367 = vrot.slane %v2357, %v2366
    %v2369 = vunpack.c.l.s4 1983009808
    %v2370 = vunpack.c.0.s8 %v2369
    %v2371 = vlaneseq
    %v2372 = vshrl.u32 %v2371, 7
    %v2373 = vsub.s32 %v2370, %v2372
    %v2374 = vrot.slane %v2358, %v2373
    %v2376 = vunpack.c.l.s4 1983009808
    %v2377 = vunpack.c.0.s8 %v2376
    %v2378 = vlaneseq
    %v2379 = vshrl.u32 %v2378, 7
    %v2380 = vsub.s32 %v2377, %v2379
    %v2381 = vrot.slane %v2359, %v2380
    %v2383 = vunpack.c.l.s4 1983009808
    %v2384 = vunpack.c.0.s8 %v2383
    %v2385 = vlaneseq
    %v2386 = vshrl.u32 %v2385, 7
    %v2387 = vsub.s32 %v2384, %v2386
    %v2388 = vrot.slane %v2360, %v2387
    %v2389 = vcombine.low %v2367, %v2381
    %v2390 = vcombine.high %v2367, %v2381
    %v2391 = vcombine.low %v2374, %v2388
    %v2392 = vcombine.high %v2374, %v2388
    %v2393 = vcombine.low %v271, %v273
    %v2394 = vcombine.high %v271, %v273
    %v2395 = vcombine.low %v275, %v277
    %v2396 = vcombine.high %v275, %v277
    %v2398 = vunpack.c.l.s4 1983009808
    %v2399 = vunpack.c.0.s8 %v2398
    %v2400 = vlaneseq
    %v2401 = vshrl.u32 %v2400, 7
    %v2402 = vsub.s32 %v2399, %v2401
    %v2403 = vrot.slane %v2393, %v2402
    %v2405 = vunpack.c.l.s4 1983009808
    %v2406 = vunpack.c.0.s8 %v2405
    %v2407 = vlaneseq
    %v2408 = vshrl.u32 %v2407, 7
    %v2409 = vsub.s32 %v2406, %v2408
    %v2410 = vrot.slane %v2394, %v2409
    %v2412 = vunpack.c.l.s4 1983009808
    %v2413 = vunpack.c.0.s8 %v2412
    %v2414 = vlaneseq
    %v2415 = vshrl.u32 %v2414, 7
    %v2416 = vsub.s32 %v2413, %v2415
    %v2417 = vrot.slane %v2395, %v2416
    %v2419 = vunpack.c.l.s4 1983009808
    %v2420 = vunpack.c.0.s8 %v2419
    %v2421 = vlaneseq
    %v2422 = vshrl.u32 %v2421, 7
    %v2423 = vsub.s32 %v2420, %v2422
    %v2424 = vrot.slane %v2396, %v2423
    %v2425 = vcombine.low %v2403, %v2417
    %v2426 = vcombine.high %v2403, %v2417
    %v2427 = vcombine.low %v2410, %v2424
    %v2428 = vcombine.low %v278, %v280
    %v2429 = vcombine.high %v278, %v280
    %v2430 = vcombine.low %v282, %v284
    %v2431 = vcombine.high %v282, %v284
    %v2433 = vunpack.c.l.s4 1983009808
    %v2434 = vunpack.c.0.s8 %v2433
    %v2435 = vlaneseq
    %v2436 = vshrl.u32 %v2435, 7
    %v2437 = vsub.s32 %v2434, %v2436
    %v2438 = vrot.slane %v2428, %v2437
    %v2440 = vunpack.c.l.s4 1983009808
    %v2441 = vunpack.c.0.s8 %v2440
    %v2442 = vlaneseq
    %v2443 = vshrl.u32 %v2442, 7
    %v2444 = vsub.s32 %v2441, %v2443
    %v2445 = vrot.slane %v2429, %v2444
    %v2447 = vunpack.c.l.s4 1983009808
    %v2448 = vunpack.c.0.s8 %v2447
    %v2449 = vlaneseq
    %v2450 = vshrl.u32 %v2449, 7
    %v2451 = vsub.s32 %v2448, %v2450
    %v2452 = vrot.slane %v2430, %v2451
    %v2454 = vunpack.c.l.s4 1983009808
    %v2455 = vunpack.c.0.s8 %v2454
    %v2456 = vlaneseq
    %v2457 = vshrl.u32 %v2456, 7
    %v2458 = vsub.s32 %v2455, %v2457
    %v2459 = vrot.slane %v2431, %v2458
    %v2460 = vcombine.low %v2438, %v2452
    %v2461 = vcombine.high %v2438, %v2452
    %v2462 = vcombine.low %v2445, %v2459
    %v2463 = vcombine.high %v2445, %v2459
    %v2464 = vcombine.low %v279, %v281
    %v2465 = vcombine.high %v279, %v281
    %v2466 = vcombine.low %v283, %v285
    %v2467 = vcombine.high %v283, %v285
    %v2469 = vunpack.c.l.s4 1983009808
    %v2470 = vunpack.c.0.s8 %v2469
    %v2471 = vlaneseq
    %v2472 = vshrl.u32 %v2471, 7
    %v2473 = vsub.s32 %v2470, %v2472
    %v2474 = vrot.slane %v2464, %v2473
    %v2476 = vunpack.c.l.s4 1983009808
    %v2477 = vunpack.c.0.s8 %v2476
    %v2478 = vlaneseq
    %v2479 = vshrl.u32 %v2478, 7
    %v2480 = vsub.s32 %v2477, %v2479
    %v2481 = vrot.slane %v2465, %v2480
    %v2483 = vunpack.c.l.s4 1983009808
    %v2484 = vunpack.c.0.s8 %v2483
    %v2485 = vlaneseq
    %v2486 = vshrl.u32 %v2485, 7
    %v2487 = vsub.s32 %v2484, %v2486
    %v2488 = vrot.slane %v2466, %v2487
    %v2490 = vunpack.c.l.s4 1983009808
    %v2491 = vunpack.c.0.s8 %v2490
    %v2492 = vlaneseq
    %v2493 = vshrl.u32 %v2492, 7
    %v2494 = vsub.s32 %v2491, %v2493
    %v2495 = vrot.slane %v2467, %v2494
    %v2496 = vcombine.low %v2474, %v2488
    %v2497 = vcombine.high %v2474, %v2488
    %v2498 = vcombine.low %v2481, %v2495
    %v2499 = vcombine.low %v286, %v288
    %v2500 = vcombine.high %v286, %v288
    %v2501 = vcombine.low %v290, %v292
    %v2502 = vcombine.high %v290, %v292
    %v2504 = vunpack.c.l.s4 1983009808
    %v2505 = vunpack.c.0.s8 %v2504
    %v2506 = vlaneseq
    %v2507 = vshrl.u32 %v2506, 7
    %v2508 = vsub.s32 %v2505, %v2507
    %v2509 = vrot.slane %v2499, %v2508
    %v2511 = vunpack.c.l.s4 1983009808
    %v2512 = vunpack.c.0.s8 %v2511
    %v2513 = vlaneseq
    %v2514 = vshrl.u32 %v2513, 7
    %v2515 = vsub.s32 %v2512, %v2514
    %v2516 = vrot.slane %v2500, %v2515
    %v2518 = vunpack.c.l.s4 1983009808
    %v2519 = vunpack.c.0.s8 %v2518
    %v2520 = vlaneseq
    %v2521 = vshrl.u32 %v2520, 7
    %v2522 = vsub.s32 %v2519, %v2521
    %v2523 = vrot.slane %v2501, %v2522
    %v2525 = vunpack.c.l.s4 1983009808
    %v2526 = vunpack.c.0.s8 %v2525
    %v2527 = vlaneseq
    %v2528 = vshrl.u32 %v2527, 7
    %v2529 = vsub.s32 %v2526, %v2528
    %v2530 = vrot.slane %v2502, %v2529
    %v2531 = vcombine.low %v2509, %v2523
    %v2532 = vcombine.high %v2509, %v2523
    %v2533 = vcombine.low %v2516, %v2530
    %v2534 = vcombine.high %v2516, %v2530
    %v2535 = vcombine.low %v287, %v289
    %v2536 = vcombine.high %v287, %v289
    %v2537 = vcombine.low %v291, %v293
    %v2538 = vcombine.high %v291, %v293
    %v2540 = vunpack.c.l.s4 1983009808
    %v2541 = vunpack.c.0.s8 %v2540
    %v2542 = vlaneseq
    %v2543 = vshrl.u32 %v2542, 7
    %v2544 = vsub.s32 %v2541, %v2543
    %v2545 = vrot.slane %v2535, %v2544
    %v2547 = vunpack.c.l.s4 1983009808
    %v2548 = vunpack.c.0.s8 %v2547
    %v2549 = vlaneseq
    %v2550 = vshrl.u32 %v2549, 7
    %v2551 = vsub.s32 %v2548, %v2550
    %v2552 = vrot.slane %v2536, %v2551
    %v2554 = vunpack.c.l.s4 1983009808
    %v2555 = vunpack.c.0.s8 %v2554
    %v2556 = vlaneseq
    %v2557 = vshrl.u32 %v2556, 7
    %v2558 = vsub.s32 %v2555, %v2557
    %v2559 = vrot.slane %v2537, %v2558
    %v2561 = vunpack.c.l.s4 1983009808
    %v2562 = vunpack.c.0.s8 %v2561
    %v2563 = vlaneseq
    %v2564 = vshrl.u32 %v2563, 7
    %v2565 = vsub.s32 %v2562, %v2564
    %v2566 = vrot.slane %v2538, %v2565
    %v2567 = vcombine.low %v2545, %v2559
    %v2568 = vcombine.high %v2545, %v2559
    %v2569 = vcombine.low %v2552, %v2566
    %v2570 = vcombine.low %v294, %v296
    %v2571 = vcombine.high %v294, %v296
    %v2572 = vcombine.low %v298, %v300
    %v2573 = vcombine.high %v298, %v300
    %v2575 = vunpack.c.l.s4 1983009808
    %v2576 = vunpack.c.0.s8 %v2575
    %v2577 = vlaneseq
    %v2578 = vshrl.u32 %v2577, 7
    %v2579 = vsub.s32 %v2576, %v2578
    %v2580 = vrot.slane %v2570, %v2579
    %v2582 = vunpack.c.l.s4 1983009808
    %v2583 = vunpack.c.0.s8 %v2582
    %v2584 = vlaneseq
    %v2585 = vshrl.u32 %v2584, 7
    %v2586 = vsub.s32 %v2583, %v2585
    %v2587 = vrot.slane %v2571, %v2586
    %v2589 = vunpack.c.l.s4 1983009808
    %v2590 = vunpack.c.0.s8 %v2589
    %v2591 = vlaneseq
    %v2592 = vshrl.u32 %v2591, 7
    %v2593 = vsub.s32 %v2590, %v2592
    %v2594 = vrot.slane %v2572, %v2593
    %v2596 = vunpack.c.l.s4 1983009808
    %v2597 = vunpack.c.0.s8 %v2596
    %v2598 = vlaneseq
    %v2599 = vshrl.u32 %v2598, 7
    %v2600 = vsub.s32 %v2597, %v2599
    %v2601 = vrot.slane %v2573, %v2600
    %v2602 = vcombine.low %v2580, %v2594
    %v2603 = vcombine.high %v2580, %v2594
    %v2604 = vcombine.low %v2587, %v2601
    %v2605 = vcombine.high %v2587, %v2601
    %v2606 = vcombine.low %v295, %v297
    %v2607 = vcombine.high %v295, %v297
    %v2608 = vcombine.low %v299, %v301
    %v2609 = vcombine.high %v299, %v301
    %v2611 = vunpack.c.l.s4 1983009808
    %v2612 = vunpack.c.0.s8 %v2611
    %v2613 = vlaneseq
    %v2614 = vshrl.u32 %v2613, 7
    %v2615 = vsub.s32 %v2612, %v2614
    %v2616 = vrot.slane %v2606, %v2615
    %v2618 = vunpack.c.l.s4 1983009808
    %v2619 = vunpack.c.0.s8 %v2618
    %v2620 = vlaneseq
    %v2621 = vshrl.u32 %v2620, 7
    %v2622 = vsub.s32 %v2619, %v2621
    %v2623 = vrot.slane %v2607, %v2622
    %v2625 = vunpack.c.l.s4 1983009808
    %v2626 = vunpack.c.0.s8 %v2625
    %v2627 = vlaneseq
    %v2628 = vshrl.u32 %v2627, 7
    %v2629 = vsub.s32 %v2626, %v2628
    %v2630 = vrot.slane %v2608, %v2629
    %v2632 = vunpack.c.l.s4 1983009808
    %v2633 = vunpack.c.0.s8 %v2632
    %v2634 = vlaneseq
    %v2635 = vshrl.u32 %v2634, 7
    %v2636 = vsub.s32 %v2633, %v2635
    %v2637 = vrot.slane %v2609, %v2636
    %v2638 = vcombine.low %v2616, %v2630
    %v2639 = vcombine.high %v2616, %v2630
    %v2640 = vcombine.low %v2623, %v2637
    %v2641 = vcombine.low %v302, %v304
    %v2642 = vcombine.high %v302, %v304
    %v2643 = vcombine.low %v306, %v308
    %v2644 = vcombine.high %v306, %v308
    %v2646 = vunpack.c.l.s4 1983009808
    %v2647 = vunpack.c.0.s8 %v2646
    %v2648 = vlaneseq
    %v2649 = vshrl.u32 %v2648, 7
    %v2650 = vsub.s32 %v2647, %v2649
    %v2651 = vrot.slane %v2641, %v2650
    %v2653 = vunpack.c.l.s4 1983009808
    %v2654 = vunpack.c.0.s8 %v2653
    %v2655 = vlaneseq
    %v2656 = vshrl.u32 %v2655, 7
    %v2657 = vsub.s32 %v2654, %v2656
    %v2658 = vrot.slane %v2642, %v2657
    %v2660 = vunpack.c.l.s4 1983009808
    %v2661 = vunpack.c.0.s8 %v2660
    %v2662 = vlaneseq
    %v2663 = vshrl.u32 %v2662, 7
    %v2664 = vsub.s32 %v2661, %v2663
    %v2665 = vrot.slane %v2643, %v2664
    %v2667 = vunpack.c.l.s4 1983009808
    %v2668 = vunpack.c.0.s8 %v2667
    %v2669 = vlaneseq
    %v2670 = vshrl.u32 %v2669, 7
    %v2671 = vsub.s32 %v2668, %v2670
    %v2672 = vrot.slane %v2644, %v2671
    %v2673 = vcombine.low %v2651, %v2665
    %v2674 = vcombine.high %v2651, %v2665
    %v2675 = vcombine.low %v2658, %v2672
    %v2676 = vcombine.high %v2658, %v2672
    %v2677 = vcombine.low %v303, %v305
    %v2678 = vcombine.high %v303, %v305
    %v2679 = vcombine.low %v307, %v309
    %v2680 = vcombine.high %v307, %v309
    %v2682 = vunpack.c.l.s4 1983009808
    %v2683 = vunpack.c.0.s8 %v2682
    %v2684 = vlaneseq
    %v2685 = vshrl.u32 %v2684, 7
    %v2686 = vsub.s32 %v2683, %v2685
    %v2687 = vrot.slane %v2677, %v2686
    %v2689 = vunpack.c.l.s4 1983009808
    %v2690 = vunpack.c.0.s8 %v2689
    %v2691 = vlaneseq
    %v2692 = vshrl.u32 %v2691, 7
    %v2693 = vsub.s32 %v2690, %v2692
    %v2694 = vrot.slane %v2678, %v2693
    %v2696 = vunpack.c.l.s4 1983009808
    %v2697 = vunpack.c.0.s8 %v2696
    %v2698 = vlaneseq
    %v2699 = vshrl.u32 %v2698, 7
    %v2700 = vsub.s32 %v2697, %v2699
    %v2701 = vrot.slane %v2679, %v2700
    %v2703 = vunpack.c.l.s4 1983009808
    %v2704 = vunpack.c.0.s8 %v2703
    %v2705 = vlaneseq
    %v2706 = vshrl.u32 %v2705, 7
    %v2707 = vsub.s32 %v2704, %v2706
    %v2708 = vrot.slane %v2680, %v2707
    %v2709 = vcombine.low %v2687, %v2701
    %v2710 = vcombine.high %v2687, %v2701
    %v2711 = vcombine.low %v2694, %v2708
    %v2712 = vcombine.low %v310, %v312
    %v2713 = vcombine.high %v310, %v312
    %v2714 = vcombine.low %v314, %v316
    %v2715 = vcombine.high %v314, %v316
    %v2717 = vunpack.c.l.s4 1983009808
    %v2718 = vunpack.c.0.s8 %v2717
    %v2719 = vlaneseq
    %v2720 = vshrl.u32 %v2719, 7
    %v2721 = vsub.s32 %v2718, %v2720
    %v2722 = vrot.slane %v2712, %v2721
    %v2724 = vunpack.c.l.s4 1983009808
    %v2725 = vunpack.c.0.s8 %v2724
    %v2726 = vlaneseq
    %v2727 = vshrl.u32 %v2726, 7
    %v2728 = vsub.s32 %v2725, %v2727
    %v2729 = vrot.slane %v2713, %v2728
    %v2731 = vunpack.c.l.s4 1983009808
    %v2732 = vunpack.c.0.s8 %v2731
    %v2733 = vlaneseq
    %v2734 = vshrl.u32 %v2733, 7
    %v2735 = vsub.s32 %v2732, %v2734
    %v2736 = vrot.slane %v2714, %v2735
    %v2738 = vunpack.c.l.s4 1983009808
    %v2739 = vunpack.c.0.s8 %v2738
    %v2740 = vlaneseq
    %v2741 = vshrl.u32 %v2740, 7
    %v2742 = vsub.s32 %v2739, %v2741
    %v2743 = vrot.slane %v2715, %v2742
    %v2744 = vcombine.low %v2722, %v2736
    %v2745 = vcombine.high %v2722, %v2736
    %v2746 = vcombine.low %v2729, %v2743
    %v2747 = vcombine.high %v2729, %v2743
    %v2748 = vcombine.low %v311, %v313
    %v2749 = vcombine.high %v311, %v313
    %v2750 = vcombine.low %v315, %v317
    %v2751 = vcombine.high %v315, %v317
    %v2753 = vunpack.c.l.s4 1983009808
    %v2754 = vunpack.c.0.s8 %v2753
    %v2755 = vlaneseq
    %v2756 = vshrl.u32 %v2755, 7
    %v2757 = vsub.s32 %v2754, %v2756
    %v2758 = vrot.slane %v2748, %v2757
    %v2760 = vunpack.c.l.s4 1983009808
    %v2761 = vunpack.c.0.s8 %v2760
    %v2762 = vlaneseq
    %v2763 = vshrl.u32 %v2762, 7
    %v2764 = vsub.s32 %v2761, %v2763
    %v2765 = vrot.slane %v2749, %v2764
    %v2767 = vunpack.c.l.s4 1983009808
    %v2768 = vunpack.c.0.s8 %v2767
    %v2769 = vlaneseq
    %v2770 = vshrl.u32 %v2769, 7
    %v2771 = vsub.s32 %v2768, %v2770
    %v2772 = vrot.slane %v2750, %v2771
    %v2774 = vunpack.c.l.s4 1983009808
    %v2775 = vunpack.c.0.s8 %v2774
    %v2776 = vlaneseq
    %v2777 = vshrl.u32 %v2776, 7
    %v2778 = vsub.s32 %v2775, %v2777
    %v2779 = vrot.slane %v2751, %v2778
    %v2780 = vcombine.low %v2758, %v2772
    %v2781 = vcombine.high %v2758, %v2772
    %v2782 = vcombine.low %v2765, %v2779
    %v2783 = vcombine.low %v318, %v320
    %v2784 = vcombine.high %v318, %v320
    %v2785 = vcombine.low %v322, %v324
    %v2786 = vcombine.high %v322, %v324
    %v2788 = vunpack.c.l.s4 1983009808
    %v2789 = vunpack.c.0.s8 %v2788
    %v2790 = vlaneseq
    %v2791 = vshrl.u32 %v2790, 7
    %v2792 = vsub.s32 %v2789, %v2791
    %v2793 = vrot.slane %v2783, %v2792
    %v2795 = vunpack.c.l.s4 1983009808
    %v2796 = vunpack.c.0.s8 %v2795
    %v2797 = vlaneseq
    %v2798 = vshrl.u32 %v2797, 7
    %v2799 = vsub.s32 %v2796, %v2798
    %v2800 = vrot.slane %v2784, %v2799
    %v2802 = vunpack.c.l.s4 1983009808
    %v2803 = vunpack.c.0.s8 %v2802
    %v2804 = vlaneseq
    %v2805 = vshrl.u32 %v2804, 7
    %v2806 = vsub.s32 %v2803, %v2805
    %v2807 = vrot.slane %v2785, %v2806
    %v2809 = vunpack.c.l.s4 1983009808
    %v2810 = vunpack.c.0.s8 %v2809
    %v2811 = vlaneseq
    %v2812 = vshrl.u32 %v2811, 7
    %v2813 = vsub.s32 %v2810, %v2812
    %v2814 = vrot.slane %v2786, %v2813
    %v2815 = vcombine.low %v2793, %v2807
    %v2816 = vcombine.high %v2793, %v2807
    %v2817 = vcombine.low %v2800, %v2814
    %v2818 = vcombine.high %v2800, %v2814
    %v2819 = vcombine.low %v319, %v321
    %v2820 = vcombine.high %v319, %v321
    %v2821 = vcombine.low %v323, %v325
    %v2822 = vcombine.high %v323, %v325
    %v2824 = vunpack.c.l.s4 1983009808
    %v2825 = vunpack.c.0.s8 %v2824
    %v2826 = vlaneseq
    %v2827 = vshrl.u32 %v2826, 7
    %v2828 = vsub.s32 %v2825, %v2827
    %v2829 = vrot.slane %v2819, %v2828
    %v2831 = vunpack.c.l.s4 1983009808
    %v2832 = vunpack.c.0.s8 %v2831
    %v2833 = vlaneseq
    %v2834 = vshrl.u32 %v2833, 7
    %v2835 = vsub.s32 %v2832, %v2834
    %v2836 = vrot.slane %v2820, %v2835
    %v2838 = vunpack.c.l.s4 1983009808
    %v2839 = vunpack.c.0.s8 %v2838
    %v2840 = vlaneseq
    %v2841 = vshrl.u32 %v2840, 7
    %v2842 = vsub.s32 %v2839, %v2841
    %v2843 = vrot.slane %v2821, %v2842
    %v2845 = vunpack.c.l.s4 1983009808
    %v2846 = vunpack.c.0.s8 %v2845
    %v2847 = vlaneseq
    %v2848 = vshrl.u32 %v2847, 7
    %v2849 = vsub.s32 %v2846, %v2848
    %v2850 = vrot.slane %v2822, %v2849
    %v2851 = vcombine.low %v2829, %v2843
    %v2852 = vcombine.high %v2829, %v2843
    %v2853 = vcombine.low %v2836, %v2850
    %v3078 = vpack.c.bf16 %v685, %v614
    %v3079 = vpack.c.bf16 %v686, %v615
    %v3080 = vpack.c.bf16 %v687, %v616
    %v3081 = vpack.c.bf16 %v688, %v617
    %v3082 = vpack.c.bf16 %v721, %v650
    %v3083 = vpack.c.bf16 %v722, %v651
    %v3084 = vpack.c.bf16 %v723, %v652
    %v3085 = vpack.c.bf16 %v827, %v756
    %v3086 = vpack.c.bf16 %v828, %v757
    %v3087 = vpack.c.bf16 %v829, %v758
    %v3088 = vpack.c.bf16 %v830, %v759
    %v3089 = vpack.c.bf16 %v863, %v792
    %v3090 = vpack.c.bf16 %v864, %v793
    %v3091 = vpack.c.bf16 %v865, %v794
    %v3092 = vpack.c.bf16 %v969, %v898
    %v3093 = vpack.c.bf16 %v970, %v899
    %v3094 = vpack.c.bf16 %v971, %v900
    %v3095 = vpack.c.bf16 %v972, %v901
    %v3096 = vpack.c.bf16 %v1005, %v934
    %v3097 = vpack.c.bf16 %v1006, %v935
    %v3098 = vpack.c.bf16 %v1007, %v936
    %v3099 = vpack.c.bf16 %v1111, %v1040
    %v3100 = vpack.c.bf16 %v1112, %v1041
    %v3101 = vpack.c.bf16 %v1113, %v1042
    %v3102 = vpack.c.bf16 %v1114, %v1043
    %v3103 = vpack.c.bf16 %v1147, %v1076
    %v3104 = vpack.c.bf16 %v1148, %v1077
    %v3105 = vpack.c.bf16 %v1149, %v1078
    %v3106 = vpack.c.bf16 %v1253, %v1182
    %v3107 = vpack.c.bf16 %v1254, %v1183
    %v3108 = vpack.c.bf16 %v1255, %v1184
    %v3109 = vpack.c.bf16 %v1256, %v1185
    %v3110 = vpack.c.bf16 %v1289, %v1218
    %v3111 = vpack.c.bf16 %v1290, %v1219
    %v3112 = vpack.c.bf16 %v1291, %v1220
    %v3113 = vpack.c.bf16 %v1395, %v1324
    %v3114 = vpack.c.bf16 %v1396, %v1325
    %v3115 = vpack.c.bf16 %v1397, %v1326
    %v3116 = vpack.c.bf16 %v1398, %v1327
    %v3117 = vpack.c.bf16 %v1431, %v1360
    %v3118 = vpack.c.bf16 %v1432, %v1361
    %v3119 = vpack.c.bf16 %v1433, %v1362
    %v3120 = vpack.c.bf16 %v1537, %v1466
    %v3121 = vpack.c.bf16 %v1538, %v1467
    %v3122 = vpack.c.bf16 %v1539, %v1468
    %v3123 = vpack.c.bf16 %v1540, %v1469
    %v3124 = vpack.c.bf16 %v1573, %v1502
    %v3125 = vpack.c.bf16 %v1574, %v1503
    %v3126 = vpack.c.bf16 %v1575, %v1504
    %v3127 = vpack.c.bf16 %v1679, %v1608
    %v3128 = vpack.c.bf16 %v1680, %v1609
    %v3129 = vpack.c.bf16 %v1681, %v1610
    %v3130 = vpack.c.bf16 %v1682, %v1611
    %v3131 = vpack.c.bf16 %v1715, %v1644
    %v3132 = vpack.c.bf16 %v1716, %v1645
    %v3133 = vpack.c.bf16 %v1717, %v1646
    %v3134 = vpack.c.bf16 %v1821, %v1750
    %v3135 = vpack.c.bf16 %v1822, %v1751
    %v3136 = vpack.c.bf16 %v1823, %v1752
    %v3137 = vpack.c.bf16 %v1824, %v1753
    %v3138 = vpack.c.bf16 %v1857, %v1786
    %v3139 = vpack.c.bf16 %v1858, %v1787
    %v3140 = vpack.c.bf16 %v1859, %v1788
    %v3141 = vpack.c.bf16 %v1963, %v1892
    %v3142 = vpack.c.bf16 %v1964, %v1893
    %v3143 = vpack.c.bf16 %v1965, %v1894
    %v3144 = vpack.c.bf16 %v1966, %v1895
    %v3145 = vpack.c.bf16 %v1999, %v1928
    %v3146 = vpack.c.bf16 %v2000, %v1929
    %v3147 = vpack.c.bf16 %v2001, %v1930
    %v3148 = vpack.c.bf16 %v2105, %v2034
    %v3149 = vpack.c.bf16 %v2106, %v2035
    %v3150 = vpack.c.bf16 %v2107, %v2036
    %v3151 = vpack.c.bf16 %v2108, %v2037
    %v3152 = vpack.c.bf16 %v2141, %v2070
    %v3153 = vpack.c.bf16 %v2142, %v2071
    %v3154 = vpack.c.bf16 %v2143, %v2072
    %v3155 = vpack.c.bf16 %v2247, %v2176
    %v3156 = vpack.c.bf16 %v2248, %v2177
    %v3157 = vpack.c.bf16 %v2249, %v2178
    %v3158 = vpack.c.bf16 %v2250, %v2179
    %v3159 = vpack.c.bf16 %v2283, %v2212
    %v3160 = vpack.c.bf16 %v2284, %v2213
    %v3161 = vpack.c.bf16 %v2285, %v2214
    %v3162 = vpack.c.bf16 %v2389, %v2318
    %v3163 = vpack.c.bf16 %v2390, %v2319
    %v3164 = vpack.c.bf16 %v2391, %v2320
    %v3165 = vpack.c.bf16 %v2392, %v2321
    %v3166 = vpack.c.bf16 %v2425, %v2354
    %v3167 = vpack.c.bf16 %v2426, %v2355
    %v3168 = vpack.c.bf16 %v2427, %v2356
    %v3169 = vpack.c.bf16 %v2531, %v2460
    %v3170 = vpack.c.bf16 %v2532, %v2461
    %v3171 = vpack.c.bf16 %v2533, %v2462
    %v3172 = vpack.c.bf16 %v2534, %v2463
    %v3173 = vpack.c.bf16 %v2567, %v2496
    %v3174 = vpack.c.bf16 %v2568, %v2497
    %v3175 = vpack.c.bf16 %v2569, %v2498
    %v3176 = vpack.c.bf16 %v2673, %v2602
    %v3177 = vpack.c.bf16 %v2674, %v2603
    %v3178 = vpack.c.bf16 %v2675, %v2604
    %v3179 = vpack.c.bf16 %v2676, %v2605
    %v3180 = vpack.c.bf16 %v2709, %v2638
    %v3181 = vpack.c.bf16 %v2710, %v2639
    %v3182 = vpack.c.bf16 %v2711, %v2640
    %v3183 = vpack.c.bf16 %v2815, %v2744
    %v3184 = vpack.c.bf16 %v2816, %v2745
    %v3185 = vpack.c.bf16 %v2817, %v2746
    %v3186 = vpack.c.bf16 %v2818, %v2747
    %v3187 = vpack.c.bf16 %v2851, %v2780
    %v3188 = vpack.c.bf16 %v2852, %v2781
    %v3189 = vpack.c.bf16 %v2853, %v2782
    %v3190 = vld [vmem:[#allocation5] sm:$0xff]
    %v3191 = vld [vmem:[#allocation5 + $0x8] sm:$0xff]
    %v3192 = vld [vmem:[#allocation5 + $0x10] sm:$0xff]
    %v3193 = vld [vmem:[#allocation5 + $0x18] sm:$0xff]
    %v3194 = vld [vmem:[#allocation5 + $0x20] sm:$0xff]
    %v3195 = vld [vmem:[#allocation5 + $0x28] sm:$0xff]
    %v3196 = vld [vmem:[#allocation5 + $0x30] sm:$0xff]
    %v3197 = vld [vmem:[#allocation5 + $0x38] sm:$0xff]
    %v3198 = vld [vmem:[#allocation5 + $0x40] sm:$0xff]
    %v3199 = vld [vmem:[#allocation5 + $0x48] sm:$0xff]
    %v3200 = vld [vmem:[#allocation5 + $0x50] sm:$0xff]
    %v3201 = vld [vmem:[#allocation5 + $0x58] sm:$0xff]
    %v3202 = vld [vmem:[#allocation5 + $0x60] sm:$0xff]
    %v3203 = vld [vmem:[#allocation5 + $0x68] sm:$0xff]
    %v3204 = vld [vmem:[#allocation5 + $0x70] sm:$0xff]
    %v3205 = vld [vmem:[#allocation5 + $0x78] sm:$0xff]
    %v3206 = vld [vmem:[#allocation5 + $0x80] sm:$0xff]
    %v3207 = vld [vmem:[#allocation5 + $0x88] sm:$0xff]
    %v3208 = vld [vmem:[#allocation5 + $0x90] sm:$0xff]
    %v3209 = vld [vmem:[#allocation5 + $0x98] sm:$0xff]
    %v3210 = vld [vmem:[#allocation5 + $0xa0] sm:$0xff]
    %v3211 = vld [vmem:[#allocation5 + $0xa8] sm:$0xff]
    %v3212 = vld [vmem:[#allocation5 + $0xb0] sm:$0xff]
    %v3213 = vld [vmem:[#allocation5 + $0xb8] sm:$0xff]
    %v3214 = vld [vmem:[#allocation5 + $0xc0] sm:$0xff]
    %v3215 = vld [vmem:[#allocation5 + $0xc8] sm:$0xff]
    %v3216 = vld [vmem:[#allocation5 + $0xd0] sm:$0xff]
    %v3217 = vld [vmem:[#allocation5 + $0xd8] sm:$0xff]
    %v3218 = vld [vmem:[#allocation5 + $0xe0] sm:$0xff]
    %v3219 = vld [vmem:[#allocation5 + $0xe8] sm:$0xff]
    %v3220 = vld [vmem:[#allocation5 + $0xf0] sm:$0xff]
    %v3221 = vld [vmem:[#allocation5 + $0xf8] sm:$0xff]
    %v3222 = vld [vmem:[#allocation5 + $0x100] sm:$0xff]
    %v3223 = vld [vmem:[#allocation5 + $0x108] sm:$0xff]
    %v3224 = vld [vmem:[#allocation5 + $0x110] sm:$0xff]
    %v3225 = vld [vmem:[#allocation5 + $0x118] sm:$0xff]
    %v3226 = vld [vmem:[#allocation5 + $0x120] sm:$0xff]
    %v3227 = vld [vmem:[#allocation5 + $0x128] sm:$0xff]
    %v3228 = vld [vmem:[#allocation5 + $0x130] sm:$0xff]
    %v3229 = vld [vmem:[#allocation5 + $0x138] sm:$0xff]
    %v3230 = vld [vmem:[#allocation5 + $0x140] sm:$0xff]
    %v3231 = vld [vmem:[#allocation5 + $0x148] sm:$0xff]
    %v3232 = vld [vmem:[#allocation5 + $0x150] sm:$0xff]
    %v3233 = vld [vmem:[#allocation5 + $0x158] sm:$0xff]
    %v3234 = vld [vmem:[#allocation5 + $0x160] sm:$0xff]
    %v3235 = vld [vmem:[#allocation5 + $0x168] sm:$0xff]
    %v3236 = vld [vmem:[#allocation5 + $0x170] sm:$0xff]
    %v3237 = vld [vmem:[#allocation5 + $0x178] sm:$0xff]
    %v3238 = vld [vmem:[#allocation5 + $0x180] sm:$0xff]
    %v3239 = vld [vmem:[#allocation5 + $0x188] sm:$0xff]
    %v3240 = vld [vmem:[#allocation5 + $0x190] sm:$0xff]
    %v3241 = vld [vmem:[#allocation5 + $0x198] sm:$0xff]
    %v3242 = vld [vmem:[#allocation5 + $0x1a0] sm:$0xff]
    %v3243 = vld [vmem:[#allocation5 + $0x1a8] sm:$0xff]
    %v3244 = vld [vmem:[#allocation5 + $0x1b0] sm:$0xff]
    %v3245 = vld [vmem:[#allocation5 + $0x1b8] sm:$0xff]
    %v3246 = vld [vmem:[#allocation5 + $0x1c0] sm:$0xff]
    %v3247 = vld [vmem:[#allocation5 + $0x1c8] sm:$0xff]
    %v3248 = vld [vmem:[#allocation5 + $0x1d0] sm:$0xff]
    %v3249 = vld [vmem:[#allocation5 + $0x1d8] sm:$0xff]
    %v3250 = vld [vmem:[#allocation5 + $0x1e0] sm:$0xff]
    %v3251 = vld [vmem:[#allocation5 + $0x1e8] sm:$0xff]
    %v3252 = vld [vmem:[#allocation5 + $0x1f0] sm:$0xff]
    %v3253 = vld [vmem:[#allocation5 + $0x1f8] sm:$0xff]
    %v3254 = vld [vmem:[#allocation5 + $0x200] sm:$0xff]
    %v3255 = vld [vmem:[#allocation5 + $0x208] sm:$0xff]
    %v3256 = vld [vmem:[#allocation5 + $0x210] sm:$0xff]
    %v3257 = vld [vmem:[#allocation5 + $0x218] sm:$0xff]
    %v3258 = vld [vmem:[#allocation5 + $0x220] sm:$0xff]
    %v3259 = vld [vmem:[#allocation5 + $0x228] sm:$0xff]
    %v3260 = vld [vmem:[#allocation5 + $0x230] sm:$0xff]
    %v3261 = vld [vmem:[#allocation5 + $0x238] sm:$0xff]
    %v3262 = vld [vmem:[#allocation5 + $0x240] sm:$0xff]
    %v3263 = vld [vmem:[#allocation5 + $0x248] sm:$0xff]
    %v3264 = vld [vmem:[#allocation5 + $0x250] sm:$0xff]
    %v3265 = vld [vmem:[#allocation5 + $0x258] sm:$0xff]
    %v3266 = vld [vmem:[#allocation5 + $0x260] sm:$0xff]
    %v3267 = vld [vmem:[#allocation5 + $0x268] sm:$0xff]
    %v3268 = vld [vmem:[#allocation5 + $0x270] sm:$0xff]
    %v3269 = vld [vmem:[#allocation5 + $0x278] sm:$0xff]
    %v3270 = vld [vmem:[#allocation5 + $0x280] sm:$0xff]
    %v3271 = vld [vmem:[#allocation5 + $0x288] sm:$0xff]
    %v3272 = vld [vmem:[#allocation5 + $0x290] sm:$0xff]
    %v3273 = vld [vmem:[#allocation5 + $0x298] sm:$0xff]
    %v3274 = vld [vmem:[#allocation5 + $0x2a0] sm:$0xff]
    %v3275 = vld [vmem:[#allocation5 + $0x2a8] sm:$0xff]
    %v3276 = vld [vmem:[#allocation5 + $0x2b0] sm:$0xff]
    %v3277 = vld [vmem:[#allocation5 + $0x2b8] sm:$0xff]
    %v3278 = vld [vmem:[#allocation5 + $0x2c0] sm:$0xff]
    %v3279 = vld [vmem:[#allocation5 + $0x2c8] sm:$0xff]
    %v3280 = vld [vmem:[#allocation5 + $0x2d0] sm:$0xff]
    %v3281 = vld [vmem:[#allocation5 + $0x2d8] sm:$0xff]
    %v3282 = vld [vmem:[#allocation5 + $0x2e0] sm:$0xff]
    %v3283 = vld [vmem:[#allocation5 + $0x2e8] sm:$0xff]
    %v3284 = vld [vmem:[#allocation5 + $0x2f0] sm:$0xff]
    %v3285 = vld [vmem:[#allocation5 + $0x2f8] sm:$0xff]
    %v3286 = vld [vmem:[#allocation5 + $0x300] sm:$0xff]
    %v3287 = vld [vmem:[#allocation5 + $0x308] sm:$0xff]
    %v3288 = vld [vmem:[#allocation5 + $0x310] sm:$0xff]
    %v3289 = vld [vmem:[#allocation5 + $0x318] sm:$0xff]
    %v3290 = vld [vmem:[#allocation5 + $0x320] sm:$0xff]
    %v3291 = vld [vmem:[#allocation5 + $0x328] sm:$0xff]
    %v3292 = vld [vmem:[#allocation5 + $0x330] sm:$0xff]
    %v3293 = vld [vmem:[#allocation5 + $0x338] sm:$0xff]
    %v3294 = vld [vmem:[#allocation5 + $0x340] sm:$0xff]
    %v3295 = vld [vmem:[#allocation5 + $0x348] sm:$0xff]
    %v3296 = vld [vmem:[#allocation5 + $0x350] sm:$0xff]
    %v3297 = vld [vmem:[#allocation5 + $0x358] sm:$0xff]
    %v3298 = vld [vmem:[#allocation5 + $0x360] sm:$0xff]
    %v3299 = vld [vmem:[#allocation5 + $0x368] sm:$0xff]
    %v3300 = vld [vmem:[#allocation5 + $0x370] sm:$0xff]
    %v3301 = vld [vmem:[#allocation5 + $0x378] sm:$0xff]
    %v3302 = vld [vmem:[#allocation5 + $0x380] sm:$0xff]
    %v3303 = vld [vmem:[#allocation5 + $0x388] sm:$0xff]
    %v3304 = vld [vmem:[#allocation5 + $0x390] sm:$0xff]
    %v3305 = vld [vmem:[#allocation5 + $0x398] sm:$0xff]
    %v3306 = vld [vmem:[#allocation5 + $0x3a0] sm:$0xff]
    %v3307 = vld [vmem:[#allocation5 + $0x3a8] sm:$0xff]
    %v3308 = vld [vmem:[#allocation5 + $0x3b0] sm:$0xff]
    %v3309 = vld [vmem:[#allocation5 + $0x3b8] sm:$0xff]
    %v3310 = vld [vmem:[#allocation5 + $0x3c0] sm:$0xff]
    %v3311 = vld [vmem:[#allocation5 + $0x3c8] sm:$0xff]
    %v3312 = vld [vmem:[#allocation5 + $0x3d0] sm:$0xff]
    %v3313 = vld [vmem:[#allocation5 + $0x3d8] sm:$0xff]
    %v3314 = vld [vmem:[#allocation5 + $0x3e0] sm:$0xff]
    %v3315 = vld [vmem:[#allocation5 + $0x3e8] sm:$0xff]
    %v3316 = vld [vmem:[#allocation5 + $0x3f0] sm:$0xff]
    %v3317 = vld [vmem:[#allocation5 + $0x3f8] sm:$0xff]
    %v3318 = vld [vmem:[#allocation5 + $0x400] sm:$0xff]
    %v3319 = vld [vmem:[#allocation5 + $0x408] sm:$0xff]
    %v3320 = vld [vmem:[#allocation5 + $0x410] sm:$0xff]
    %v3321 = vld [vmem:[#allocation5 + $0x418] sm:$0xff]
    %v3322 = vld [vmem:[#allocation5 + $0x420] sm:$0xff]
    %v3323 = vld [vmem:[#allocation5 + $0x428] sm:$0xff]
    %v3324 = vld [vmem:[#allocation5 + $0x430] sm:$0xff]
    %v3325 = vld [vmem:[#allocation5 + $0x438] sm:$0xff]
    %v3326 = vld [vmem:[#allocation5 + $0x440] sm:$0xff]
    %v3327 = vld [vmem:[#allocation5 + $0x448] sm:$0xff]
    %v3328 = vld [vmem:[#allocation5 + $0x450] sm:$0xff]
    %v3329 = vld [vmem:[#allocation5 + $0x458] sm:$0xff]
    %v3330 = vld [vmem:[#allocation5 + $0x460] sm:$0xff]
    %v3331 = vld [vmem:[#allocation5 + $0x468] sm:$0xff]
    %v3332 = vld [vmem:[#allocation5 + $0x470] sm:$0xff]
    %v3333 = vld [vmem:[#allocation5 + $0x478] sm:$0xff]
    %v3334 = vld [vmem:[#allocation5 + $0x480] sm:$0xff]
    %v3335 = vld [vmem:[#allocation5 + $0x488] sm:$0xff]
    %v3336 = vld [vmem:[#allocation5 + $0x490] sm:$0xff]
    %v3337 = vld [vmem:[#allocation5 + $0x498] sm:$0xff]
    %v3338 = vld [vmem:[#allocation5 + $0x4a0] sm:$0xff]
    %v3339 = vld [vmem:[#allocation5 + $0x4a8] sm:$0xff]
    %v3340 = vld [vmem:[#allocation5 + $0x4b0] sm:$0xff]
    %v3341 = vld [vmem:[#allocation5 + $0x4b8] sm:$0xff]
    %v3342 = vld [vmem:[#allocation5 + $0x4c0] sm:$0xff]
    %v3343 = vld [vmem:[#allocation5 + $0x4c8] sm:$0xff]
    %v3344 = vld [vmem:[#allocation5 + $0x4d0] sm:$0xff]
    %v3345 = vld [vmem:[#allocation5 + $0x4d8] sm:$0xff]
    %v3346 = vld [vmem:[#allocation5 + $0x4e0] sm:$0xff]
    %v3347 = vld [vmem:[#allocation5 + $0x4e8] sm:$0xff]
    %v3348 = vld [vmem:[#allocation5 + $0x4f0] sm:$0xff]
    %v3349 = vld [vmem:[#allocation5 + $0x4f8] sm:$0xff]
    %v3350 = vld [vmem:[#allocation5 + $0x500] sm:$0xff]
    %v3351 = vld [vmem:[#allocation5 + $0x508] sm:$0xff]
    %v3352 = vld [vmem:[#allocation5 + $0x510] sm:$0xff]
    %v3353 = vld [vmem:[#allocation5 + $0x518] sm:$0xff]
    %v3354 = vld [vmem:[#allocation5 + $0x520] sm:$0xff]
    %v3355 = vld [vmem:[#allocation5 + $0x528] sm:$0xff]
    %v3356 = vld [vmem:[#allocation5 + $0x530] sm:$0xff]
    %v3357 = vld [vmem:[#allocation5 + $0x538] sm:$0xff]
    %v3358 = vld [vmem:[#allocation5 + $0x540] sm:$0xff]
    %v3359 = vld [vmem:[#allocation5 + $0x548] sm:$0xff]
    %v3360 = vld [vmem:[#allocation5 + $0x550] sm:$0xff]
    %v3361 = vld [vmem:[#allocation5 + $0x558] sm:$0xff]
    %v3362 = vld [vmem:[#allocation5 + $0x560] sm:$0xff]
    %v3363 = vld [vmem:[#allocation5 + $0x568] sm:$0xff]
    %v3364 = vld [vmem:[#allocation5 + $0x570] sm:$0xff]
    %v3365 = vld [vmem:[#allocation5 + $0x578] sm:$0xff]
    %v3366 = vld [vmem:[#allocation5 + $0x580] sm:$0xff]
    %v3367 = vld [vmem:[#allocation5 + $0x588] sm:$0xff]
    %v3368 = vld [vmem:[#allocation5 + $0x590] sm:$0xff]
    %v3369 = vld [vmem:[#allocation5 + $0x598] sm:$0xff]
    %v3370 = vld [vmem:[#allocation5 + $0x5a0] sm:$0xff]
    %v3371 = vld [vmem:[#allocation5 + $0x5a8] sm:$0xff]
    %v3372 = vld [vmem:[#allocation5 + $0x5b0] sm:$0xff]
    %v3373 = vld [vmem:[#allocation5 + $0x5b8] sm:$0xff]
    %v3374 = vld [vmem:[#allocation5 + $0x5c0] sm:$0xff]
    %v3375 = vld [vmem:[#allocation5 + $0x5c8] sm:$0xff]
    %v3376 = vld [vmem:[#allocation5 + $0x5d0] sm:$0xff]
    %v3377 = vld [vmem:[#allocation5 + $0x5d8] sm:$0xff]
    %v3378 = vld [vmem:[#allocation5 + $0x5e0] sm:$0xff]
    %v3379 = vld [vmem:[#allocation5 + $0x5e8] sm:$0xff]
    %v3380 = vld [vmem:[#allocation5 + $0x5f0] sm:$0xff]
    %v3381 = vld [vmem:[#allocation5 + $0x5f8] sm:$0xff]
    %v3382 = vld [vmem:[#allocation5 + $0x600] sm:$0xff]
    %v3383 = vld [vmem:[#allocation5 + $0x608] sm:$0xff]
    %v3384 = vld [vmem:[#allocation5 + $0x610] sm:$0xff]
    %v3385 = vld [vmem:[#allocation5 + $0x618] sm:$0xff]
    %v3386 = vld [vmem:[%s2] sm:$0xf]
    %v3388 = vlaneseq
    %v3389 = vshrl.u32 %v3388, 7
    %v3390 = vsub.s32 0, %v3389
    %v3391 = vrot.slane %v3386, %v3390
    %v3392 = vlaneseq
    %v3393 = vshrl.u32 %v3392, 7
    %v3394 = vsub.s32 1, %v3393
    %v3395 = vrot.slane %v3386, %v3394
    %v3396 = vlaneseq
    %v3397 = vshrl.u32 %v3396, 7
    %v3398 = vsub.s32 2, %v3397
    %v3399 = vrot.slane %v3386, %v3398
    %v3400 = vlaneseq
    %v3401 = vshrl.u32 %v3400, 7
    %v3402 = vsub.s32 3, %v3401
    %v3403 = vrot.slane %v3386, %v3402
    %v3604 = vunpack.c.l.b16 %v3190
    %v3605 = vunpack.c.h.b16 %v3190
    %v3606 = vunpack.c.l.b16 %v3191
    %v3607 = vunpack.c.h.b16 %v3191
    %v3608 = vunpack.c.l.b16 %v3192
    %v3609 = vunpack.c.h.b16 %v3192
    %v3610 = vunpack.c.l.b16 %v3193
    %v3611 = vunpack.c.h.b16 %v3193
    %v3612 = vunpack.c.l.b16 %v3194
    %v3613 = vunpack.c.h.b16 %v3194
    %v3614 = vunpack.c.l.b16 %v3195
    %v3615 = vunpack.c.h.b16 %v3195
    %v3616 = vunpack.c.l.b16 %v3196
    %v3617 = vunpack.c.h.b16 %v3196
    %v3618 = vunpack.c.l.b16 %v3197
    %v3619 = vunpack.c.h.b16 %v3197
    %v3620 = vunpack.c.l.b16 %v3198
    %v3621 = vunpack.c.h.b16 %v3198
    %v3622 = vunpack.c.l.b16 %v3199
    %v3623 = vunpack.c.h.b16 %v3199
    %v3624 = vunpack.c.l.b16 %v3200
    %v3625 = vunpack.c.h.b16 %v3200
    %v3626 = vunpack.c.l.b16 %v3201
    %v3627 = vunpack.c.h.b16 %v3201
    %v3628 = vunpack.c.l.b16 %v3202
    %v3629 = vunpack.c.h.b16 %v3202
    %v3630 = vunpack.c.l.b16 %v3203
    %v3631 = vunpack.c.h.b16 %v3203
    %v3632 = vunpack.c.l.b16 %v3204
    %v3633 = vunpack.c.h.b16 %v3204
    %v3634 = vunpack.c.l.b16 %v3205
    %v3635 = vunpack.c.h.b16 %v3205
    %v3636 = vunpack.c.l.b16 %v3206
    %v3637 = vunpack.c.h.b16 %v3206
    %v3638 = vunpack.c.l.b16 %v3207
    %v3639 = vunpack.c.h.b16 %v3207
    %v3640 = vunpack.c.l.b16 %v3208
    %v3641 = vunpack.c.h.b16 %v3208
    %v3642 = vunpack.c.l.b16 %v3209
    %v3643 = vunpack.c.h.b16 %v3209
    %v3644 = vunpack.c.l.b16 %v3210
    %v3645 = vunpack.c.h.b16 %v3210
    %v3646 = vunpack.c.l.b16 %v3211
    %v3647 = vunpack.c.h.b16 %v3211
    %v3648 = vunpack.c.l.b16 %v3212
    %v3649 = vunpack.c.h.b16 %v3212
    %v3650 = vunpack.c.l.b16 %v3213
    %v3651 = vunpack.c.h.b16 %v3213
    %v3652 = vunpack.c.l.b16 %v3214
    %v3653 = vunpack.c.h.b16 %v3214
    %v3654 = vunpack.c.l.b16 %v3215
    %v3655 = vunpack.c.h.b16 %v3215
    %v3656 = vunpack.c.l.b16 %v3216
    %v3657 = vunpack.c.h.b16 %v3216
    %v3658 = vunpack.c.l.b16 %v3217
    %v3659 = vunpack.c.h.b16 %v3217
    %v3660 = vunpack.c.l.b16 %v3218
    %v3661 = vunpack.c.h.b16 %v3218
    %v3662 = vunpack.c.l.b16 %v3219
    %v3663 = vunpack.c.h.b16 %v3219
    %v3664 = vunpack.c.l.b16 %v3220
    %v3665 = vunpack.c.h.b16 %v3220
    %v3666 = vunpack.c.l.b16 %v3221
    %v3667 = vunpack.c.h.b16 %v3221
    %v3668 = vunpack.c.l.b16 %v3222
    %v3669 = vunpack.c.h.b16 %v3222
    %v3670 = vunpack.c.l.b16 %v3223
    %v3671 = vunpack.c.h.b16 %v3223
    %v3672 = vunpack.c.l.b16 %v3224
    %v3673 = vunpack.c.h.b16 %v3224
    %v3674 = vunpack.c.l.b16 %v3225
    %v3675 = vunpack.c.h.b16 %v3225
    %v3676 = vunpack.c.l.b16 %v3226
    %v3677 = vunpack.c.h.b16 %v3226
    %v3678 = vunpack.c.l.b16 %v3227
    %v3679 = vunpack.c.h.b16 %v3227
    %v3680 = vunpack.c.l.b16 %v3228
    %v3681 = vunpack.c.h.b16 %v3228
    %v3682 = vunpack.c.l.b16 %v3229
    %v3683 = vunpack.c.h.b16 %v3229
    %v3684 = vunpack.c.l.b16 %v3230
    %v3685 = vunpack.c.h.b16 %v3230
    %v3686 = vunpack.c.l.b16 %v3231
    %v3687 = vunpack.c.h.b16 %v3231
    %v3688 = vunpack.c.l.b16 %v3232
    %v3689 = vunpack.c.h.b16 %v3232
    %v3690 = vunpack.c.l.b16 %v3233
    %v3691 = vunpack.c.h.b16 %v3233
    %v3692 = vunpack.c.l.b16 %v3234
    %v3693 = vunpack.c.h.b16 %v3234
    %v3694 = vunpack.c.l.b16 %v3235
    %v3695 = vunpack.c.h.b16 %v3235
    %v3696 = vunpack.c.l.b16 %v3236
    %v3697 = vunpack.c.h.b16 %v3236
    %v3698 = vunpack.c.l.b16 %v3237
    %v3699 = vunpack.c.h.b16 %v3237
    %v3700 = vunpack.c.l.b16 %v3238
    %v3701 = vunpack.c.h.b16 %v3238
    %v3702 = vunpack.c.l.b16 %v3239
    %v3703 = vunpack.c.h.b16 %v3239
    %v3704 = vunpack.c.l.b16 %v3240
    %v3705 = vunpack.c.h.b16 %v3240
    %v3706 = vunpack.c.l.b16 %v3241
    %v3707 = vunpack.c.h.b16 %v3241
    %v3708 = vunpack.c.l.b16 %v3242
    %v3709 = vunpack.c.h.b16 %v3242
    %v3710 = vunpack.c.l.b16 %v3243
    %v3711 = vunpack.c.h.b16 %v3243
    %v3712 = vunpack.c.l.b16 %v3244
    %v3713 = vunpack.c.h.b16 %v3244
    %v3714 = vunpack.c.l.b16 %v3245
    %v3715 = vunpack.c.h.b16 %v3245
    %v3716 = vunpack.c.l.b16 %v3246
    %v3717 = vunpack.c.h.b16 %v3246
    %v3718 = vunpack.c.l.b16 %v3247
    %v3719 = vunpack.c.h.b16 %v3247
    %v3720 = vunpack.c.l.b16 %v3248
    %v3721 = vunpack.c.h.b16 %v3248
    %v3722 = vunpack.c.l.b16 %v3249
    %v3723 = vunpack.c.h.b16 %v3249
    %v3724 = vunpack.c.l.b16 %v3250
    %v3725 = vunpack.c.h.b16 %v3250
    %v3726 = vunpack.c.l.b16 %v3251
    %v3727 = vunpack.c.h.b16 %v3251
    %v3728 = vunpack.c.l.b16 %v3252
    %v3729 = vunpack.c.h.b16 %v3252
    %v3730 = vunpack.c.l.b16 %v3253
    %v3731 = vunpack.c.h.b16 %v3253
    %v3732 = vunpack.c.l.b16 %v3254
    %v3733 = vunpack.c.h.b16 %v3254
    %v3734 = vunpack.c.l.b16 %v3255
    %v3735 = vunpack.c.h.b16 %v3255
    %v3736 = vunpack.c.l.b16 %v3256
    %v3737 = vunpack.c.h.b16 %v3256
    %v3738 = vunpack.c.l.b16 %v3257
    %v3739 = vunpack.c.h.b16 %v3257
    %v3740 = vunpack.c.l.b16 %v3258
    %v3741 = vunpack.c.h.b16 %v3258
    %v3742 = vunpack.c.l.b16 %v3259
    %v3743 = vunpack.c.h.b16 %v3259
    %v3744 = vunpack.c.l.b16 %v3260
    %v3745 = vunpack.c.h.b16 %v3260
    %v3746 = vunpack.c.l.b16 %v3261
    %v3747 = vunpack.c.h.b16 %v3261
    %v3748 = vunpack.c.l.b16 %v3262
    %v3749 = vunpack.c.h.b16 %v3262
    %v3750 = vunpack.c.l.b16 %v3263
    %v3751 = vunpack.c.h.b16 %v3263
    %v3752 = vunpack.c.l.b16 %v3264
    %v3753 = vunpack.c.h.b16 %v3264
    %v3754 = vunpack.c.l.b16 %v3265
    %v3755 = vunpack.c.h.b16 %v3265
    %v3756 = vunpack.c.l.b16 %v3266
    %v3757 = vunpack.c.h.b16 %v3266
    %v3758 = vunpack.c.l.b16 %v3267
    %v3759 = vunpack.c.h.b16 %v3267
    %v3760 = vunpack.c.l.b16 %v3268
    %v3761 = vunpack.c.h.b16 %v3268
    %v3762 = vunpack.c.l.b16 %v3269
    %v3763 = vunpack.c.h.b16 %v3269
    %v3764 = vunpack.c.l.b16 %v3270
    %v3765 = vunpack.c.h.b16 %v3270
    %v3766 = vunpack.c.l.b16 %v3271
    %v3767 = vunpack.c.h.b16 %v3271
    %v3768 = vunpack.c.l.b16 %v3272
    %v3769 = vunpack.c.h.b16 %v3272
    %v3770 = vunpack.c.l.b16 %v3273
    %v3771 = vunpack.c.h.b16 %v3273
    %v3772 = vunpack.c.l.b16 %v3274
    %v3773 = vunpack.c.h.b16 %v3274
    %v3774 = vunpack.c.l.b16 %v3275
    %v3775 = vunpack.c.h.b16 %v3275
    %v3776 = vunpack.c.l.b16 %v3276
    %v3777 = vunpack.c.h.b16 %v3276
    %v3778 = vunpack.c.l.b16 %v3277
    %v3779 = vunpack.c.h.b16 %v3277
    %v3780 = vunpack.c.l.b16 %v3278
    %v3781 = vunpack.c.h.b16 %v3278
    %v3782 = vunpack.c.l.b16 %v3279
    %v3783 = vunpack.c.h.b16 %v3279
    %v3784 = vunpack.c.l.b16 %v3280
    %v3785 = vunpack.c.h.b16 %v3280
    %v3786 = vunpack.c.l.b16 %v3281
    %v3787 = vunpack.c.h.b16 %v3281
    %v3788 = vunpack.c.l.b16 %v3282
    %v3789 = vunpack.c.h.b16 %v3282
    %v3790 = vunpack.c.l.b16 %v3283
    %v3791 = vunpack.c.h.b16 %v3283
    %v3792 = vunpack.c.l.b16 %v3284
    %v3793 = vunpack.c.h.b16 %v3284
    %v3794 = vunpack.c.l.b16 %v3285
    %v3795 = vunpack.c.h.b16 %v3285
    %v3796 = vunpack.c.l.b16 %v3286
    %v3797 = vunpack.c.h.b16 %v3286
    %v3798 = vunpack.c.l.b16 %v3287
    %v3799 = vunpack.c.h.b16 %v3287
    %v3800 = vunpack.c.l.b16 %v3288
    %v3801 = vunpack.c.h.b16 %v3288
    %v3802 = vunpack.c.l.b16 %v3289
    %v3803 = vunpack.c.h.b16 %v3289
    %v3804 = vunpack.c.l.b16 %v3290
    %v3805 = vunpack.c.h.b16 %v3290
    %v3806 = vunpack.c.l.b16 %v3291
    %v3807 = vunpack.c.h.b16 %v3291
    %v3808 = vunpack.c.l.b16 %v3292
    %v3809 = vunpack.c.h.b16 %v3292
    %v3810 = vunpack.c.l.b16 %v3293
    %v3811 = vunpack.c.h.b16 %v3293
    %v3812 = vunpack.c.l.b16 %v3294
    %v3813 = vunpack.c.h.b16 %v3294
    %v3814 = vunpack.c.l.b16 %v3295
    %v3815 = vunpack.c.h.b16 %v3295
    %v3816 = vunpack.c.l.b16 %v3296
    %v3817 = vunpack.c.h.b16 %v3296
    %v3818 = vunpack.c.l.b16 %v3297
    %v3819 = vunpack.c.h.b16 %v3297
    %v3820 = vunpack.c.l.b16 %v3298
    %v3821 = vunpack.c.h.b16 %v3298
    %v3822 = vunpack.c.l.b16 %v3299
    %v3823 = vunpack.c.h.b16 %v3299
    %v3824 = vunpack.c.l.b16 %v3300
    %v3825 = vunpack.c.h.b16 %v3300
    %v3826 = vunpack.c.l.b16 %v3301
    %v3827 = vunpack.c.h.b16 %v3301
    %v3828 = vunpack.c.l.b16 %v3302
    %v3829 = vunpack.c.h.b16 %v3302
    %v3830 = vunpack.c.l.b16 %v3303
    %v3831 = vunpack.c.h.b16 %v3303
    %v3832 = vunpack.c.l.b16 %v3304
    %v3833 = vunpack.c.h.b16 %v3304
    %v3834 = vunpack.c.l.b16 %v3305
    %v3835 = vunpack.c.h.b16 %v3305
    %v3836 = vunpack.c.l.b16 %v3306
    %v3837 = vunpack.c.h.b16 %v3306
    %v3838 = vunpack.c.l.b16 %v3307
    %v3839 = vunpack.c.h.b16 %v3307
    %v3840 = vunpack.c.l.b16 %v3308
    %v3841 = vunpack.c.h.b16 %v3308
    %v3842 = vunpack.c.l.b16 %v3309
    %v3843 = vunpack.c.h.b16 %v3309
    %v3844 = vunpack.c.l.b16 %v3310
    %v3845 = vunpack.c.h.b16 %v3310
    %v3846 = vunpack.c.l.b16 %v3311
    %v3847 = vunpack.c.h.b16 %v3311
    %v3848 = vunpack.c.l.b16 %v3312
    %v3849 = vunpack.c.h.b16 %v3312
    %v3850 = vunpack.c.l.b16 %v3313
    %v3851 = vunpack.c.h.b16 %v3313
    %v3852 = vunpack.c.l.b16 %v3314
    %v3853 = vunpack.c.h.b16 %v3314
    %v3854 = vunpack.c.l.b16 %v3315
    %v3855 = vunpack.c.h.b16 %v3315
    %v3856 = vunpack.c.l.b16 %v3316
    %v3857 = vunpack.c.h.b16 %v3316
    %v3858 = vunpack.c.l.b16 %v3317
    %v3859 = vunpack.c.h.b16 %v3317
    %v3860 = vunpack.c.l.b16 %v3318
    %v3861 = vunpack.c.h.b16 %v3318
    %v3862 = vunpack.c.l.b16 %v3319
    %v3863 = vunpack.c.h.b16 %v3319
    %v3864 = vunpack.c.l.b16 %v3320
    %v3865 = vunpack.c.h.b16 %v3320
    %v3866 = vunpack.c.l.b16 %v3321
    %v3867 = vunpack.c.h.b16 %v3321
    %v3868 = vunpack.c.l.b16 %v3322
    %v3869 = vunpack.c.h.b16 %v3322
    %v3870 = vunpack.c.l.b16 %v3323
    %v3871 = vunpack.c.h.b16 %v3323
    %v3872 = vunpack.c.l.b16 %v3324
    %v3873 = vunpack.c.h.b16 %v3324
    %v3874 = vunpack.c.l.b16 %v3325
    %v3875 = vunpack.c.h.b16 %v3325
    %v3876 = vunpack.c.l.b16 %v3326
    %v3877 = vunpack.c.h.b16 %v3326
    %v3878 = vunpack.c.l.b16 %v3327
    %v3879 = vunpack.c.h.b16 %v3327
    %v3880 = vunpack.c.l.b16 %v3328
    %v3881 = vunpack.c.h.b16 %v3328
    %v3882 = vunpack.c.l.b16 %v3329
    %v3883 = vunpack.c.h.b16 %v3329
    %v3884 = vunpack.c.l.b16 %v3330
    %v3885 = vunpack.c.h.b16 %v3330
    %v3886 = vunpack.c.l.b16 %v3331
    %v3887 = vunpack.c.h.b16 %v3331
    %v3888 = vunpack.c.l.b16 %v3332
    %v3889 = vunpack.c.h.b16 %v3332
    %v3890 = vunpack.c.l.b16 %v3333
    %v3891 = vunpack.c.h.b16 %v3333
    %v3892 = vunpack.c.l.b16 %v3334
    %v3893 = vunpack.c.h.b16 %v3334
    %v3894 = vunpack.c.l.b16 %v3335
    %v3895 = vunpack.c.h.b16 %v3335
    %v3896 = vunpack.c.l.b16 %v3336
    %v3897 = vunpack.c.h.b16 %v3336
    %v3898 = vunpack.c.l.b16 %v3337
    %v3899 = vunpack.c.h.b16 %v3337
    %v3900 = vunpack.c.l.b16 %v3338
    %v3901 = vunpack.c.h.b16 %v3338
    %v3902 = vunpack.c.l.b16 %v3339
    %v3903 = vunpack.c.h.b16 %v3339
    %v3904 = vunpack.c.l.b16 %v3340
    %v3905 = vunpack.c.h.b16 %v3340
    %v3906 = vunpack.c.l.b16 %v3341
    %v3907 = vunpack.c.h.b16 %v3341
    %v3908 = vunpack.c.l.b16 %v3342
    %v3909 = vunpack.c.h.b16 %v3342
    %v3910 = vunpack.c.l.b16 %v3343
    %v3911 = vunpack.c.h.b16 %v3343
    %v3912 = vunpack.c.l.b16 %v3344
    %v3913 = vunpack.c.h.b16 %v3344
    %v3914 = vunpack.c.l.b16 %v3345
    %v3915 = vunpack.c.h.b16 %v3345
    %v3916 = vunpack.c.l.b16 %v3346
    %v3917 = vunpack.c.h.b16 %v3346
    %v3918 = vunpack.c.l.b16 %v3347
    %v3919 = vunpack.c.h.b16 %v3347
    %v3920 = vunpack.c.l.b16 %v3348
    %v3921 = vunpack.c.h.b16 %v3348
    %v3922 = vunpack.c.l.b16 %v3349
    %v3923 = vunpack.c.h.b16 %v3349
    %v3924 = vunpack.c.l.b16 %v3350
    %v3925 = vunpack.c.h.b16 %v3350
    %v3926 = vunpack.c.l.b16 %v3351
    %v3927 = vunpack.c.h.b16 %v3351
    %v3928 = vunpack.c.l.b16 %v3352
    %v3929 = vunpack.c.h.b16 %v3352
    %v3930 = vunpack.c.l.b16 %v3353
    %v3931 = vunpack.c.h.b16 %v3353
    %v3932 = vunpack.c.l.b16 %v3354
    %v3933 = vunpack.c.h.b16 %v3354
    %v3934 = vunpack.c.l.b16 %v3355
    %v3935 = vunpack.c.h.b16 %v3355
    %v3936 = vunpack.c.l.b16 %v3356
    %v3937 = vunpack.c.h.b16 %v3356
    %v3938 = vunpack.c.l.b16 %v3357
    %v3939 = vunpack.c.h.b16 %v3357
    %v3940 = vunpack.c.l.b16 %v3358
    %v3941 = vunpack.c.h.b16 %v3358
    %v3942 = vunpack.c.l.b16 %v3359
    %v3943 = vunpack.c.h.b16 %v3359
    %v3944 = vunpack.c.l.b16 %v3360
    %v3945 = vunpack.c.h.b16 %v3360
    %v3946 = vunpack.c.l.b16 %v3361
    %v3947 = vunpack.c.h.b16 %v3361
    %v3948 = vunpack.c.l.b16 %v3362
    %v3949 = vunpack.c.h.b16 %v3362
    %v3950 = vunpack.c.l.b16 %v3363
    %v3951 = vunpack.c.h.b16 %v3363
    %v3952 = vunpack.c.l.b16 %v3364
    %v3953 = vunpack.c.h.b16 %v3364
    %v3954 = vunpack.c.l.b16 %v3365
    %v3955 = vunpack.c.h.b16 %v3365
    %v3956 = vunpack.c.l.b16 %v3366
    %v3957 = vunpack.c.h.b16 %v3366
    %v3958 = vunpack.c.l.b16 %v3367
    %v3959 = vunpack.c.h.b16 %v3367
    %v3960 = vunpack.c.l.b16 %v3368
    %v3961 = vunpack.c.h.b16 %v3368
    %v3962 = vunpack.c.l.b16 %v3369
    %v3963 = vunpack.c.h.b16 %v3369
    %v3964 = vunpack.c.l.b16 %v3370
    %v3965 = vunpack.c.h.b16 %v3370
    %v3966 = vunpack.c.l.b16 %v3371
    %v3967 = vunpack.c.h.b16 %v3371
    %v3968 = vunpack.c.l.b16 %v3372
    %v3969 = vunpack.c.h.b16 %v3372
    %v3970 = vunpack.c.l.b16 %v3373
    %v3971 = vunpack.c.h.b16 %v3373
    %v3972 = vunpack.c.l.b16 %v3374
    %v3973 = vunpack.c.h.b16 %v3374
    %v3974 = vunpack.c.l.b16 %v3375
    %v3975 = vunpack.c.h.b16 %v3375
    %v3976 = vunpack.c.l.b16 %v3376
    %v3977 = vunpack.c.h.b16 %v3376
    %v3978 = vunpack.c.l.b16 %v3377
    %v3979 = vunpack.c.h.b16 %v3377
    %v3980 = vunpack.c.l.b16 %v3378
    %v3981 = vunpack.c.h.b16 %v3378
    %v3982 = vunpack.c.l.b16 %v3379
    %v3983 = vunpack.c.h.b16 %v3379
    %v3984 = vunpack.c.l.b16 %v3380
    %v3985 = vunpack.c.h.b16 %v3380
    %v3986 = vunpack.c.l.b16 %v3381
    %v3987 = vunpack.c.h.b16 %v3381
    %v3988 = vunpack.c.l.b16 %v3382
    %v3989 = vunpack.c.h.b16 %v3382
    %v3990 = vunpack.c.l.b16 %v3383
    %v3991 = vunpack.c.h.b16 %v3383
    %v3992 = vunpack.c.l.b16 %v3384
    %v3993 = vunpack.c.h.b16 %v3384
    %v3994 = vunpack.c.l.b16 %v3385
    %v3995 = vunpack.c.h.b16 %v3385
    %v3996 = vpack.c.b16 %v3608, %v3604
    %v3997 = vpack.c.b16 %v3609, %v3605
    %v3998 = vpack.c.b16 %v3610, %v3606
    %v3999 = vpack.c.b16 %v3611, %v3607
    %v4000 = vpack.c.b16 %v3616, %v3612
    %v4001 = vpack.c.b16 %v3617, %v3613
    %v4002 = vpack.c.b16 %v3618, %v3614
    %v4003 = vpack.c.b16 %v3619, %v3615
    %v4004 = vpack.c.b16 %v3624, %v3620
    %v4005 = vpack.c.b16 %v3625, %v3621
    %v4006 = vpack.c.b16 %v3626, %v3622
    %v4007 = vpack.c.b16 %v3627, %v3623
    %v4008 = vpack.c.b16 %v3632, %v3628
    %v4009 = vpack.c.b16 %v3633, %v3629
    %v4010 = vpack.c.b16 %v3634, %v3630
    %v4011 = vpack.c.b16 %v3635, %v3631
    %v4012 = vpack.c.b16 %v3640, %v3636
    %v4013 = vpack.c.b16 %v3641, %v3637
    %v4014 = vpack.c.b16 %v3642, %v3638
    %v4015 = vpack.c.b16 %v3643, %v3639
    %v4016 = vpack.c.b16 %v3648, %v3644
    %v4017 = vpack.c.b16 %v3649, %v3645
    %v4018 = vpack.c.b16 %v3650, %v3646
    %v4019 = vpack.c.b16 %v3651, %v3647
    %v4020 = vpack.c.b16 %v3656, %v3652
    %v4021 = vpack.c.b16 %v3657, %v3653
    %v4022 = vpack.c.b16 %v3658, %v3654
    %v4023 = vpack.c.b16 %v3659, %v3655
    %v4024 = vpack.c.b16 %v3664, %v3660
    %v4025 = vpack.c.b16 %v3665, %v3661
    %v4026 = vpack.c.b16 %v3666, %v3662
    %v4027 = vpack.c.b16 %v3667, %v3663
    %v4028 = vpack.c.b16 %v3672, %v3668
    %v4029 = vpack.c.b16 %v3673, %v3669
    %v4030 = vpack.c.b16 %v3674, %v3670
    %v4031 = vpack.c.b16 %v3675, %v3671
    %v4032 = vpack.c.b16 %v3680, %v3676
    %v4033 = vpack.c.b16 %v3681, %v3677
    %v4034 = vpack.c.b16 %v3682, %v3678
    %v4035 = vpack.c.b16 %v3683, %v3679
    %v4036 = vpack.c.b16 %v3688, %v3684
    %v4037 = vpack.c.b16 %v3689, %v3685
    %v4038 = vpack.c.b16 %v3690, %v3686
    %v4039 = vpack.c.b16 %v3691, %v3687
    %v4040 = vpack.c.b16 %v3696, %v3692
    %v4041 = vpack.c.b16 %v3697, %v3693
    %v4042 = vpack.c.b16 %v3698, %v3694
    %v4043 = vpack.c.b16 %v3699, %v3695
    %v4044 = vpack.c.b16 %v3704, %v3700
    %v4045 = vpack.c.b16 %v3705, %v3701
    %v4046 = vpack.c.b16 %v3706, %v3702
    %v4047 = vpack.c.b16 %v3707, %v3703
    %v4048 = vpack.c.b16 %v3712, %v3708
    %v4049 = vpack.c.b16 %v3713, %v3709
    %v4050 = vpack.c.b16 %v3714, %v3710
    %v4051 = vpack.c.b16 %v3715, %v3711
    %v4052 = vpack.c.b16 %v3720, %v3716
    %v4053 = vpack.c.b16 %v3721, %v3717
    %v4054 = vpack.c.b16 %v3722, %v3718
    %v4055 = vpack.c.b16 %v3723, %v3719
    %v4056 = vpack.c.b16 %v3728, %v3724
    %v4057 = vpack.c.b16 %v3729, %v3725
    %v4058 = vpack.c.b16 %v3730, %v3726
    %v4059 = vpack.c.b16 %v3731, %v3727
    %v4060 = vpack.c.b16 %v3736, %v3732
    %v4061 = vpack.c.b16 %v3737, %v3733
    %v4062 = vpack.c.b16 %v3738, %v3734
    %v4063 = vpack.c.b16 %v3739, %v3735
    %v4064 = vpack.c.b16 %v3744, %v3740
    %v4065 = vpack.c.b16 %v3745, %v3741
    %v4066 = vpack.c.b16 %v3746, %v3742
    %v4067 = vpack.c.b16 %v3747, %v3743
    %v4068 = vpack.c.b16 %v3752, %v3748
    %v4069 = vpack.c.b16 %v3753, %v3749
    %v4070 = vpack.c.b16 %v3754, %v3750
    %v4071 = vpack.c.b16 %v3755, %v3751
    %v4072 = vpack.c.b16 %v3760, %v3756
    %v4073 = vpack.c.b16 %v3761, %v3757
    %v4074 = vpack.c.b16 %v3762, %v3758
    %v4075 = vpack.c.b16 %v3763, %v3759
    %v4076 = vpack.c.b16 %v3768, %v3764
    %v4077 = vpack.c.b16 %v3769, %v3765
    %v4078 = vpack.c.b16 %v3770, %v3766
    %v4079 = vpack.c.b16 %v3771, %v3767
    %v4080 = vpack.c.b16 %v3776, %v3772
    %v4081 = vpack.c.b16 %v3777, %v3773
    %v4082 = vpack.c.b16 %v3778, %v3774
    %v4083 = vpack.c.b16 %v3779, %v3775
    %v4084 = vpack.c.b16 %v3784, %v3780
    %v4085 = vpack.c.b16 %v3785, %v3781
    %v4086 = vpack.c.b16 %v3786, %v3782
    %v4087 = vpack.c.b16 %v3787, %v3783
    %v4088 = vpack.c.b16 %v3792, %v3788
    %v4089 = vpack.c.b16 %v3793, %v3789
    %v4090 = vpack.c.b16 %v3794, %v3790
    %v4091 = vpack.c.b16 %v3795, %v3791
    %v4092 = vpack.c.b16 %v3800, %v3796
    %v4093 = vpack.c.b16 %v3801, %v3797
    %v4094 = vpack.c.b16 %v3802, %v3798
    %v4095 = vpack.c.b16 %v3803, %v3799
    %v4096 = vpack.c.b16 %v3808, %v3804
    %v4097 = vpack.c.b16 %v3809, %v3805
    %v4098 = vpack.c.b16 %v3810, %v3806
    %v4099 = vpack.c.b16 %v3811, %v3807
    %v4100 = vpack.c.b16 %v3816, %v3812
    %v4101 = vpack.c.b16 %v3817, %v3813
    %v4102 = vpack.c.b16 %v3818, %v3814
    %v4103 = vpack.c.b16 %v3819, %v3815
    %v4104 = vpack.c.b16 %v3824, %v3820
    %v4105 = vpack.c.b16 %v3825, %v3821
    %v4106 = vpack.c.b16 %v3826, %v3822
    %v4107 = vpack.c.b16 %v3827, %v3823
    %v4108 = vpack.c.b16 %v3832, %v3828
    %v4109 = vpack.c.b16 %v3833, %v3829
    %v4110 = vpack.c.b16 %v3834, %v3830
    %v4111 = vpack.c.b16 %v3835, %v3831
    %v4112 = vpack.c.b16 %v3840, %v3836
    %v4113 = vpack.c.b16 %v3841, %v3837
    %v4114 = vpack.c.b16 %v3842, %v3838
    %v4115 = vpack.c.b16 %v3843, %v3839
    %v4116 = vpack.c.b16 %v3848, %v3844
    %v4117 = vpack.c.b16 %v3849, %v3845
    %v4118 = vpack.c.b16 %v3850, %v3846
    %v4119 = vpack.c.b16 %v3851, %v3847
    %v4120 = vpack.c.b16 %v3856, %v3852
    %v4121 = vpack.c.b16 %v3857, %v3853
    %v4122 = vpack.c.b16 %v3858, %v3854
    %v4123 = vpack.c.b16 %v3859, %v3855
    %v4124 = vpack.c.b16 %v3864, %v3860
    %v4125 = vpack.c.b16 %v3865, %v3861
    %v4126 = vpack.c.b16 %v3866, %v3862
    %v4127 = vpack.c.b16 %v3867, %v3863
    %v4128 = vpack.c.b16 %v3872, %v3868
    %v4129 = vpack.c.b16 %v3873, %v3869
    %v4130 = vpack.c.b16 %v3874, %v3870
    %v4131 = vpack.c.b16 %v3875, %v3871
    %v4132 = vpack.c.b16 %v3880, %v3876
    %v4133 = vpack.c.b16 %v3881, %v3877
    %v4134 = vpack.c.b16 %v3882, %v3878
    %v4135 = vpack.c.b16 %v3883, %v3879
    %v4136 = vpack.c.b16 %v3888, %v3884
    %v4137 = vpack.c.b16 %v3889, %v3885
    %v4138 = vpack.c.b16 %v3890, %v3886
    %v4139 = vpack.c.b16 %v3891, %v3887
    %v4140 = vpack.c.b16 %v3896, %v3892
    %v4141 = vpack.c.b16 %v3897, %v3893
    %v4142 = vpack.c.b16 %v3898, %v3894
    %v4143 = vpack.c.b16 %v3899, %v3895
    %v4144 = vpack.c.b16 %v3904, %v3900
    %v4145 = vpack.c.b16 %v3905, %v3901
    %v4146 = vpack.c.b16 %v3906, %v3902
    %v4147 = vpack.c.b16 %v3907, %v3903
    %v4148 = vpack.c.b16 %v3912, %v3908
    %v4149 = vpack.c.b16 %v3913, %v3909
    %v4150 = vpack.c.b16 %v3914, %v3910
    %v4151 = vpack.c.b16 %v3915, %v3911
    %v4152 = vpack.c.b16 %v3920, %v3916
    %v4153 = vpack.c.b16 %v3921, %v3917
    %v4154 = vpack.c.b16 %v3922, %v3918
    %v4155 = vpack.c.b16 %v3923, %v3919
    %v4156 = vpack.c.b16 %v3928, %v3924
    %v4157 = vpack.c.b16 %v3929, %v3925
    %v4158 = vpack.c.b16 %v3930, %v3926
    %v4159 = vpack.c.b16 %v3931, %v3927
    %v4160 = vpack.c.b16 %v3936, %v3932
    %v4161 = vpack.c.b16 %v3937, %v3933
    %v4162 = vpack.c.b16 %v3938, %v3934
    %v4163 = vpack.c.b16 %v3939, %v3935
    %v4164 = vpack.c.b16 %v3944, %v3940
    %v4165 = vpack.c.b16 %v3945, %v3941
    %v4166 = vpack.c.b16 %v3946, %v3942
    %v4167 = vpack.c.b16 %v3947, %v3943
    %v4168 = vpack.c.b16 %v3952, %v3948
    %v4169 = vpack.c.b16 %v3953, %v3949
    %v4170 = vpack.c.b16 %v3954, %v3950
    %v4171 = vpack.c.b16 %v3955, %v3951
    %v4172 = vpack.c.b16 %v3960, %v3956
    %v4173 = vpack.c.b16 %v3961, %v3957
    %v4174 = vpack.c.b16 %v3962, %v3958
    %v4175 = vpack.c.b16 %v3963, %v3959
    %v4176 = vpack.c.b16 %v3968, %v3964
    %v4177 = vpack.c.b16 %v3969, %v3965
    %v4178 = vpack.c.b16 %v3970, %v3966
    %v4179 = vpack.c.b16 %v3971, %v3967
    %v4180 = vpack.c.b16 %v3976, %v3972
    %v4181 = vpack.c.b16 %v3977, %v3973
    %v4182 = vpack.c.b16 %v3978, %v3974
    %v4183 = vpack.c.b16 %v3979, %v3975
    %v4184 = vpack.c.b16 %v3984, %v3980
    %v4185 = vpack.c.b16 %v3985, %v3981
    %v4186 = vpack.c.b16 %v3986, %v3982
    %v4187 = vpack.c.b16 %v3987, %v3983
    %v4188 = vpack.c.b16 %v3992, %v3988
    %v4189 = vpack.c.b16 %v3993, %v3989
    %v4190 = vpack.c.b16 %v3994, %v3990
    %v4191 = vpack.c.b16 %v3995, %v3991
    %vm4388 = vcmask 130048
    %v4390 = vsel %vm4388, %v3084, 0
    %v4393 = vsel %vm4388, %v3091, 0
    %v4396 = vsel %vm4388, %v3098, 0
    %v4399 = vsel %vm4388, %v3105, 0
    %v4402 = vsel %vm4388, %v3112, 0
    %v4405 = vsel %vm4388, %v3119, 0
    %v4408 = vsel %vm4388, %v3126, 0
    %v4411 = vsel %vm4388, %v3133, 0
    %v4414 = vsel %vm4388, %v3140, 0
    %v4417 = vsel %vm4388, %v3147, 0
    %v4420 = vsel %vm4388, %v3154, 0
    %v4423 = vsel %vm4388, %v3161, 0
    %v4426 = vsel %vm4388, %v3168, 0
    %v4429 = vsel %vm4388, %v3175, 0
    %v4432 = vsel %vm4388, %v3182, 0
    %v4435 = vsel %vm4388, %v3189, 0
    %4437 = vmatprep.subr.bf16.mxu0 %v4025
    %4438 = vmatpush1.bf16.msra.mxu0 %v4024
    %4439 = vmatprep.subr.bf16.mxu0 %v4021
    %4440 = vmatpush1.bf16.msra.mxu0 %v4020
    %4441 = vmatprep.subr.bf16.mxu0 %v4017
    %4442 = vmatpush1.bf16.msra.mxu0 %v4016
    %4443 = vmatprep.subr.bf16.mxu0 %v4013
    %4444 = vmatpush1.bf16.msra.mxu0 %v4012
    %4445 = vmatprep.subr.bf16.mxu0 %v4009
    %4446 = vmatpush1.bf16.msra.mxu0 %v4008
    %4447 = vmatprep.subr.bf16.mxu0 %v4005
    %4448 = vmatpush1.bf16.msra.mxu0 %v4004
    %4449 = vmatprep.subr.bf16.mxu0 %v4001
    %4450 = vmatpush1.bf16.msra.mxu0 %v4000
    %4451 = vmatprep.subr.bf16.mxu0 %v3997
    %4452 = vmatpush1.bf16.msra.mxu0 %v3996
    %4453 = vmatprep.subr.bf16.mxu0 %v4057
    %4454 = vmatpush2.bf16.msra.mxu0 %v4056
    %4455 = vmatprep.subr.bf16.mxu0 %v4053
    %4456 = vmatpush2.bf16.msra.mxu0 %v4052
    %4457 = vmatprep.subr.bf16.mxu0 %v4049
    %4458 = vmatpush2.bf16.msra.mxu0 %v4048
    %4459 = vmatprep.subr.bf16.mxu0 %v4045
    %4460 = vmatpush2.bf16.msra.mxu0 %v4044
    %4461 = vmatprep.subr.bf16.mxu0 %v4041
    %4462 = vmatpush2.bf16.msra.mxu0 %v4040
    %4463 = vmatprep.subr.bf16.mxu0 %v4037
    %4464 = vmatpush2.bf16.msra.mxu0 %v4036
    %4465 = vmatprep.subr.bf16.mxu0 %v4033
    %4466 = vmatpush2.bf16.msra.mxu0 %v4032
    %4467 = vmatprep.subr.bf16.mxu0 %v4029
    %4468 = vmatpush2.bf16.msra.mxu0 %v4028
    %4469 = vmatprep.mubr.bf16.mxu0 %v3079
    %4470 = vmatmul.mubr.bf16.gmra.mxu0 %v3078
    %v4471 = vpop.f32.mrf.mxu0
    %v4472 = vadd.f32 %v3391, %v4471
    %v4473 = vpop.f32.mrf.mxu0
    %v4474 = vadd.f32 %v3395, %v4473
    %v4475 = vpop.f32.mrf.mxu0
    %v4476 = vadd.f32 %v3391, %v4475
    %v4477 = vpop.f32.mrf.mxu0
    %v4478 = vadd.f32 %v3395, %v4477
    %4479 = vmatprep.mubr.bf16.mxu0 %v3086
    %4480 = vmatmul.mubr.bf16.gmra.mxu0 %v3085
    %v4481 = vpop.f32.mrf.mxu0
    %v4482 = vadd.f32 %v3391, %v4481
    %v4483 = vpop.f32.mrf.mxu0
    %v4484 = vadd.f32 %v3395, %v4483
    %v4485 = vpop.f32.mrf.mxu0
    %v4486 = vadd.f32 %v3391, %v4485
    %v4487 = vpop.f32.mrf.mxu0
    %v4488 = vadd.f32 %v3395, %v4487
    %4489 = vmatprep.mubr.bf16.mxu0 %v3093
    %4490 = vmatmul.mubr.bf16.gmra.mxu0 %v3092
    %v4491 = vpop.f32.mrf.mxu0
    %v4492 = vadd.f32 %v3391, %v4491
    %v4493 = vpop.f32.mrf.mxu0
    %v4494 = vadd.f32 %v3395, %v4493
    %v4495 = vpop.f32.mrf.mxu0
    %v4496 = vadd.f32 %v3391, %v4495
    %v4497 = vpop.f32.mrf.mxu0
    %v4498 = vadd.f32 %v3395, %v4497
    %4499 = vmatprep.mubr.bf16.mxu0 %v3100
    %4500 = vmatmul.mubr.bf16.gmra.mxu0 %v3099
    %v4501 = vpop.f32.mrf.mxu0
    %v4502 = vadd.f32 %v3391, %v4501
    %v4503 = vpop.f32.mrf.mxu0
    %v4504 = vadd.f32 %v3395, %v4503
    %v4505 = vpop.f32.mrf.mxu0
    %v4506 = vadd.f32 %v3391, %v4505
    %v4507 = vpop.f32.mrf.mxu0
    %v4508 = vadd.f32 %v3395, %v4507
    %4509 = vmatprep.mubr.bf16.mxu0 %v3107
    %4510 = vmatmul.mubr.bf16.gmra.mxu0 %v3106
    %v4511 = vpop.f32.mrf.mxu0
    %v4512 = vadd.f32 %v3391, %v4511
    %v4513 = vpop.f32.mrf.mxu0
    %v4514 = vadd.f32 %v3395, %v4513
    %v4515 = vpop.f32.mrf.mxu0
    %v4516 = vadd.f32 %v3391, %v4515
    %v4517 = vpop.f32.mrf.mxu0
    %v4518 = vadd.f32 %v3395, %v4517
    %4519 = vmatprep.mubr.bf16.mxu0 %v3114
    %4520 = vmatmul.mubr.bf16.gmra.mxu0 %v3113
    %v4521 = vpop.f32.mrf.mxu0
    %v4522 = vadd.f32 %v3391, %v4521
    %v4523 = vpop.f32.mrf.mxu0
    %v4524 = vadd.f32 %v3395, %v4523
    %v4525 = vpop.f32.mrf.mxu0
    %v4526 = vadd.f32 %v3391, %v4525
    %v4527 = vpop.f32.mrf.mxu0
    %v4528 = vadd.f32 %v3395, %v4527
    %4529 = vmatprep.mubr.bf16.mxu0 %v3121
    %4530 = vmatmul.mubr.bf16.gmra.mxu0 %v3120
    %v4531 = vpop.f32.mrf.mxu0
    %v4532 = vadd.f32 %v3391, %v4531
    %v4533 = vpop.f32.mrf.mxu0
    %v4534 = vadd.f32 %v3395, %v4533
    %v4535 = vpop.f32.mrf.mxu0
    %v4536 = vadd.f32 %v3391, %v4535
    %v4537 = vpop.f32.mrf.mxu0
    %v4538 = vadd.f32 %v3395, %v4537
    %4539 = vmatprep.mubr.bf16.mxu0 %v3128
    %4540 = vmatmul.mubr.bf16.gmra.mxu0 %v3127
    %v4541 = vpop.f32.mrf.mxu0
    %v4542 = vadd.f32 %v3391, %v4541
    %v4543 = vpop.f32.mrf.mxu0
    %v4544 = vadd.f32 %v3395, %v4543
    %v4545 = vpop.f32.mrf.mxu0
    %v4546 = vadd.f32 %v3391, %v4545
    %v4547 = vpop.f32.mrf.mxu0
    %v4548 = vadd.f32 %v3395, %v4547
    %4549 = vmatprep.mubr.bf16.mxu0 %v3135
    %4550 = vmatmul.mubr.bf16.gmra.mxu0 %v3134
    %v4551 = vpop.f32.mrf.mxu0
    %v4552 = vadd.f32 %v3391, %v4551
    %v4553 = vpop.f32.mrf.mxu0
    %v4554 = vadd.f32 %v3395, %v4553
    %v4555 = vpop.f32.mrf.mxu0
    %v4556 = vadd.f32 %v3391, %v4555
    %v4557 = vpop.f32.mrf.mxu0
    %v4558 = vadd.f32 %v3395, %v4557
    %4559 = vmatprep.mubr.bf16.mxu0 %v3142
    %4560 = vmatmul.mubr.bf16.gmra.mxu0 %v3141
    %v4561 = vpop.f32.mrf.mxu0
    %v4562 = vadd.f32 %v3391, %v4561
    %v4563 = vpop.f32.mrf.mxu0
    %v4564 = vadd.f32 %v3395, %v4563
    %v4565 = vpop.f32.mrf.mxu0
    %v4566 = vadd.f32 %v3391, %v4565
    %v4567 = vpop.f32.mrf.mxu0
    %v4568 = vadd.f32 %v3395, %v4567
    %4569 = vmatprep.mubr.bf16.mxu0 %v3149
    %4570 = vmatmul.mubr.bf16.gmra.mxu0 %v3148
    %v4571 = vpop.f32.mrf.mxu0
    %v4572 = vadd.f32 %v3391, %v4571
    %v4573 = vpop.f32.mrf.mxu0
    %v4574 = vadd.f32 %v3395, %v4573
    %v4575 = vpop.f32.mrf.mxu0
    %v4576 = vadd.f32 %v3391, %v4575
    %v4577 = vpop.f32.mrf.mxu0
    %v4578 = vadd.f32 %v3395, %v4577
    %4579 = vmatprep.mubr.bf16.mxu0 %v3156
    %4580 = vmatmul.mubr.bf16.gmra.mxu0 %v3155
    %v4581 = vpop.f32.mrf.mxu0
    %v4582 = vadd.f32 %v3391, %v4581
    %v4583 = vpop.f32.mrf.mxu0
    %v4584 = vadd.f32 %v3395, %v4583
    %v4585 = vpop.f32.mrf.mxu0
    %v4586 = vadd.f32 %v3391, %v4585
    %v4587 = vpop.f32.mrf.mxu0
    %v4588 = vadd.f32 %v3395, %v4587
    %4589 = vmatprep.mubr.bf16.mxu0 %v3163
    %4590 = vmatmul.mubr.bf16.gmra.mxu0 %v3162
    %v4591 = vpop.f32.mrf.mxu0
    %v4592 = vadd.f32 %v3391, %v4591
    %v4593 = vpop.f32.mrf.mxu0
    %v4594 = vadd.f32 %v3395, %v4593
    %v4595 = vpop.f32.mrf.mxu0
    %v4596 = vadd.f32 %v3391, %v4595
    %v4597 = vpop.f32.mrf.mxu0
    %v4598 = vadd.f32 %v3395, %v4597
    %4599 = vmatprep.mubr.bf16.mxu0 %v3170
    %4600 = vmatmul.mubr.bf16.gmra.mxu0 %v3169
    %v4601 = vpop.f32.mrf.mxu0
    %v4602 = vadd.f32 %v3391, %v4601
    %v4603 = vpop.f32.mrf.mxu0
    %v4604 = vadd.f32 %v3395, %v4603
    %v4605 = vpop.f32.mrf.mxu0
    %v4606 = vadd.f32 %v3391, %v4605
    %v4607 = vpop.f32.mrf.mxu0
    %v4608 = vadd.f32 %v3395, %v4607
    %4609 = vmatprep.mubr.bf16.mxu0 %v3177
    %4610 = vmatmul.mubr.bf16.gmra.mxu0 %v3176
    %v4611 = vpop.f32.mrf.mxu0
    %v4612 = vadd.f32 %v3391, %v4611
    %v4613 = vpop.f32.mrf.mxu0
    %v4614 = vadd.f32 %v3395, %v4613
    %v4615 = vpop.f32.mrf.mxu0
    %v4616 = vadd.f32 %v3391, %v4615
    %v4617 = vpop.f32.mrf.mxu0
    %v4618 = vadd.f32 %v3395, %v4617
    %4619 = vmatprep.mubr.bf16.mxu0 %v3184
    %4620 = vmatmul.mubr.bf16.gmra.mxu0 %v3183
    %v4621 = vpop.f32.mrf.mxu0
    %v4622 = vadd.f32 %v3391, %v4621
    %v4623 = vpop.f32.mrf.mxu0
    %v4624 = vadd.f32 %v3395, %v4623
    %v4625 = vpop.f32.mrf.mxu0
    %v4626 = vadd.f32 %v3391, %v4625
    %v4627 = vpop.f32.mrf.mxu0
    %v4628 = vadd.f32 %v3395, %v4627
    %4629 = vdwg.mxu0
    %4630 = vmatprep.subr.bf16.mxu0 %v4089
    %4631 = vmatpush1.bf16.msra.mxu0 %v4088
    %4632 = vmatprep.subr.bf16.mxu0 %v4085
    %4633 = vmatpush1.bf16.msra.mxu0 %v4084
    %4634 = vmatprep.subr.bf16.mxu0 %v4081
    %4635 = vmatpush1.bf16.msra.mxu0 %v4080
    %4636 = vmatprep.subr.bf16.mxu0 %v4077
    %4637 = vmatpush1.bf16.msra.mxu0 %v4076
    %4638 = vmatprep.subr.bf16.mxu0 %v4073
    %4639 = vmatpush1.bf16.msra.mxu0 %v4072
    %4640 = vmatprep.subr.bf16.mxu0 %v4069
    %4641 = vmatpush1.bf16.msra.mxu0 %v4068
    %4642 = vmatprep.subr.bf16.mxu0 %v4065
    %4643 = vmatpush1.bf16.msra.mxu0 %v4064
    %4644 = vmatprep.subr.bf16.mxu0 %v4061
    %4645 = vmatpush1.bf16.msra.mxu0 %v4060
    %4646 = vmatprep.subr.bf16.mxu0 %v4121
    %4647 = vmatpush2.bf16.msra.mxu0 %v4120
    %4648 = vmatprep.subr.bf16.mxu0 %v4117
    %4649 = vmatpush2.bf16.msra.mxu0 %v4116
    %4650 = vmatprep.subr.bf16.mxu0 %v4113
    %4651 = vmatpush2.bf16.msra.mxu0 %v4112
    %4652 = vmatprep.subr.bf16.mxu0 %v4109
    %4653 = vmatpush2.bf16.msra.mxu0 %v4108
    %4654 = vmatprep.subr.bf16.mxu0 %v4105
    %4655 = vmatpush2.bf16.msra.mxu0 %v4104
    %4656 = vmatprep.subr.bf16.mxu0 %v4101
    %4657 = vmatpush2.bf16.msra.mxu0 %v4100
    %4658 = vmatprep.subr.bf16.mxu0 %v4097
    %4659 = vmatpush2.bf16.msra.mxu0 %v4096
    %4660 = vmatprep.subr.bf16.mxu0 %v4093
    %4661 = vmatpush2.bf16.msra.mxu0 %v4092
    %4662 = vmatprep.mubr.bf16.mxu0 %v3081
    %4663 = vmatmul.mubr.bf16.gmra.mxu0 %v3080
    %v4664 = vpop.f32.mrf.mxu0
    %v4665 = vadd.f32 %v4472, %v4664
    %v4666 = vpop.f32.mrf.mxu0
    %v4667 = vadd.f32 %v4474, %v4666
    %v4668 = vpop.f32.mrf.mxu0
    %v4669 = vadd.f32 %v4476, %v4668
    %v4670 = vpop.f32.mrf.mxu0
    %v4671 = vadd.f32 %v4478, %v4670
    %4672 = vmatprep.mubr.bf16.mxu0 %v3088
    %4673 = vmatmul.mubr.bf16.gmra.mxu0 %v3087
    %v4674 = vpop.f32.mrf.mxu0
    %v4675 = vadd.f32 %v4482, %v4674
    %v4676 = vpop.f32.mrf.mxu0
    %v4677 = vadd.f32 %v4484, %v4676
    %v4678 = vpop.f32.mrf.mxu0
    %v4679 = vadd.f32 %v4486, %v4678
    %v4680 = vpop.f32.mrf.mxu0
    %v4681 = vadd.f32 %v4488, %v4680
    %4682 = vmatprep.mubr.bf16.mxu0 %v3095
    %4683 = vmatmul.mubr.bf16.gmra.mxu0 %v3094
    %v4684 = vpop.f32.mrf.mxu0
    %v4685 = vadd.f32 %v4492, %v4684
    %v4686 = vpop.f32.mrf.mxu0
    %v4687 = vadd.f32 %v4494, %v4686
    %v4688 = vpop.f32.mrf.mxu0
    %v4689 = vadd.f32 %v4496, %v4688
    %v4690 = vpop.f32.mrf.mxu0
    %v4691 = vadd.f32 %v4498, %v4690
    %4692 = vmatprep.mubr.bf16.mxu0 %v3102
    %4693 = vmatmul.mubr.bf16.gmra.mxu0 %v3101
    %v4694 = vpop.f32.mrf.mxu0
    %v4695 = vadd.f32 %v4502, %v4694
    %v4696 = vpop.f32.mrf.mxu0
    %v4697 = vadd.f32 %v4504, %v4696
    %v4698 = vpop.f32.mrf.mxu0
    %v4699 = vadd.f32 %v4506, %v4698
    %v4700 = vpop.f32.mrf.mxu0
    %v4701 = vadd.f32 %v4508, %v4700
    %4702 = vmatprep.mubr.bf16.mxu0 %v3109
    %4703 = vmatmul.mubr.bf16.gmra.mxu0 %v3108
    %v4704 = vpop.f32.mrf.mxu0
    %v4705 = vadd.f32 %v4512, %v4704
    %v4706 = vpop.f32.mrf.mxu0
    %v4707 = vadd.f32 %v4514, %v4706
    %v4708 = vpop.f32.mrf.mxu0
    %v4709 = vadd.f32 %v4516, %v4708
    %v4710 = vpop.f32.mrf.mxu0
    %v4711 = vadd.f32 %v4518, %v4710
    %4712 = vmatprep.mubr.bf16.mxu0 %v3116
    %4713 = vmatmul.mubr.bf16.gmra.mxu0 %v3115
    %v4714 = vpop.f32.mrf.mxu0
    %v4715 = vadd.f32 %v4522, %v4714
    %v4716 = vpop.f32.mrf.mxu0
    %v4717 = vadd.f32 %v4524, %v4716
    %v4718 = vpop.f32.mrf.mxu0
    %v4719 = vadd.f32 %v4526, %v4718
    %v4720 = vpop.f32.mrf.mxu0
    %v4721 = vadd.f32 %v4528, %v4720
    %4722 = vmatprep.mubr.bf16.mxu0 %v3123
    %4723 = vmatmul.mubr.bf16.gmra.mxu0 %v3122
    %v4724 = vpop.f32.mrf.mxu0
    %v4725 = vadd.f32 %v4532, %v4724
    %v4726 = vpop.f32.mrf.mxu0
    %v4727 = vadd.f32 %v4534, %v4726
    %v4728 = vpop.f32.mrf.mxu0
    %v4729 = vadd.f32 %v4536, %v4728
    %v4730 = vpop.f32.mrf.mxu0
    %v4731 = vadd.f32 %v4538, %v4730
    %4732 = vmatprep.mubr.bf16.mxu0 %v3130
    %4733 = vmatmul.mubr.bf16.gmra.mxu0 %v3129
    %v4734 = vpop.f32.mrf.mxu0
    %v4735 = vadd.f32 %v4542, %v4734
    %v4736 = vpop.f32.mrf.mxu0
    %v4737 = vadd.f32 %v4544, %v4736
    %v4738 = vpop.f32.mrf.mxu0
    %v4739 = vadd.f32 %v4546, %v4738
    %v4740 = vpop.f32.mrf.mxu0
    %v4741 = vadd.f32 %v4548, %v4740
    %4742 = vmatprep.mubr.bf16.mxu0 %v3137
    %4743 = vmatmul.mubr.bf16.gmra.mxu0 %v3136
    %v4744 = vpop.f32.mrf.mxu0
    %v4745 = vadd.f32 %v4552, %v4744
    %v4746 = vpop.f32.mrf.mxu0
    %v4747 = vadd.f32 %v4554, %v4746
    %v4748 = vpop.f32.mrf.mxu0
    %v4749 = vadd.f32 %v4556, %v4748
    %v4750 = vpop.f32.mrf.mxu0
    %v4751 = vadd.f32 %v4558, %v4750
    %4752 = vmatprep.mubr.bf16.mxu0 %v3144
    %4753 = vmatmul.mubr.bf16.gmra.mxu0 %v3143
    %v4754 = vpop.f32.mrf.mxu0
    %v4755 = vadd.f32 %v4562, %v4754
    %v4756 = vpop.f32.mrf.mxu0
    %v4757 = vadd.f32 %v4564, %v4756
    %v4758 = vpop.f32.mrf.mxu0
    %v4759 = vadd.f32 %v4566, %v4758
    %v4760 = vpop.f32.mrf.mxu0
    %v4761 = vadd.f32 %v4568, %v4760
    %4762 = vmatprep.mubr.bf16.mxu0 %v3151
    %4763 = vmatmul.mubr.bf16.gmra.mxu0 %v3150
    %v4764 = vpop.f32.mrf.mxu0
    %v4765 = vadd.f32 %v4572, %v4764
    %v4766 = vpop.f32.mrf.mxu0
    %v4767 = vadd.f32 %v4574, %v4766
    %v4768 = vpop.f32.mrf.mxu0
    %v4769 = vadd.f32 %v4576, %v4768
    %v4770 = vpop.f32.mrf.mxu0
    %v4771 = vadd.f32 %v4578, %v4770
    %4772 = vmatprep.mubr.bf16.mxu0 %v3158
    %4773 = vmatmul.mubr.bf16.gmra.mxu0 %v3157
    %v4774 = vpop.f32.mrf.mxu0
    %v4775 = vadd.f32 %v4582, %v4774
    %v4776 = vpop.f32.mrf.mxu0
    %v4777 = vadd.f32 %v4584, %v4776
    %v4778 = vpop.f32.mrf.mxu0
    %v4779 = vadd.f32 %v4586, %v4778
    %v4780 = vpop.f32.mrf.mxu0
    %v4781 = vadd.f32 %v4588, %v4780
    %4782 = vmatprep.mubr.bf16.mxu0 %v3165
    %4783 = vmatmul.mubr.bf16.gmra.mxu0 %v3164
    %v4784 = vpop.f32.mrf.mxu0
    %v4785 = vadd.f32 %v4592, %v4784
    %v4786 = vpop.f32.mrf.mxu0
    %v4787 = vadd.f32 %v4594, %v4786
    %v4788 = vpop.f32.mrf.mxu0
    %v4789 = vadd.f32 %v4596, %v4788
    %v4790 = vpop.f32.mrf.mxu0
    %v4791 = vadd.f32 %v4598, %v4790
    %4792 = vmatprep.mubr.bf16.mxu0 %v3172
    %4793 = vmatmul.mubr.bf16.gmra.mxu0 %v3171
    %v4794 = vpop.f32.mrf.mxu0
    %v4795 = vadd.f32 %v4602, %v4794
    %v4796 = vpop.f32.mrf.mxu0
    %v4797 = vadd.f32 %v4604, %v4796
    %v4798 = vpop.f32.mrf.mxu0
    %v4799 = vadd.f32 %v4606, %v4798
    %v4800 = vpop.f32.mrf.mxu0
    %v4801 = vadd.f32 %v4608, %v4800
    %4802 = vmatprep.mubr.bf16.mxu0 %v3179
    %4803 = vmatmul.mubr.bf16.gmra.mxu0 %v3178
    %v4804 = vpop.f32.mrf.mxu0
    %v4805 = vadd.f32 %v4612, %v4804
    %v4806 = vpop.f32.mrf.mxu0
    %v4807 = vadd.f32 %v4614, %v4806
    %v4808 = vpop.f32.mrf.mxu0
    %v4809 = vadd.f32 %v4616, %v4808
    %v4810 = vpop.f32.mrf.mxu0
    %v4811 = vadd.f32 %v4618, %v4810
    %4812 = vmatprep.mubr.bf16.mxu0 %v3186
    %4813 = vmatmul.mubr.bf16.gmra.mxu0 %v3185
    %v4814 = vpop.f32.mrf.mxu0
    %v4815 = vadd.f32 %v4622, %v4814
    %v4816 = vpop.f32.mrf.mxu0
    %v4817 = vadd.f32 %v4624, %v4816
    %v4818 = vpop.f32.mrf.mxu0
    %v4819 = vadd.f32 %v4626, %v4818
    %v4820 = vpop.f32.mrf.mxu0
    %v4821 = vadd.f32 %v4628, %v4820
    %4822 = vdwg.mxu0
    %4823 = vmatprep.subr.bf16.mxu0 %v4153
    %4824 = vmatpush1.bf16.msra.mxu0 %v4152
    %4825 = vmatprep.subr.bf16.mxu0 %v4149
    %4826 = vmatpush1.bf16.msra.mxu0 %v4148
    %4827 = vmatprep.subr.bf16.mxu0 %v4145
    %4828 = vmatpush1.bf16.msra.mxu0 %v4144
    %4829 = vmatprep.subr.bf16.mxu0 %v4141
    %4830 = vmatpush1.bf16.msra.mxu0 %v4140
    %4831 = vmatprep.subr.bf16.mxu0 %v4137
    %4832 = vmatpush1.bf16.msra.mxu0 %v4136
    %4833 = vmatprep.subr.bf16.mxu0 %v4133
    %4834 = vmatpush1.bf16.msra.mxu0 %v4132
    %4835 = vmatprep.subr.bf16.mxu0 %v4129
    %4836 = vmatpush1.bf16.msra.mxu0 %v4128
    %4837 = vmatprep.subr.bf16.mxu0 %v4125
    %4838 = vmatpush1.bf16.msra.mxu0 %v4124
    %4839 = vmatprep.subr.bf16.mxu0 %v4185
    %4840 = vmatpush2.bf16.msra.mxu0 %v4184
    %4841 = vmatprep.subr.bf16.mxu0 %v4181
    %4842 = vmatpush2.bf16.msra.mxu0 %v4180
    %4843 = vmatprep.subr.bf16.mxu0 %v4177
    %4844 = vmatpush2.bf16.msra.mxu0 %v4176
    %4845 = vmatprep.subr.bf16.mxu0 %v4173
    %4846 = vmatpush2.bf16.msra.mxu0 %v4172
    %4847 = vmatprep.subr.bf16.mxu0 %v4169
    %4848 = vmatpush2.bf16.msra.mxu0 %v4168
    %4849 = vmatprep.subr.bf16.mxu0 %v4165
    %4850 = vmatpush2.bf16.msra.mxu0 %v4164
    %4851 = vmatprep.subr.bf16.mxu0 %v4161
    %4852 = vmatpush2.bf16.msra.mxu0 %v4160
    %4853 = vmatprep.subr.bf16.mxu0 %v4157
    %4854 = vmatpush2.bf16.msra.mxu0 %v4156
    %4855 = vmatprep.mubr.bf16.mxu0 %v3083
    %4856 = vmatmul.mubr.bf16.gmra.mxu0 %v3082
    %v4857 = vpop.f32.mrf.mxu0
    %v4858 = vadd.f32 %v4665, %v4857
    %v4859 = vpop.f32.mrf.mxu0
    %v4860 = vadd.f32 %v4667, %v4859
    %v4861 = vpop.f32.mrf.mxu0
    %v4862 = vadd.f32 %v4669, %v4861
    %v4863 = vpop.f32.mrf.mxu0
    %v4864 = vadd.f32 %v4671, %v4863
    %4865 = vmatprep.mubr.bf16.mxu0 %v3090
    %4866 = vmatmul.mubr.bf16.gmra.mxu0 %v3089
    %v4867 = vpop.f32.mrf.mxu0
    %v4868 = vadd.f32 %v4675, %v4867
    %v4869 = vpop.f32.mrf.mxu0
    %v4870 = vadd.f32 %v4677, %v4869
    %v4871 = vpop.f32.mrf.mxu0
    %v4872 = vadd.f32 %v4679, %v4871
    %v4873 = vpop.f32.mrf.mxu0
    %v4874 = vadd.f32 %v4681, %v4873
    %4875 = vmatprep.mubr.bf16.mxu0 %v3097
    %4876 = vmatmul.mubr.bf16.gmra.mxu0 %v3096
    %v4877 = vpop.f32.mrf.mxu0
    %v4878 = vadd.f32 %v4685, %v4877
    %v4879 = vpop.f32.mrf.mxu0
    %v4880 = vadd.f32 %v4687, %v4879
    %v4881 = vpop.f32.mrf.mxu0
    %v4882 = vadd.f32 %v4689, %v4881
    %v4883 = vpop.f32.mrf.mxu0
    %v4884 = vadd.f32 %v4691, %v4883
    %4885 = vmatprep.mubr.bf16.mxu0 %v3104
    %4886 = vmatmul.mubr.bf16.gmra.mxu0 %v3103
    %v4887 = vpop.f32.mrf.mxu0
    %v4888 = vadd.f32 %v4695, %v4887
    %v4889 = vpop.f32.mrf.mxu0
    %v4890 = vadd.f32 %v4697, %v4889
    %v4891 = vpop.f32.mrf.mxu0
    %v4892 = vadd.f32 %v4699, %v4891
    %v4893 = vpop.f32.mrf.mxu0
    %v4894 = vadd.f32 %v4701, %v4893
    %4895 = vmatprep.mubr.bf16.mxu0 %v3111
    %4896 = vmatmul.mubr.bf16.gmra.mxu0 %v3110
    %v4897 = vpop.f32.mrf.mxu0
    %v4898 = vadd.f32 %v4705, %v4897
    %v4899 = vpop.f32.mrf.mxu0
    %v4900 = vadd.f32 %v4707, %v4899
    %v4901 = vpop.f32.mrf.mxu0
    %v4902 = vadd.f32 %v4709, %v4901
    %v4903 = vpop.f32.mrf.mxu0
    %v4904 = vadd.f32 %v4711, %v4903
    %4905 = vmatprep.mubr.bf16.mxu0 %v3118
    %4906 = vmatmul.mubr.bf16.gmra.mxu0 %v3117
    %v4907 = vpop.f32.mrf.mxu0
    %v4908 = vadd.f32 %v4715, %v4907
    %v4909 = vpop.f32.mrf.mxu0
    %v4910 = vadd.f32 %v4717, %v4909
    %v4911 = vpop.f32.mrf.mxu0
    %v4912 = vadd.f32 %v4719, %v4911
    %v4913 = vpop.f32.mrf.mxu0
    %v4914 = vadd.f32 %v4721, %v4913
    %4915 = vmatprep.mubr.bf16.mxu0 %v3125
    %4916 = vmatmul.mubr.bf16.gmra.mxu0 %v3124
    %v4917 = vpop.f32.mrf.mxu0
    %v4918 = vadd.f32 %v4725, %v4917
    %v4919 = vpop.f32.mrf.mxu0
    %v4920 = vadd.f32 %v4727, %v4919
    %v4921 = vpop.f32.mrf.mxu0
    %v4922 = vadd.f32 %v4729, %v4921
    %v4923 = vpop.f32.mrf.mxu0
    %v4924 = vadd.f32 %v4731, %v4923
    %4925 = vmatprep.mubr.bf16.mxu0 %v3132
    %4926 = vmatmul.mubr.bf16.gmra.mxu0 %v3131
    %v4927 = vpop.f32.mrf.mxu0
    %v4928 = vadd.f32 %v4735, %v4927
    %v4929 = vpop.f32.mrf.mxu0
    %v4930 = vadd.f32 %v4737, %v4929
    %v4931 = vpop.f32.mrf.mxu0
    %v4932 = vadd.f32 %v4739, %v4931
    %v4933 = vpop.f32.mrf.mxu0
    %v4934 = vadd.f32 %v4741, %v4933
    %4935 = vmatprep.mubr.bf16.mxu0 %v3139
    %4936 = vmatmul.mubr.bf16.gmra.mxu0 %v3138
    %v4937 = vpop.f32.mrf.mxu0
    %v4938 = vadd.f32 %v4745, %v4937
    %v4939 = vpop.f32.mrf.mxu0
    %v4940 = vadd.f32 %v4747, %v4939
    %v4941 = vpop.f32.mrf.mxu0
    %v4942 = vadd.f32 %v4749, %v4941
    %v4943 = vpop.f32.mrf.mxu0
    %v4944 = vadd.f32 %v4751, %v4943
    %4945 = vmatprep.mubr.bf16.mxu0 %v3146
    %4946 = vmatmul.mubr.bf16.gmra.mxu0 %v3145
    %v4947 = vpop.f32.mrf.mxu0
    %v4948 = vadd.f32 %v4755, %v4947
    %v4949 = vpop.f32.mrf.mxu0
    %v4950 = vadd.f32 %v4757, %v4949
    %v4951 = vpop.f32.mrf.mxu0
    %v4952 = vadd.f32 %v4759, %v4951
    %v4953 = vpop.f32.mrf.mxu0
    %v4954 = vadd.f32 %v4761, %v4953
    %4955 = vmatprep.mubr.bf16.mxu0 %v3153
    %4956 = vmatmul.mubr.bf16.gmra.mxu0 %v3152
    %v4957 = vpop.f32.mrf.mxu0
    %v4958 = vadd.f32 %v4765, %v4957
    %v4959 = vpop.f32.mrf.mxu0
    %v4960 = vadd.f32 %v4767, %v4959
    %v4961 = vpop.f32.mrf.mxu0
    %v4962 = vadd.f32 %v4769, %v4961
    %v4963 = vpop.f32.mrf.mxu0
    %v4964 = vadd.f32 %v4771, %v4963
    %4965 = vmatprep.mubr.bf16.mxu0 %v3160
    %4966 = vmatmul.mubr.bf16.gmra.mxu0 %v3159
    %v4967 = vpop.f32.mrf.mxu0
    %v4968 = vadd.f32 %v4775, %v4967
    %v4969 = vpop.f32.mrf.mxu0
    %v4970 = vadd.f32 %v4777, %v4969
    %v4971 = vpop.f32.mrf.mxu0
    %v4972 = vadd.f32 %v4779, %v4971
    %v4973 = vpop.f32.mrf.mxu0
    %v4974 = vadd.f32 %v4781, %v4973
    %4975 = vmatprep.mubr.bf16.mxu0 %v3167
    %4976 = vmatmul.mubr.bf16.gmra.mxu0 %v3166
    %v4977 = vpop.f32.mrf.mxu0
    %v4978 = vadd.f32 %v4785, %v4977
    %v4979 = vpop.f32.mrf.mxu0
    %v4980 = vadd.f32 %v4787, %v4979
    %v4981 = vpop.f32.mrf.mxu0
    %v4982 = vadd.f32 %v4789, %v4981
    %v4983 = vpop.f32.mrf.mxu0
    %v4984 = vadd.f32 %v4791, %v4983
    %4985 = vmatprep.mubr.bf16.mxu0 %v3174
    %4986 = vmatmul.mubr.bf16.gmra.mxu0 %v3173
    %v4987 = vpop.f32.mrf.mxu0
    %v4988 = vadd.f32 %v4795, %v4987
    %v4989 = vpop.f32.mrf.mxu0
    %v4990 = vadd.f32 %v4797, %v4989
    %v4991 = vpop.f32.mrf.mxu0
    %v4992 = vadd.f32 %v4799, %v4991
    %v4993 = vpop.f32.mrf.mxu0
    %v4994 = vadd.f32 %v4801, %v4993
    %4995 = vmatprep.mubr.bf16.mxu0 %v3181
    %4996 = vmatmul.mubr.bf16.gmra.mxu0 %v3180
    %v4997 = vpop.f32.mrf.mxu0
    %v4998 = vadd.f32 %v4805, %v4997
    %v4999 = vpop.f32.mrf.mxu0
    %v5000 = vadd.f32 %v4807, %v4999
    %v5001 = vpop.f32.mrf.mxu0
    %v5002 = vadd.f32 %v4809, %v5001
    %v5003 = vpop.f32.mrf.mxu0
    %v5004 = vadd.f32 %v4811, %v5003
    %5005 = vmatprep.mubr.bf16.mxu0 %v3188
    %5006 = vmatmul.mubr.bf16.gmra.mxu0 %v3187
    %v5007 = vpop.f32.mrf.mxu0
    %v5008 = vadd.f32 %v4815, %v5007
    %v5009 = vpop.f32.mrf.mxu0
    %v5010 = vadd.f32 %v4817, %v5009
    %v5011 = vpop.f32.mrf.mxu0
    %v5012 = vadd.f32 %v4819, %v5011
    %v5013 = vpop.f32.mrf.mxu0
    %v5014 = vadd.f32 %v4821, %v5013
    %5015 = vdwg.mxu0
    %5016 = vmatprep.subr.bf16.mxu0 0
    %5017 = vmatpush1.bf16.msra.mxu0 0
    %5018 = vmatprep.subr.bf16.mxu0 0
    %5019 = vmatpush1.bf16.msra.mxu0 0
    %5020 = vmatprep.subr.bf16.mxu0 0
    %5021 = vmatpush1.bf16.msra.mxu0 0
    %5022 = vmatprep.subr.bf16.mxu0 0
    %5023 = vmatpush1.bf16.msra.mxu0 0
    %5024 = vmatprep.subr.bf16.mxu0 0
    %5025 = vmatpush1.bf16.msra.mxu0 0
    %5026 = vmatprep.subr.bf16.mxu0 0
    %5027 = vmatpush1.bf16.msra.mxu0 0
    %5028 = vmatprep.subr.bf16.mxu0 0
    %5029 = vmatpush1.bf16.msra.mxu0 0
    %5030 = vmatprep.subr.bf16.mxu0 %v4189
    %5031 = vmatpush1.bf16.msra.mxu0 %v4188
    %5032 = vmatprep.subr.bf16.mxu0 0
    %5033 = vmatpush2.bf16.msra.mxu0 0
    %5034 = vmatprep.subr.bf16.mxu0 0
    %5035 = vmatpush2.bf16.msra.mxu0 0
    %5036 = vmatprep.subr.bf16.mxu0 0
    %5037 = vmatpush2.bf16.msra.mxu0 0
    %5038 = vmatprep.subr.bf16.mxu0 0
    %5039 = vmatpush2.bf16.msra.mxu0 0
    %5040 = vmatprep.subr.bf16.mxu0 0
    %5041 = vmatpush2.bf16.msra.mxu0 0
    %5042 = vmatprep.subr.bf16.mxu0 0
    %5043 = vmatpush2.bf16.msra.mxu0 0
    %5044 = vmatprep.subr.bf16.mxu0 0
    %5045 = vmatpush2.bf16.msra.mxu0 0
    %5046 = vmatprep.subr.bf16.mxu0 0
    %5047 = vmatpush2.bf16.msra.mxu0 0
    %5048 = vmatprep.mubr.bf16.mxu0 0
    %5049 = vmatmul.mubr.bf16.gmra.mxu0 %v4390
    %v5050 = vpop.f32.mrf.mxu0
    %v5051 = vadd.f32 %v4858, %v5050
    %v5052 = vpop.f32.mrf.mxu0
    %v5053 = vadd.f32 %v4860, %v5052
    %v5054 = vpop.f32.mrf.mxu0
    %v5055 = vadd.f32 %v4862, %v5054
    %v5056 = vpop.f32.mrf.mxu0
    %v5057 = vadd.f32 %v4864, %v5056
    %5058 = vmatprep.mubr.bf16.mxu0 0
    %5059 = vmatmul.mubr.bf16.gmra.mxu0 %v4393
    %v5060 = vpop.f32.mrf.mxu0
    %v5061 = vadd.f32 %v4868, %v5060
    %v5062 = vpop.f32.mrf.mxu0
    %v5063 = vadd.f32 %v4870, %v5062
    %v5064 = vpop.f32.mrf.mxu0
    %v5065 = vadd.f32 %v4872, %v5064
    %v5066 = vpop.f32.mrf.mxu0
    %v5067 = vadd.f32 %v4874, %v5066
    %5068 = vmatprep.mubr.bf16.mxu0 0
    %5069 = vmatmul.mubr.bf16.gmra.mxu0 %v4396
    %v5070 = vpop.f32.mrf.mxu0
    %v5071 = vadd.f32 %v4878, %v5070
    %v5072 = vpop.f32.mrf.mxu0
    %v5073 = vadd.f32 %v4880, %v5072
    %v5074 = vpop.f32.mrf.mxu0
    %v5075 = vadd.f32 %v4882, %v5074
    %v5076 = vpop.f32.mrf.mxu0
    %v5077 = vadd.f32 %v4884, %v5076
    %5078 = vmatprep.mubr.bf16.mxu0 0
    %5079 = vmatmul.mubr.bf16.gmra.mxu0 %v4399
    %v5080 = vpop.f32.mrf.mxu0
    %v5081 = vadd.f32 %v4888, %v5080
    %v5082 = vpop.f32.mrf.mxu0
    %v5083 = vadd.f32 %v4890, %v5082
    %v5084 = vpop.f32.mrf.mxu0
    %v5085 = vadd.f32 %v4892, %v5084
    %v5086 = vpop.f32.mrf.mxu0
    %v5087 = vadd.f32 %v4894, %v5086
    %5088 = vmatprep.mubr.bf16.mxu0 0
    %5089 = vmatmul.mubr.bf16.gmra.mxu0 %v4402
    %v5090 = vpop.f32.mrf.mxu0
    %v5091 = vadd.f32 %v4898, %v5090
    %v5092 = vpop.f32.mrf.mxu0
    %v5093 = vadd.f32 %v4900, %v5092
    %v5094 = vpop.f32.mrf.mxu0
    %v5095 = vadd.f32 %v4902, %v5094
    %v5096 = vpop.f32.mrf.mxu0
    %v5097 = vadd.f32 %v4904, %v5096
    %5098 = vmatprep.mubr.bf16.mxu0 0
    %5099 = vmatmul.mubr.bf16.gmra.mxu0 %v4405
    %v5100 = vpop.f32.mrf.mxu0
    %v5101 = vadd.f32 %v4908, %v5100
    %v5102 = vpop.f32.mrf.mxu0
    %v5103 = vadd.f32 %v4910, %v5102
    %v5104 = vpop.f32.mrf.mxu0
    %v5105 = vadd.f32 %v4912, %v5104
    %v5106 = vpop.f32.mrf.mxu0
    %v5107 = vadd.f32 %v4914, %v5106
    %5108 = vmatprep.mubr.bf16.mxu0 0
    %5109 = vmatmul.mubr.bf16.gmra.mxu0 %v4408
    %v5110 = vpop.f32.mrf.mxu0
    %v5111 = vadd.f32 %v4918, %v5110
    %v5112 = vpop.f32.mrf.mxu0
    %v5113 = vadd.f32 %v4920, %v5112
    %v5114 = vpop.f32.mrf.mxu0
    %v5115 = vadd.f32 %v4922, %v5114
    %v5116 = vpop.f32.mrf.mxu0
    %v5117 = vadd.f32 %v4924, %v5116
    %5118 = vmatprep.mubr.bf16.mxu0 0
    %5119 = vmatmul.mubr.bf16.gmra.mxu0 %v4411
    %v5120 = vpop.f32.mrf.mxu0
    %v5121 = vadd.f32 %v4928, %v5120
    %v5122 = vpop.f32.mrf.mxu0
    %v5123 = vadd.f32 %v4930, %v5122
    %v5124 = vpop.f32.mrf.mxu0
    %v5125 = vadd.f32 %v4932, %v5124
    %v5126 = vpop.f32.mrf.mxu0
    %v5127 = vadd.f32 %v4934, %v5126
    %5128 = vmatprep.mubr.bf16.mxu0 0
    %5129 = vmatmul.mubr.bf16.gmra.mxu0 %v4414
    %v5130 = vpop.f32.mrf.mxu0
    %v5131 = vadd.f32 %v4938, %v5130
    %v5132 = vpop.f32.mrf.mxu0
    %v5133 = vadd.f32 %v4940, %v5132
    %v5134 = vpop.f32.mrf.mxu0
    %v5135 = vadd.f32 %v4942, %v5134
    %v5136 = vpop.f32.mrf.mxu0
    %v5137 = vadd.f32 %v4944, %v5136
    %5138 = vmatprep.mubr.bf16.mxu0 0
    %5139 = vmatmul.mubr.bf16.gmra.mxu0 %v4417
    %v5140 = vpop.f32.mrf.mxu0
    %v5141 = vadd.f32 %v4948, %v5140
    %v5142 = vpop.f32.mrf.mxu0
    %v5143 = vadd.f32 %v4950, %v5142
    %v5144 = vpop.f32.mrf.mxu0
    %v5145 = vadd.f32 %v4952, %v5144
    %v5146 = vpop.f32.mrf.mxu0
    %v5147 = vadd.f32 %v4954, %v5146
    %5148 = vmatprep.mubr.bf16.mxu0 0
    %5149 = vmatmul.mubr.bf16.gmra.mxu0 %v4420
    %v5150 = vpop.f32.mrf.mxu0
    %v5151 = vadd.f32 %v4958, %v5150
    %v5152 = vpop.f32.mrf.mxu0
    %v5153 = vadd.f32 %v4960, %v5152
    %v5154 = vpop.f32.mrf.mxu0
    %v5155 = vadd.f32 %v4962, %v5154
    %v5156 = vpop.f32.mrf.mxu0
    %v5157 = vadd.f32 %v4964, %v5156
    %5158 = vmatprep.mubr.bf16.mxu0 0
    %5159 = vmatmul.mubr.bf16.gmra.mxu0 %v4423
    %v5160 = vpop.f32.mrf.mxu0
    %v5161 = vadd.f32 %v4968, %v5160
    %v5162 = vpop.f32.mrf.mxu0
    %v5163 = vadd.f32 %v4970, %v5162
    %v5164 = vpop.f32.mrf.mxu0
    %v5165 = vadd.f32 %v4972, %v5164
    %v5166 = vpop.f32.mrf.mxu0
    %v5167 = vadd.f32 %v4974, %v5166
    %5168 = vmatprep.mubr.bf16.mxu0 0
    %5169 = vmatmul.mubr.bf16.gmra.mxu0 %v4426
    %v5170 = vpop.f32.mrf.mxu0
    %v5171 = vadd.f32 %v4978, %v5170
    %v5172 = vpop.f32.mrf.mxu0
    %v5173 = vadd.f32 %v4980, %v5172
    %v5174 = vpop.f32.mrf.mxu0
    %v5175 = vadd.f32 %v4982, %v5174
    %v5176 = vpop.f32.mrf.mxu0
    %v5177 = vadd.f32 %v4984, %v5176
    %5178 = vmatprep.mubr.bf16.mxu0 0
    %5179 = vmatmul.mubr.bf16.gmra.mxu0 %v4429
    %v5180 = vpop.f32.mrf.mxu0
    %v5181 = vadd.f32 %v4988, %v5180
    %v5182 = vpop.f32.mrf.mxu0
    %v5183 = vadd.f32 %v4990, %v5182
    %v5184 = vpop.f32.mrf.mxu0
    %v5185 = vadd.f32 %v4992, %v5184
    %v5186 = vpop.f32.mrf.mxu0
    %v5187 = vadd.f32 %v4994, %v5186
    %5188 = vmatprep.mubr.bf16.mxu0 0
    %5189 = vmatmul.mubr.bf16.gmra.mxu0 %v4432
    %v5190 = vpop.f32.mrf.mxu0
    %v5191 = vadd.f32 %v4998, %v5190
    %v5192 = vpop.f32.mrf.mxu0
    %v5193 = vadd.f32 %v5000, %v5192
    %v5194 = vpop.f32.mrf.mxu0
    %v5195 = vadd.f32 %v5002, %v5194
    %v5196 = vpop.f32.mrf.mxu0
    %v5197 = vadd.f32 %v5004, %v5196
    %5198 = vmatprep.mubr.bf16.mxu0 0
    %5199 = vmatmul.mubr.bf16.gmra.mxu0 %v4435
    %v5200 = vpop.f32.mrf.mxu0
    %v5201 = vadd.f32 %v5008, %v5200
    %v5202 = vpop.f32.mrf.mxu0
    %v5203 = vadd.f32 %v5010, %v5202
    %v5204 = vpop.f32.mrf.mxu0
    %v5205 = vadd.f32 %v5012, %v5204
    %v5206 = vpop.f32.mrf.mxu0
    %v5207 = vadd.f32 %v5014, %v5206
    %5208 = vdwg.mxu0
    %5209 = vmatprep.subr.bf16.mxu0 %v4027
    %5210 = vmatpush1.bf16.msra.mxu0 %v4026
    %5211 = vmatprep.subr.bf16.mxu0 %v4023
    %5212 = vmatpush1.bf16.msra.mxu0 %v4022
    %5213 = vmatprep.subr.bf16.mxu0 %v4019
    %5214 = vmatpush1.bf16.msra.mxu0 %v4018
    %5215 = vmatprep.subr.bf16.mxu0 %v4015
    %5216 = vmatpush1.bf16.msra.mxu0 %v4014
    %5217 = vmatprep.subr.bf16.mxu0 %v4011
    %5218 = vmatpush1.bf16.msra.mxu0 %v4010
    %5219 = vmatprep.subr.bf16.mxu0 %v4007
    %5220 = vmatpush1.bf16.msra.mxu0 %v4006
    %5221 = vmatprep.subr.bf16.mxu0 %v4003
    %5222 = vmatpush1.bf16.msra.mxu0 %v4002
    %5223 = vmatprep.subr.bf16.mxu0 %v3999
    %5224 = vmatpush1.bf16.msra.mxu0 %v3998
    %5225 = vmatprep.subr.bf16.mxu0 %v4059
    %5226 = vmatpush2.bf16.msra.mxu0 %v4058
    %5227 = vmatprep.subr.bf16.mxu0 %v4055
    %5228 = vmatpush2.bf16.msra.mxu0 %v4054
    %5229 = vmatprep.subr.bf16.mxu0 %v4051
    %5230 = vmatpush2.bf16.msra.mxu0 %v4050
    %5231 = vmatprep.subr.bf16.mxu0 %v4047
    %5232 = vmatpush2.bf16.msra.mxu0 %v4046
    %5233 = vmatprep.subr.bf16.mxu0 %v4043
    %5234 = vmatpush2.bf16.msra.mxu0 %v4042
    %5235 = vmatprep.subr.bf16.mxu0 %v4039
    %5236 = vmatpush2.bf16.msra.mxu0 %v4038
    %5237 = vmatprep.subr.bf16.mxu0 %v4035
    %5238 = vmatpush2.bf16.msra.mxu0 %v4034
    %5239 = vmatprep.subr.bf16.mxu0 %v4031
    %5240 = vmatpush2.bf16.msra.mxu0 %v4030
    %5241 = vmatprep.mubr.bf16.mxu0 %v3079
    %5242 = vmatmul.mubr.bf16.gmra.mxu0 %v3078
    %v5243 = vpop.f32.mrf.mxu0
    %v5244 = vadd.f32 %v3399, %v5243
    %v5245 = vpop.f32.mrf.mxu0
    %v5246 = vadd.f32 %v3403, %v5245
    %v5247 = vpop.f32.mrf.mxu0
    %v5248 = vadd.f32 %v3399, %v5247
    %v5249 = vpop.f32.mrf.mxu0
    %v5250 = vadd.f32 %v3403, %v5249
    %5251 = vmatprep.mubr.bf16.mxu0 %v3086
    %5252 = vmatmul.mubr.bf16.gmra.mxu0 %v3085
    %v5253 = vpop.f32.mrf.mxu0
    %v5254 = vadd.f32 %v3399, %v5253
    %v5255 = vpop.f32.mrf.mxu0
    %v5256 = vadd.f32 %v3403, %v5255
    %v5257 = vpop.f32.mrf.mxu0
    %v5258 = vadd.f32 %v3399, %v5257
    %v5259 = vpop.f32.mrf.mxu0
    %v5260 = vadd.f32 %v3403, %v5259
    %5261 = vmatprep.mubr.bf16.mxu0 %v3093
    %5262 = vmatmul.mubr.bf16.gmra.mxu0 %v3092
    %v5263 = vpop.f32.mrf.mxu0
    %v5264 = vadd.f32 %v3399, %v5263
    %v5265 = vpop.f32.mrf.mxu0
    %v5266 = vadd.f32 %v3403, %v5265
    %v5267 = vpop.f32.mrf.mxu0
    %v5268 = vadd.f32 %v3399, %v5267
    %v5269 = vpop.f32.mrf.mxu0
    %v5270 = vadd.f32 %v3403, %v5269
    %5271 = vmatprep.mubr.bf16.mxu0 %v3100
    %5272 = vmatmul.mubr.bf16.gmra.mxu0 %v3099
    %v5273 = vpop.f32.mrf.mxu0
    %v5274 = vadd.f32 %v3399, %v5273
    %v5275 = vpop.f32.mrf.mxu0
    %v5276 = vadd.f32 %v3403, %v5275
    %v5277 = vpop.f32.mrf.mxu0
    %v5278 = vadd.f32 %v3399, %v5277
    %v5279 = vpop.f32.mrf.mxu0
    %v5280 = vadd.f32 %v3403, %v5279
    %5281 = vmatprep.mubr.bf16.mxu0 %v3107
    %5282 = vmatmul.mubr.bf16.gmra.mxu0 %v3106
    %v5283 = vpop.f32.mrf.mxu0
    %v5284 = vadd.f32 %v3399, %v5283
    %v5285 = vpop.f32.mrf.mxu0
    %v5286 = vadd.f32 %v3403, %v5285
    %v5287 = vpop.f32.mrf.mxu0
    %v5288 = vadd.f32 %v3399, %v5287
    %v5289 = vpop.f32.mrf.mxu0
    %v5290 = vadd.f32 %v3403, %v5289
    %5291 = vmatprep.mubr.bf16.mxu0 %v3114
    %5292 = vmatmul.mubr.bf16.gmra.mxu0 %v3113
    %v5293 = vpop.f32.mrf.mxu0
    %v5294 = vadd.f32 %v3399, %v5293
    %v5295 = vpop.f32.mrf.mxu0
    %v5296 = vadd.f32 %v3403, %v5295
    %v5297 = vpop.f32.mrf.mxu0
    %v5298 = vadd.f32 %v3399, %v5297
    %v5299 = vpop.f32.mrf.mxu0
    %v5300 = vadd.f32 %v3403, %v5299
    %5301 = vmatprep.mubr.bf16.mxu0 %v3121
    %5302 = vmatmul.mubr.bf16.gmra.mxu0 %v3120
    %v5303 = vpop.f32.mrf.mxu0
    %v5304 = vadd.f32 %v3399, %v5303
    %v5305 = vpop.f32.mrf.mxu0
    %v5306 = vadd.f32 %v3403, %v5305
    %v5307 = vpop.f32.mrf.mxu0
    %v5308 = vadd.f32 %v3399, %v5307
    %v5309 = vpop.f32.mrf.mxu0
    %v5310 = vadd.f32 %v3403, %v5309
    %5311 = vmatprep.mubr.bf16.mxu0 %v3128
    %5312 = vmatmul.mubr.bf16.gmra.mxu0 %v3127
    %v5313 = vpop.f32.mrf.mxu0
    %v5314 = vadd.f32 %v3399, %v5313
    %v5315 = vpop.f32.mrf.mxu0
    %v5316 = vadd.f32 %v3403, %v5315
    %v5317 = vpop.f32.mrf.mxu0
    %v5318 = vadd.f32 %v3399, %v5317
    %v5319 = vpop.f32.mrf.mxu0
    %v5320 = vadd.f32 %v3403, %v5319
    %5321 = vmatprep.mubr.bf16.mxu0 %v3135
    %5322 = vmatmul.mubr.bf16.gmra.mxu0 %v3134
    %v5323 = vpop.f32.mrf.mxu0
    %v5324 = vadd.f32 %v3399, %v5323
    %v5325 = vpop.f32.mrf.mxu0
    %v5326 = vadd.f32 %v3403, %v5325
    %v5327 = vpop.f32.mrf.mxu0
    %v5328 = vadd.f32 %v3399, %v5327
    %v5329 = vpop.f32.mrf.mxu0
    %v5330 = vadd.f32 %v3403, %v5329
    %5331 = vmatprep.mubr.bf16.mxu0 %v3142
    %5332 = vmatmul.mubr.bf16.gmra.mxu0 %v3141
    %v5333 = vpop.f32.mrf.mxu0
    %v5334 = vadd.f32 %v3399, %v5333
    %v5335 = vpop.f32.mrf.mxu0
    %v5336 = vadd.f32 %v3403, %v5335
    %v5337 = vpop.f32.mrf.mxu0
    %v5338 = vadd.f32 %v3399, %v5337
    %v5339 = vpop.f32.mrf.mxu0
    %v5340 = vadd.f32 %v3403, %v5339
    %5341 = vmatprep.mubr.bf16.mxu0 %v3149
    %5342 = vmatmul.mubr.bf16.gmra.mxu0 %v3148
    %v5343 = vpop.f32.mrf.mxu0
    %v5344 = vadd.f32 %v3399, %v5343
    %v5345 = vpop.f32.mrf.mxu0
    %v5346 = vadd.f32 %v3403, %v5345
    %v5347 = vpop.f32.mrf.mxu0
    %v5348 = vadd.f32 %v3399, %v5347
    %v5349 = vpop.f32.mrf.mxu0
    %v5350 = vadd.f32 %v3403, %v5349
    %5351 = vmatprep.mubr.bf16.mxu0 %v3156
    %5352 = vmatmul.mubr.bf16.gmra.mxu0 %v3155
    %v5353 = vpop.f32.mrf.mxu0
    %v5354 = vadd.f32 %v3399, %v5353
    %v5355 = vpop.f32.mrf.mxu0
    %v5356 = vadd.f32 %v3403, %v5355
    %v5357 = vpop.f32.mrf.mxu0
    %v5358 = vadd.f32 %v3399, %v5357
    %v5359 = vpop.f32.mrf.mxu0
    %v5360 = vadd.f32 %v3403, %v5359
    %5361 = vmatprep.mubr.bf16.mxu0 %v3163
    %5362 = vmatmul.mubr.bf16.gmra.mxu0 %v3162
    %v5363 = vpop.f32.mrf.mxu0
    %v5364 = vadd.f32 %v3399, %v5363
    %v5365 = vpop.f32.mrf.mxu0
    %v5366 = vadd.f32 %v3403, %v5365
    %v5367 = vpop.f32.mrf.mxu0
    %v5368 = vadd.f32 %v3399, %v5367
    %v5369 = vpop.f32.mrf.mxu0
    %v5370 = vadd.f32 %v3403, %v5369
    %5371 = vmatprep.mubr.bf16.mxu0 %v3170
    %5372 = vmatmul.mubr.bf16.gmra.mxu0 %v3169
    %v5373 = vpop.f32.mrf.mxu0
    %v5374 = vadd.f32 %v3399, %v5373
    %v5375 = vpop.f32.mrf.mxu0
    %v5376 = vadd.f32 %v3403, %v5375
    %v5377 = vpop.f32.mrf.mxu0
    %v5378 = vadd.f32 %v3399, %v5377
    %v5379 = vpop.f32.mrf.mxu0
    %v5380 = vadd.f32 %v3403, %v5379
    %5381 = vmatprep.mubr.bf16.mxu0 %v3177
    %5382 = vmatmul.mubr.bf16.gmra.mxu0 %v3176
    %v5383 = vpop.f32.mrf.mxu0
    %v5384 = vadd.f32 %v3399, %v5383
    %v5385 = vpop.f32.mrf.mxu0
    %v5386 = vadd.f32 %v3403, %v5385
    %v5387 = vpop.f32.mrf.mxu0
    %v5388 = vadd.f32 %v3399, %v5387
    %v5389 = vpop.f32.mrf.mxu0
    %v5390 = vadd.f32 %v3403, %v5389
    %5391 = vmatprep.mubr.bf16.mxu0 %v3184
    %5392 = vmatmul.mubr.bf16.gmra.mxu0 %v3183
    %v5393 = vpop.f32.mrf.mxu0
    %v5394 = vadd.f32 %v3399, %v5393
    %v5395 = vpop.f32.mrf.mxu0
    %v5396 = vadd.f32 %v3403, %v5395
    %v5397 = vpop.f32.mrf.mxu0
    %v5398 = vadd.f32 %v3399, %v5397
    %v5399 = vpop.f32.mrf.mxu0
    %v5400 = vadd.f32 %v3403, %v5399
    %5401 = vdwg.mxu0
    %5402 = vmatprep.subr.bf16.mxu0 %v4091
    %5403 = vmatpush1.bf16.msra.mxu0 %v4090
    %5404 = vmatprep.subr.bf16.mxu0 %v4087
    %5405 = vmatpush1.bf16.msra.mxu0 %v4086
    %5406 = vmatprep.subr.bf16.mxu0 %v4083
    %5407 = vmatpush1.bf16.msra.mxu0 %v4082
    %5408 = vmatprep.subr.bf16.mxu0 %v4079
    %5409 = vmatpush1.bf16.msra.mxu0 %v4078
    %5410 = vmatprep.subr.bf16.mxu0 %v4075
    %5411 = vmatpush1.bf16.msra.mxu0 %v4074
    %5412 = vmatprep.subr.bf16.mxu0 %v4071
    %5413 = vmatpush1.bf16.msra.mxu0 %v4070
    %5414 = vmatprep.subr.bf16.mxu0 %v4067
    %5415 = vmatpush1.bf16.msra.mxu0 %v4066
    %5416 = vmatprep.subr.bf16.mxu0 %v4063
    %5417 = vmatpush1.bf16.msra.mxu0 %v4062
    %5418 = vmatprep.subr.bf16.mxu0 %v4123
    %5419 = vmatpush2.bf16.msra.mxu0 %v4122
    %5420 = vmatprep.subr.bf16.mxu0 %v4119
    %5421 = vmatpush2.bf16.msra.mxu0 %v4118
    %5422 = vmatprep.subr.bf16.mxu0 %v4115
    %5423 = vmatpush2.bf16.msra.mxu0 %v4114
    %5424 = vmatprep.subr.bf16.mxu0 %v4111
    %5425 = vmatpush2.bf16.msra.mxu0 %v4110
    %5426 = vmatprep.subr.bf16.mxu0 %v4107
    %5427 = vmatpush2.bf16.msra.mxu0 %v4106
    %5428 = vmatprep.subr.bf16.mxu0 %v4103
    %5429 = vmatpush2.bf16.msra.mxu0 %v4102
    %5430 = vmatprep.subr.bf16.mxu0 %v4099
    %5431 = vmatpush2.bf16.msra.mxu0 %v4098
    %5432 = vmatprep.subr.bf16.mxu0 %v4095
    %5433 = vmatpush2.bf16.msra.mxu0 %v4094
    %5434 = vmatprep.mubr.bf16.mxu0 %v3081
    %5435 = vmatmul.mubr.bf16.gmra.mxu0 %v3080
    %v5436 = vpop.f32.mrf.mxu0
    %v5437 = vadd.f32 %v5244, %v5436
    %v5438 = vpop.f32.mrf.mxu0
    %v5439 = vadd.f32 %v5246, %v5438
    %v5440 = vpop.f32.mrf.mxu0
    %v5441 = vadd.f32 %v5248, %v5440
    %v5442 = vpop.f32.mrf.mxu0
    %v5443 = vadd.f32 %v5250, %v5442
    %5444 = vmatprep.mubr.bf16.mxu0 %v3088
    %5445 = vmatmul.mubr.bf16.gmra.mxu0 %v3087
    %v5446 = vpop.f32.mrf.mxu0
    %v5447 = vadd.f32 %v5254, %v5446
    %v5448 = vpop.f32.mrf.mxu0
    %v5449 = vadd.f32 %v5256, %v5448
    %v5450 = vpop.f32.mrf.mxu0
    %v5451 = vadd.f32 %v5258, %v5450
    %v5452 = vpop.f32.mrf.mxu0
    %v5453 = vadd.f32 %v5260, %v5452
    %5454 = vmatprep.mubr.bf16.mxu0 %v3095
    %5455 = vmatmul.mubr.bf16.gmra.mxu0 %v3094
    %v5456 = vpop.f32.mrf.mxu0
    %v5457 = vadd.f32 %v5264, %v5456
    %v5458 = vpop.f32.mrf.mxu0
    %v5459 = vadd.f32 %v5266, %v5458
    %v5460 = vpop.f32.mrf.mxu0
    %v5461 = vadd.f32 %v5268, %v5460
    %v5462 = vpop.f32.mrf.mxu0
    %v5463 = vadd.f32 %v5270, %v5462
    %5464 = vmatprep.mubr.bf16.mxu0 %v3102
    %5465 = vmatmul.mubr.bf16.gmra.mxu0 %v3101
    %v5466 = vpop.f32.mrf.mxu0
    %v5467 = vadd.f32 %v5274, %v5466
    %v5468 = vpop.f32.mrf.mxu0
    %v5469 = vadd.f32 %v5276, %v5468
    %v5470 = vpop.f32.mrf.mxu0
    %v5471 = vadd.f32 %v5278, %v5470
    %v5472 = vpop.f32.mrf.mxu0
    %v5473 = vadd.f32 %v5280, %v5472
    %5474 = vmatprep.mubr.bf16.mxu0 %v3109
    %5475 = vmatmul.mubr.bf16.gmra.mxu0 %v3108
    %v5476 = vpop.f32.mrf.mxu0
    %v5477 = vadd.f32 %v5284, %v5476
    %v5478 = vpop.f32.mrf.mxu0
    %v5479 = vadd.f32 %v5286, %v5478
    %v5480 = vpop.f32.mrf.mxu0
    %v5481 = vadd.f32 %v5288, %v5480
    %v5482 = vpop.f32.mrf.mxu0
    %v5483 = vadd.f32 %v5290, %v5482
    %5484 = vmatprep.mubr.bf16.mxu0 %v3116
    %5485 = vmatmul.mubr.bf16.gmra.mxu0 %v3115
    %v5486 = vpop.f32.mrf.mxu0
    %v5487 = vadd.f32 %v5294, %v5486
    %v5488 = vpop.f32.mrf.mxu0
    %v5489 = vadd.f32 %v5296, %v5488
    %v5490 = vpop.f32.mrf.mxu0
    %v5491 = vadd.f32 %v5298, %v5490
    %v5492 = vpop.f32.mrf.mxu0
    %v5493 = vadd.f32 %v5300, %v5492
    %5494 = vmatprep.mubr.bf16.mxu0 %v3123
    %5495 = vmatmul.mubr.bf16.gmra.mxu0 %v3122
    %v5496 = vpop.f32.mrf.mxu0
    %v5497 = vadd.f32 %v5304, %v5496
    %v5498 = vpop.f32.mrf.mxu0
    %v5499 = vadd.f32 %v5306, %v5498
    %v5500 = vpop.f32.mrf.mxu0
    %v5501 = vadd.f32 %v5308, %v5500
    %v5502 = vpop.f32.mrf.mxu0
    %v5503 = vadd.f32 %v5310, %v5502
    %5504 = vmatprep.mubr.bf16.mxu0 %v3130
    %5505 = vmatmul.mubr.bf16.gmra.mxu0 %v3129
    %v5506 = vpop.f32.mrf.mxu0
    %v5507 = vadd.f32 %v5314, %v5506
    %v5508 = vpop.f32.mrf.mxu0
    %v5509 = vadd.f32 %v5316, %v5508
    %v5510 = vpop.f32.mrf.mxu0
    %v5511 = vadd.f32 %v5318, %v5510
    %v5512 = vpop.f32.mrf.mxu0
    %v5513 = vadd.f32 %v5320, %v5512
    %5514 = vmatprep.mubr.bf16.mxu0 %v3137
    %5515 = vmatmul.mubr.bf16.gmra.mxu0 %v3136
    %v5516 = vpop.f32.mrf.mxu0
    %v5517 = vadd.f32 %v5324, %v5516
    %v5518 = vpop.f32.mrf.mxu0
    %v5519 = vadd.f32 %v5326, %v5518
    %v5520 = vpop.f32.mrf.mxu0
    %v5521 = vadd.f32 %v5328, %v5520
    %v5522 = vpop.f32.mrf.mxu0
    %v5523 = vadd.f32 %v5330, %v5522
    %5524 = vmatprep.mubr.bf16.mxu0 %v3144
    %5525 = vmatmul.mubr.bf16.gmra.mxu0 %v3143
    %v5526 = vpop.f32.mrf.mxu0
    %v5527 = vadd.f32 %v5334, %v5526
    %v5528 = vpop.f32.mrf.mxu0
    %v5529 = vadd.f32 %v5336, %v5528
    %v5530 = vpop.f32.mrf.mxu0
    %v5531 = vadd.f32 %v5338, %v5530
    %v5532 = vpop.f32.mrf.mxu0
    %v5533 = vadd.f32 %v5340, %v5532
    %5534 = vmatprep.mubr.bf16.mxu0 %v3151
    %5535 = vmatmul.mubr.bf16.gmra.mxu0 %v3150
    %v5536 = vpop.f32.mrf.mxu0
    %v5537 = vadd.f32 %v5344, %v5536
    %v5538 = vpop.f32.mrf.mxu0
    %v5539 = vadd.f32 %v5346, %v5538
    %v5540 = vpop.f32.mrf.mxu0
    %v5541 = vadd.f32 %v5348, %v5540
    %v5542 = vpop.f32.mrf.mxu0
    %v5543 = vadd.f32 %v5350, %v5542
    %5544 = vmatprep.mubr.bf16.mxu0 %v3158
    %5545 = vmatmul.mubr.bf16.gmra.mxu0 %v3157
    %v5546 = vpop.f32.mrf.mxu0
    %v5547 = vadd.f32 %v5354, %v5546
    %v5548 = vpop.f32.mrf.mxu0
    %v5549 = vadd.f32 %v5356, %v5548
    %v5550 = vpop.f32.mrf.mxu0
    %v5551 = vadd.f32 %v5358, %v5550
    %v5552 = vpop.f32.mrf.mxu0
    %v5553 = vadd.f32 %v5360, %v5552
    %5554 = vmatprep.mubr.bf16.mxu0 %v3165
    %5555 = vmatmul.mubr.bf16.gmra.mxu0 %v3164
    %v5556 = vpop.f32.mrf.mxu0
    %v5557 = vadd.f32 %v5364, %v5556
    %v5558 = vpop.f32.mrf.mxu0
    %v5559 = vadd.f32 %v5366, %v5558
    %v5560 = vpop.f32.mrf.mxu0
    %v5561 = vadd.f32 %v5368, %v5560
    %v5562 = vpop.f32.mrf.mxu0
    %v5563 = vadd.f32 %v5370, %v5562
    %5564 = vmatprep.mubr.bf16.mxu0 %v3172
    %5565 = vmatmul.mubr.bf16.gmra.mxu0 %v3171
    %v5566 = vpop.f32.mrf.mxu0
    %v5567 = vadd.f32 %v5374, %v5566
    %v5568 = vpop.f32.mrf.mxu0
    %v5569 = vadd.f32 %v5376, %v5568
    %v5570 = vpop.f32.mrf.mxu0
    %v5571 = vadd.f32 %v5378, %v5570
    %v5572 = vpop.f32.mrf.mxu0
    %v5573 = vadd.f32 %v5380, %v5572
    %5574 = vmatprep.mubr.bf16.mxu0 %v3179
    %5575 = vmatmul.mubr.bf16.gmra.mxu0 %v3178
    %v5576 = vpop.f32.mrf.mxu0
    %v5577 = vadd.f32 %v5384, %v5576
    %v5578 = vpop.f32.mrf.mxu0
    %v5579 = vadd.f32 %v5386, %v5578
    %v5580 = vpop.f32.mrf.mxu0
    %v5581 = vadd.f32 %v5388, %v5580
    %v5582 = vpop.f32.mrf.mxu0
    %v5583 = vadd.f32 %v5390, %v5582
    %5584 = vmatprep.mubr.bf16.mxu0 %v3186
    %5585 = vmatmul.mubr.bf16.gmra.mxu0 %v3185
    %v5586 = vpop.f32.mrf.mxu0
    %v5587 = vadd.f32 %v5394, %v5586
    %v5588 = vpop.f32.mrf.mxu0
    %v5589 = vadd.f32 %v5396, %v5588
    %v5590 = vpop.f32.mrf.mxu0
    %v5591 = vadd.f32 %v5398, %v5590
    %v5592 = vpop.f32.mrf.mxu0
    %v5593 = vadd.f32 %v5400, %v5592
    %5594 = vdwg.mxu0
    %5595 = vmatprep.subr.bf16.mxu0 %v4155
    %5596 = vmatpush1.bf16.msra.mxu0 %v4154
    %5597 = vmatprep.subr.bf16.mxu0 %v4151
    %5598 = vmatpush1.bf16.msra.mxu0 %v4150
    %5599 = vmatprep.subr.bf16.mxu0 %v4147
    %5600 = vmatpush1.bf16.msra.mxu0 %v4146
    %5601 = vmatprep.subr.bf16.mxu0 %v4143
    %5602 = vmatpush1.bf16.msra.mxu0 %v4142
    %5603 = vmatprep.subr.bf16.mxu0 %v4139
    %5604 = vmatpush1.bf16.msra.mxu0 %v4138
    %5605 = vmatprep.subr.bf16.mxu0 %v4135
    %5606 = vmatpush1.bf16.msra.mxu0 %v4134
    %5607 = vmatprep.subr.bf16.mxu0 %v4131
    %5608 = vmatpush1.bf16.msra.mxu0 %v4130
    %5609 = vmatprep.subr.bf16.mxu0 %v4127
    %5610 = vmatpush1.bf16.msra.mxu0 %v4126
    %5611 = vmatprep.subr.bf16.mxu0 %v4187
    %5612 = vmatpush2.bf16.msra.mxu0 %v4186
    %5613 = vmatprep.subr.bf16.mxu0 %v4183
    %5614 = vmatpush2.bf16.msra.mxu0 %v4182
    %5615 = vmatprep.subr.bf16.mxu0 %v4179
    %5616 = vmatpush2.bf16.msra.mxu0 %v4178
    %5617 = vmatprep.subr.bf16.mxu0 %v4175
    %5618 = vmatpush2.bf16.msra.mxu0 %v4174
    %5619 = vmatprep.subr.bf16.mxu0 %v4171
    %5620 = vmatpush2.bf16.msra.mxu0 %v4170
    %5621 = vmatprep.subr.bf16.mxu0 %v4167
    %5622 = vmatpush2.bf16.msra.mxu0 %v4166
    %5623 = vmatprep.subr.bf16.mxu0 %v4163
    %5624 = vmatpush2.bf16.msra.mxu0 %v4162
    %5625 = vmatprep.subr.bf16.mxu0 %v4159
    %5626 = vmatpush2.bf16.msra.mxu0 %v4158
    %5627 = vmatprep.mubr.bf16.mxu0 %v3083
    %5628 = vmatmul.mubr.bf16.gmra.mxu0 %v3082
    %v5629 = vpop.f32.mrf.mxu0
    %v5630 = vadd.f32 %v5437, %v5629
    %v5631 = vpop.f32.mrf.mxu0
    %v5632 = vadd.f32 %v5439, %v5631
    %v5633 = vpop.f32.mrf.mxu0
    %v5634 = vadd.f32 %v5441, %v5633
    %v5635 = vpop.f32.mrf.mxu0
    %v5636 = vadd.f32 %v5443, %v5635
    %5637 = vmatprep.mubr.bf16.mxu0 %v3090
    %5638 = vmatmul.mubr.bf16.gmra.mxu0 %v3089
    %v5639 = vpop.f32.mrf.mxu0
    %v5640 = vadd.f32 %v5447, %v5639
    %v5641 = vpop.f32.mrf.mxu0
    %v5642 = vadd.f32 %v5449, %v5641
    %v5643 = vpop.f32.mrf.mxu0
    %v5644 = vadd.f32 %v5451, %v5643
    %v5645 = vpop.f32.mrf.mxu0
    %v5646 = vadd.f32 %v5453, %v5645
    %5647 = vmatprep.mubr.bf16.mxu0 %v3097
    %5648 = vmatmul.mubr.bf16.gmra.mxu0 %v3096
    %v5649 = vpop.f32.mrf.mxu0
    %v5650 = vadd.f32 %v5457, %v5649
    %v5651 = vpop.f32.mrf.mxu0
    %v5652 = vadd.f32 %v5459, %v5651
    %v5653 = vpop.f32.mrf.mxu0
    %v5654 = vadd.f32 %v5461, %v5653
    %v5655 = vpop.f32.mrf.mxu0
    %v5656 = vadd.f32 %v5463, %v5655
    %5657 = vmatprep.mubr.bf16.mxu0 %v3104
    %5658 = vmatmul.mubr.bf16.gmra.mxu0 %v3103
    %v5659 = vpop.f32.mrf.mxu0
    %v5660 = vadd.f32 %v5467, %v5659
    %v5661 = vpop.f32.mrf.mxu0
    %v5662 = vadd.f32 %v5469, %v5661
    %v5663 = vpop.f32.mrf.mxu0
    %v5664 = vadd.f32 %v5471, %v5663
    %v5665 = vpop.f32.mrf.mxu0
    %v5666 = vadd.f32 %v5473, %v5665
    %5667 = vmatprep.mubr.bf16.mxu0 %v3111
    %5668 = vmatmul.mubr.bf16.gmra.mxu0 %v3110
    %v5669 = vpop.f32.mrf.mxu0
    %v5670 = vadd.f32 %v5477, %v5669
    %v5671 = vpop.f32.mrf.mxu0
    %v5672 = vadd.f32 %v5479, %v5671
    %v5673 = vpop.f32.mrf.mxu0
    %v5674 = vadd.f32 %v5481, %v5673
    %v5675 = vpop.f32.mrf.mxu0
    %v5676 = vadd.f32 %v5483, %v5675
    %5677 = vmatprep.mubr.bf16.mxu0 %v3118
    %5678 = vmatmul.mubr.bf16.gmra.mxu0 %v3117
    %v5679 = vpop.f32.mrf.mxu0
    %v5680 = vadd.f32 %v5487, %v5679
    %v5681 = vpop.f32.mrf.mxu0
    %v5682 = vadd.f32 %v5489, %v5681
    %v5683 = vpop.f32.mrf.mxu0
    %v5684 = vadd.f32 %v5491, %v5683
    %v5685 = vpop.f32.mrf.mxu0
    %v5686 = vadd.f32 %v5493, %v5685
    %5687 = vmatprep.mubr.bf16.mxu0 %v3125
    %5688 = vmatmul.mubr.bf16.gmra.mxu0 %v3124
    %v5689 = vpop.f32.mrf.mxu0
    %v5690 = vadd.f32 %v5497, %v5689
    %v5691 = vpop.f32.mrf.mxu0
    %v5692 = vadd.f32 %v5499, %v5691
    %v5693 = vpop.f32.mrf.mxu0
    %v5694 = vadd.f32 %v5501, %v5693
    %v5695 = vpop.f32.mrf.mxu0
    %v5696 = vadd.f32 %v5503, %v5695
    %5697 = vmatprep.mubr.bf16.mxu0 %v3132
    %5698 = vmatmul.mubr.bf16.gmra.mxu0 %v3131
    %v5699 = vpop.f32.mrf.mxu0
    %v5700 = vadd.f32 %v5507, %v5699
    %v5701 = vpop.f32.mrf.mxu0
    %v5702 = vadd.f32 %v5509, %v5701
    %v5703 = vpop.f32.mrf.mxu0
    %v5704 = vadd.f32 %v5511, %v5703
    %v5705 = vpop.f32.mrf.mxu0
    %v5706 = vadd.f32 %v5513, %v5705
    %5707 = vmatprep.mubr.bf16.mxu0 %v3139
    %5708 = vmatmul.mubr.bf16.gmra.mxu0 %v3138
    %v5709 = vpop.f32.mrf.mxu0
    %v5710 = vadd.f32 %v5517, %v5709
    %v5711 = vpop.f32.mrf.mxu0
    %v5712 = vadd.f32 %v5519, %v5711
    %v5713 = vpop.f32.mrf.mxu0
    %v5714 = vadd.f32 %v5521, %v5713
    %v5715 = vpop.f32.mrf.mxu0
    %v5716 = vadd.f32 %v5523, %v5715
    %5717 = vmatprep.mubr.bf16.mxu0 %v3146
    %5718 = vmatmul.mubr.bf16.gmra.mxu0 %v3145
    %v5719 = vpop.f32.mrf.mxu0
    %v5720 = vadd.f32 %v5527, %v5719
    %v5721 = vpop.f32.mrf.mxu0
    %v5722 = vadd.f32 %v5529, %v5721
    %v5723 = vpop.f32.mrf.mxu0
    %v5724 = vadd.f32 %v5531, %v5723
    %v5725 = vpop.f32.mrf.mxu0
    %v5726 = vadd.f32 %v5533, %v5725
    %5727 = vmatprep.mubr.bf16.mxu0 %v3153
    %5728 = vmatmul.mubr.bf16.gmra.mxu0 %v3152
    %v5729 = vpop.f32.mrf.mxu0
    %v5730 = vadd.f32 %v5537, %v5729
    %v5731 = vpop.f32.mrf.mxu0
    %v5732 = vadd.f32 %v5539, %v5731
    %v5733 = vpop.f32.mrf.mxu0
    %v5734 = vadd.f32 %v5541, %v5733
    %v5735 = vpop.f32.mrf.mxu0
    %v5736 = vadd.f32 %v5543, %v5735
    %5737 = vmatprep.mubr.bf16.mxu0 %v3160
    %5738 = vmatmul.mubr.bf16.gmra.mxu0 %v3159
    %v5739 = vpop.f32.mrf.mxu0
    %v5740 = vadd.f32 %v5547, %v5739
    %v5741 = vpop.f32.mrf.mxu0
    %v5742 = vadd.f32 %v5549, %v5741
    %v5743 = vpop.f32.mrf.mxu0
    %v5744 = vadd.f32 %v5551, %v5743
    %v5745 = vpop.f32.mrf.mxu0
    %v5746 = vadd.f32 %v5553, %v5745
    %5747 = vmatprep.mubr.bf16.mxu0 %v3167
    %5748 = vmatmul.mubr.bf16.gmra.mxu0 %v3166
    %v5749 = vpop.f32.mrf.mxu0
    %v5750 = vadd.f32 %v5557, %v5749
    %v5751 = vpop.f32.mrf.mxu0
    %v5752 = vadd.f32 %v5559, %v5751
    %v5753 = vpop.f32.mrf.mxu0
    %v5754 = vadd.f32 %v5561, %v5753
    %v5755 = vpop.f32.mrf.mxu0
    %v5756 = vadd.f32 %v5563, %v5755
    %5757 = vmatprep.mubr.bf16.mxu0 %v3174
    %5758 = vmatmul.mubr.bf16.gmra.mxu0 %v3173
    %v5759 = vpop.f32.mrf.mxu0
    %v5760 = vadd.f32 %v5567, %v5759
    %v5761 = vpop.f32.mrf.mxu0
    %v5762 = vadd.f32 %v5569, %v5761
    %v5763 = vpop.f32.mrf.mxu0
    %v5764 = vadd.f32 %v5571, %v5763
    %v5765 = vpop.f32.mrf.mxu0
    %v5766 = vadd.f32 %v5573, %v5765
    %5767 = vmatprep.mubr.bf16.mxu0 %v3181
    %5768 = vmatmul.mubr.bf16.gmra.mxu0 %v3180
    %v5769 = vpop.f32.mrf.mxu0
    %v5770 = vadd.f32 %v5577, %v5769
    %v5771 = vpop.f32.mrf.mxu0
    %v5772 = vadd.f32 %v5579, %v5771
    %v5773 = vpop.f32.mrf.mxu0
    %v5774 = vadd.f32 %v5581, %v5773
    %v5775 = vpop.f32.mrf.mxu0
    %v5776 = vadd.f32 %v5583, %v5775
    %5777 = vmatprep.mubr.bf16.mxu0 %v3188
    %5778 = vmatmul.mubr.bf16.gmra.mxu0 %v3187
    %v5779 = vpop.f32.mrf.mxu0
    %v5780 = vadd.f32 %v5587, %v5779
    %v5781 = vpop.f32.mrf.mxu0
    %v5782 = vadd.f32 %v5589, %v5781
    %v5783 = vpop.f32.mrf.mxu0
    %v5784 = vadd.f32 %v5591, %v5783
    %v5785 = vpop.f32.mrf.mxu0
    %v5786 = vadd.f32 %v5593, %v5785
    %5787 = vdwg.mxu0
    %5788 = vmatprep.subr.bf16.mxu0 0
    %5789 = vmatpush1.bf16.msra.mxu0 0
    %5790 = vmatprep.subr.bf16.mxu0 0
    %5791 = vmatpush1.bf16.msra.mxu0 0
    %5792 = vmatprep.subr.bf16.mxu0 0
    %5793 = vmatpush1.bf16.msra.mxu0 0
    %5794 = vmatprep.subr.bf16.mxu0 0
    %5795 = vmatpush1.bf16.msra.mxu0 0
    %5796 = vmatprep.subr.bf16.mxu0 0
    %5797 = vmatpush1.bf16.msra.mxu0 0
    %5798 = vmatprep.subr.bf16.mxu0 0
    %5799 = vmatpush1.bf16.msra.mxu0 0
    %5800 = vmatprep.subr.bf16.mxu0 0
    %5801 = vmatpush1.bf16.msra.mxu0 0
    %5802 = vmatprep.subr.bf16.mxu0 %v4191
    %5803 = vmatpush1.bf16.msra.mxu0 %v4190
    %5804 = vmatprep.subr.bf16.mxu0 0
    %5805 = vmatpush2.bf16.msra.mxu0 0
    %5806 = vmatprep.subr.bf16.mxu0 0
    %5807 = vmatpush2.bf16.msra.mxu0 0
    %5808 = vmatprep.subr.bf16.mxu0 0
    %5809 = vmatpush2.bf16.msra.mxu0 0
    %5810 = vmatprep.subr.bf16.mxu0 0
    %5811 = vmatpush2.bf16.msra.mxu0 0
    %5812 = vmatprep.subr.bf16.mxu0 0
    %5813 = vmatpush2.bf16.msra.mxu0 0
    %5814 = vmatprep.subr.bf16.mxu0 0
    %5815 = vmatpush2.bf16.msra.mxu0 0
    %5816 = vmatprep.subr.bf16.mxu0 0
    %5817 = vmatpush2.bf16.msra.mxu0 0
    %5818 = vmatprep.subr.bf16.mxu0 0
    %5819 = vmatpush2.bf16.msra.mxu0 0
    %5820 = vmatprep.mubr.bf16.mxu0 0
    %5821 = vmatmul.mubr.bf16.gmra.mxu0 %v4390
    %v5822 = vpop.f32.mrf.mxu0
    %v5823 = vadd.f32 %v5630, %v5822
    %v5824 = vpop.f32.mrf.mxu0
    %v5825 = vadd.f32 %v5632, %v5824
    %v5826 = vpop.f32.mrf.mxu0
    %v5827 = vadd.f32 %v5634, %v5826
    %v5828 = vpop.f32.mrf.mxu0
    %v5829 = vadd.f32 %v5636, %v5828
    %5830 = vmatprep.mubr.bf16.mxu0 0
    %5831 = vmatmul.mubr.bf16.gmra.mxu0 %v4393
    %v5832 = vpop.f32.mrf.mxu0
    %v5833 = vadd.f32 %v5640, %v5832
    %v5834 = vpop.f32.mrf.mxu0
    %v5835 = vadd.f32 %v5642, %v5834
    %v5836 = vpop.f32.mrf.mxu0
    %v5837 = vadd.f32 %v5644, %v5836
    %v5838 = vpop.f32.mrf.mxu0
    %v5839 = vadd.f32 %v5646, %v5838
    %5840 = vmatprep.mubr.bf16.mxu0 0
    %5841 = vmatmul.mubr.bf16.gmra.mxu0 %v4396
    %v5842 = vpop.f32.mrf.mxu0
    %v5843 = vadd.f32 %v5650, %v5842
    %v5844 = vpop.f32.mrf.mxu0
    %v5845 = vadd.f32 %v5652, %v5844
    %v5846 = vpop.f32.mrf.mxu0
    %v5847 = vadd.f32 %v5654, %v5846
    %v5848 = vpop.f32.mrf.mxu0
    %v5849 = vadd.f32 %v5656, %v5848
    %5850 = vmatprep.mubr.bf16.mxu0 0
    %5851 = vmatmul.mubr.bf16.gmra.mxu0 %v4399
    %v5852 = vpop.f32.mrf.mxu0
    %v5853 = vadd.f32 %v5660, %v5852
    %v5854 = vpop.f32.mrf.mxu0
    %v5855 = vadd.f32 %v5662, %v5854
    %v5856 = vpop.f32.mrf.mxu0
    %v5857 = vadd.f32 %v5664, %v5856
    %v5858 = vpop.f32.mrf.mxu0
    %v5859 = vadd.f32 %v5666, %v5858
    %5860 = vmatprep.mubr.bf16.mxu0 0
    %5861 = vmatmul.mubr.bf16.gmra.mxu0 %v4402
    %v5862 = vpop.f32.mrf.mxu0
    %v5863 = vadd.f32 %v5670, %v5862
    %v5864 = vpop.f32.mrf.mxu0
    %v5865 = vadd.f32 %v5672, %v5864
    %v5866 = vpop.f32.mrf.mxu0
    %v5867 = vadd.f32 %v5674, %v5866
    %v5868 = vpop.f32.mrf.mxu0
    %v5869 = vadd.f32 %v5676, %v5868
    %5870 = vmatprep.mubr.bf16.mxu0 0
    %5871 = vmatmul.mubr.bf16.gmra.mxu0 %v4405
    %v5872 = vpop.f32.mrf.mxu0
    %v5873 = vadd.f32 %v5680, %v5872
    %v5874 = vpop.f32.mrf.mxu0
    %v5875 = vadd.f32 %v5682, %v5874
    %v5876 = vpop.f32.mrf.mxu0
    %v5877 = vadd.f32 %v5684, %v5876
    %v5878 = vpop.f32.mrf.mxu0
    %v5879 = vadd.f32 %v5686, %v5878
    %5880 = vmatprep.mubr.bf16.mxu0 0
    %5881 = vmatmul.mubr.bf16.gmra.mxu0 %v4408
    %v5882 = vpop.f32.mrf.mxu0
    %v5883 = vadd.f32 %v5690, %v5882
    %v5884 = vpop.f32.mrf.mxu0
    %v5885 = vadd.f32 %v5692, %v5884
    %v5886 = vpop.f32.mrf.mxu0
    %v5887 = vadd.f32 %v5694, %v5886
    %v5888 = vpop.f32.mrf.mxu0
    %v5889 = vadd.f32 %v5696, %v5888
    %5890 = vmatprep.mubr.bf16.mxu0 0
    %5891 = vmatmul.mubr.bf16.gmra.mxu0 %v4411
    %v5892 = vpop.f32.mrf.mxu0
    %v5893 = vadd.f32 %v5700, %v5892
    %v5894 = vpop.f32.mrf.mxu0
    %v5895 = vadd.f32 %v5702, %v5894
    %v5896 = vpop.f32.mrf.mxu0
    %v5897 = vadd.f32 %v5704, %v5896
    %v5898 = vpop.f32.mrf.mxu0
    %v5899 = vadd.f32 %v5706, %v5898
    %5900 = vmatprep.mubr.bf16.mxu0 0
    %5901 = vmatmul.mubr.bf16.gmra.mxu0 %v4414
    %v5902 = vpop.f32.mrf.mxu0
    %v5903 = vadd.f32 %v5710, %v5902
    %v5904 = vpop.f32.mrf.mxu0
    %v5905 = vadd.f32 %v5712, %v5904
    %v5906 = vpop.f32.mrf.mxu0
    %v5907 = vadd.f32 %v5714, %v5906
    %v5908 = vpop.f32.mrf.mxu0
    %v5909 = vadd.f32 %v5716, %v5908
    %5910 = vmatprep.mubr.bf16.mxu0 0
    %5911 = vmatmul.mubr.bf16.gmra.mxu0 %v4417
    %v5912 = vpop.f32.mrf.mxu0
    %v5913 = vadd.f32 %v5720, %v5912
    %v5914 = vpop.f32.mrf.mxu0
    %v5915 = vadd.f32 %v5722, %v5914
    %v5916 = vpop.f32.mrf.mxu0
    %v5917 = vadd.f32 %v5724, %v5916
    %v5918 = vpop.f32.mrf.mxu0
    %v5919 = vadd.f32 %v5726, %v5918
    %5920 = vmatprep.mubr.bf16.mxu0 0
    %5921 = vmatmul.mubr.bf16.gmra.mxu0 %v4420
    %v5922 = vpop.f32.mrf.mxu0
    %v5923 = vadd.f32 %v5730, %v5922
    %v5924 = vpop.f32.mrf.mxu0
    %v5925 = vadd.f32 %v5732, %v5924
    %v5926 = vpop.f32.mrf.mxu0
    %v5927 = vadd.f32 %v5734, %v5926
    %v5928 = vpop.f32.mrf.mxu0
    %v5929 = vadd.f32 %v5736, %v5928
    %5930 = vmatprep.mubr.bf16.mxu0 0
    %5931 = vmatmul.mubr.bf16.gmra.mxu0 %v4423
    %v5932 = vpop.f32.mrf.mxu0
    %v5933 = vadd.f32 %v5740, %v5932
    %v5934 = vpop.f32.mrf.mxu0
    %v5935 = vadd.f32 %v5742, %v5934
    %v5936 = vpop.f32.mrf.mxu0
    %v5937 = vadd.f32 %v5744, %v5936
    %v5938 = vpop.f32.mrf.mxu0
    %v5939 = vadd.f32 %v5746, %v5938
    %5940 = vmatprep.mubr.bf16.mxu0 0
    %5941 = vmatmul.mubr.bf16.gmra.mxu0 %v4426
    %v5942 = vpop.f32.mrf.mxu0
    %v5943 = vadd.f32 %v5750, %v5942
    %v5944 = vpop.f32.mrf.mxu0
    %v5945 = vadd.f32 %v5752, %v5944
    %v5946 = vpop.f32.mrf.mxu0
    %v5947 = vadd.f32 %v5754, %v5946
    %v5948 = vpop.f32.mrf.mxu0
    %v5949 = vadd.f32 %v5756, %v5948
    %5950 = vmatprep.mubr.bf16.mxu0 0
    %5951 = vmatmul.mubr.bf16.gmra.mxu0 %v4429
    %v5952 = vpop.f32.mrf.mxu0
    %v5953 = vadd.f32 %v5760, %v5952
    %v5954 = vpop.f32.mrf.mxu0
    %v5955 = vadd.f32 %v5762, %v5954
    %v5956 = vpop.f32.mrf.mxu0
    %v5957 = vadd.f32 %v5764, %v5956
    %v5958 = vpop.f32.mrf.mxu0
    %v5959 = vadd.f32 %v5766, %v5958
    %5960 = vmatprep.mubr.bf16.mxu0 0
    %5961 = vmatmul.mubr.bf16.gmra.mxu0 %v4432
    %v5962 = vpop.f32.mrf.mxu0
    %v5963 = vadd.f32 %v5770, %v5962
    %v5964 = vpop.f32.mrf.mxu0
    %v5965 = vadd.f32 %v5772, %v5964
    %v5966 = vpop.f32.mrf.mxu0
    %v5967 = vadd.f32 %v5774, %v5966
    %v5968 = vpop.f32.mrf.mxu0
    %v5969 = vadd.f32 %v5776, %v5968
    %5970 = vmatprep.mubr.bf16.mxu0 0
    %5971 = vmatmul.mubr.bf16.gmra.mxu0 %v4435
    %v5972 = vpop.f32.mrf.mxu0
    %v5973 = vadd.f32 %v5780, %v5972
    %v5974 = vpop.f32.mrf.mxu0
    %v5975 = vadd.f32 %v5782, %v5974
    %v5976 = vpop.f32.mrf.mxu0
    %v5977 = vadd.f32 %v5784, %v5976
    %v5978 = vpop.f32.mrf.mxu0
    %v5979 = vadd.f32 %v5786, %v5978
    %5980 = vdwg.mxu0
    %v5981 = vmul.f32 %v5051, 0.2
    %v5982 = vmul.f32 %v5053, 0.2
    %v5983 = vmul.f32 %v5823, 0.2
    %v5984 = vmul.f32 %v5825, 0.2
    %v5985 = vmul.f32 %v5055, 0.2
    %v5986 = vmul.f32 %v5057, 0.2
    %v5987 = vmul.f32 %v5827, 0.2
    %v5988 = vmul.f32 %v5829, 0.2
    %v5989 = vmul.f32 %v5061, 0.2
    %v5990 = vmul.f32 %v5063, 0.2
    %v5991 = vmul.f32 %v5833, 0.2
    %v5992 = vmul.f32 %v5835, 0.2
    %v5993 = vmul.f32 %v5065, 0.2
    %v5994 = vmul.f32 %v5067, 0.2
    %v5995 = vmul.f32 %v5837, 0.2
    %v5996 = vmul.f32 %v5839, 0.2
    %v5997 = vmul.f32 %v5071, 0.2
    %v5998 = vmul.f32 %v5073, 0.2
    %v5999 = vmul.f32 %v5843, 0.2
    %v6000 = vmul.f32 %v5845, 0.2
    %v6001 = vmul.f32 %v5075, 0.2
    %v6002 = vmul.f32 %v5077, 0.2
    %v6003 = vmul.f32 %v5847, 0.2
    %v6004 = vmul.f32 %v5849, 0.2
    %v6005 = vmul.f32 %v5081, 0.2
    %v6006 = vmul.f32 %v5083, 0.2
    %v6007 = vmul.f32 %v5853, 0.2
    %v6008 = vmul.f32 %v5855, 0.2
    %v6009 = vmul.f32 %v5085, 0.2
    %v6010 = vmul.f32 %v5087, 0.2
    %v6011 = vmul.f32 %v5857, 0.2
    %v6012 = vmul.f32 %v5859, 0.2
    %v6013 = vmul.f32 %v5091, 0.2
    %v6014 = vmul.f32 %v5093, 0.2
    %v6015 = vmul.f32 %v5863, 0.2
    %v6016 = vmul.f32 %v5865, 0.2
    %v6017 = vmul.f32 %v5095, 0.2
    %v6018 = vmul.f32 %v5097, 0.2
    %v6019 = vmul.f32 %v5867, 0.2
    %v6020 = vmul.f32 %v5869, 0.2
    %v6021 = vmul.f32 %v5101, 0.2
    %v6022 = vmul.f32 %v5103, 0.2
    %v6023 = vmul.f32 %v5873, 0.2
    %v6024 = vmul.f32 %v5875, 0.2
    %v6025 = vmul.f32 %v5105, 0.2
    %v6026 = vmul.f32 %v5107, 0.2
    %v6027 = vmul.f32 %v5877, 0.2
    %v6028 = vmul.f32 %v5879, 0.2
    %v6029 = vmul.f32 %v5111, 0.2
    %v6030 = vmul.f32 %v5113, 0.2
    %v6031 = vmul.f32 %v5883, 0.2
    %v6032 = vmul.f32 %v5885, 0.2
    %v6033 = vmul.f32 %v5115, 0.2
    %v6034 = vmul.f32 %v5117, 0.2
    %v6035 = vmul.f32 %v5887, 0.2
    %v6036 = vmul.f32 %v5889, 0.2
    %v6037 = vmul.f32 %v5121, 0.2
    %v6038 = vmul.f32 %v5123, 0.2
    %v6039 = vmul.f32 %v5893, 0.2
    %v6040 = vmul.f32 %v5895, 0.2
    %v6041 = vmul.f32 %v5125, 0.2
    %v6042 = vmul.f32 %v5127, 0.2
    %v6043 = vmul.f32 %v5897, 0.2
    %v6044 = vmul.f32 %v5899, 0.2
    %v6045 = vmul.f32 %v5131, 0.2
    %v6046 = vmul.f32 %v5133, 0.2
    %v6047 = vmul.f32 %v5903, 0.2
    %v6048 = vmul.f32 %v5905, 0.2
    %v6049 = vmul.f32 %v5135, 0.2
    %v6050 = vmul.f32 %v5137, 0.2
    %v6051 = vmul.f32 %v5907, 0.2
    %v6052 = vmul.f32 %v5909, 0.2
    %v6053 = vmul.f32 %v5141, 0.2
    %v6054 = vmul.f32 %v5143, 0.2
    %v6055 = vmul.f32 %v5913, 0.2
    %v6056 = vmul.f32 %v5915, 0.2
    %v6057 = vmul.f32 %v5145, 0.2
    %v6058 = vmul.f32 %v5147, 0.2
    %v6059 = vmul.f32 %v5917, 0.2
    %v6060 = vmul.f32 %v5919, 0.2
    %v6061 = vmul.f32 %v5151, 0.2
    %v6062 = vmul.f32 %v5153, 0.2
    %v6063 = vmul.f32 %v5923, 0.2
    %v6064 = vmul.f32 %v5925, 0.2
    %v6065 = vmul.f32 %v5155, 0.2
    %v6066 = vmul.f32 %v5157, 0.2
    %v6067 = vmul.f32 %v5927, 0.2
    %v6068 = vmul.f32 %v5929, 0.2
    %v6069 = vmul.f32 %v5161, 0.2
    %v6070 = vmul.f32 %v5163, 0.2
    %v6071 = vmul.f32 %v5933, 0.2
    %v6072 = vmul.f32 %v5935, 0.2
    %v6073 = vmul.f32 %v5165, 0.2
    %v6074 = vmul.f32 %v5167, 0.2
    %v6075 = vmul.f32 %v5937, 0.2
    %v6076 = vmul.f32 %v5939, 0.2
    %v6077 = vmul.f32 %v5171, 0.2
    %v6078 = vmul.f32 %v5173, 0.2
    %v6079 = vmul.f32 %v5943, 0.2
    %v6080 = vmul.f32 %v5945, 0.2
    %v6081 = vmul.f32 %v5175, 0.2
    %v6082 = vmul.f32 %v5177, 0.2
    %v6083 = vmul.f32 %v5947, 0.2
    %v6084 = vmul.f32 %v5949, 0.2
    %v6085 = vmul.f32 %v5181, 0.2
    %v6086 = vmul.f32 %v5183, 0.2
    %v6087 = vmul.f32 %v5953, 0.2
    %v6088 = vmul.f32 %v5955, 0.2
    %v6089 = vmul.f32 %v5185, 0.2
    %v6090 = vmul.f32 %v5187, 0.2
    %v6091 = vmul.f32 %v5957, 0.2
    %v6092 = vmul.f32 %v5959, 0.2
    %v6093 = vmul.f32 %v5191, 0.2
    %v6094 = vmul.f32 %v5193, 0.2
    %v6095 = vmul.f32 %v5963, 0.2
    %v6096 = vmul.f32 %v5965, 0.2
    %v6097 = vmul.f32 %v5195, 0.2
    %v6098 = vmul.f32 %v5197, 0.2
    %v6099 = vmul.f32 %v5967, 0.2
    %v6100 = vmul.f32 %v5969, 0.2
    %v6101 = vmul.f32 %v5201, 0.2
    %v6102 = vmul.f32 %v5203, 0.2
    %v6103 = vmul.f32 %v5973, 0.2
    %v6104 = vmul.f32 %v5975, 0.2
    %v6105 = vmul.f32 %v5205, 0.2
    %v6106 = vmul.f32 %v5207, 0.2
    %v6107 = vmul.f32 %v5977, 0.2
    %v6108 = vmul.f32 %v5979, 0.2
    %v6109 = vmax.f32 %v5051, %v5981
    %v6110 = vmax.f32 %v5053, %v5982
    %v6111 = vmax.f32 %v5823, %v5983
    %v6112 = vmax.f32 %v5825, %v5984
    %v6113 = vmax.f32 %v5055, %v5985
    %v6114 = vmax.f32 %v5057, %v5986
    %v6115 = vmax.f32 %v5827, %v5987
    %v6116 = vmax.f32 %v5829, %v5988
    %v6117 = vmax.f32 %v5061, %v5989
    %v6118 = vmax.f32 %v5063, %v5990
    %v6119 = vmax.f32 %v5833, %v5991
    %v6120 = vmax.f32 %v5835, %v5992
    %v6121 = vmax.f32 %v5065, %v5993
    %v6122 = vmax.f32 %v5067, %v5994
    %v6123 = vmax.f32 %v5837, %v5995
    %v6124 = vmax.f32 %v5839, %v5996
    %v6125 = vmax.f32 %v5071, %v5997
    %v6126 = vmax.f32 %v5073, %v5998
    %v6127 = vmax.f32 %v5843, %v5999
    %v6128 = vmax.f32 %v5845, %v6000
    %v6129 = vmax.f32 %v5075, %v6001
    %v6130 = vmax.f32 %v5077, %v6002
    %v6131 = vmax.f32 %v5847, %v6003
    %v6132 = vmax.f32 %v5849, %v6004
    %v6133 = vmax.f32 %v5081, %v6005
    %v6134 = vmax.f32 %v5083, %v6006
    %v6135 = vmax.f32 %v5853, %v6007
    %v6136 = vmax.f32 %v5855, %v6008
    %v6137 = vmax.f32 %v5085, %v6009
    %v6138 = vmax.f32 %v5087, %v6010
    %v6139 = vmax.f32 %v5857, %v6011
    %v6140 = vmax.f32 %v5859, %v6012
    %v6141 = vmax.f32 %v5091, %v6013
    %v6142 = vmax.f32 %v5093, %v6014
    %v6143 = vmax.f32 %v5863, %v6015
    %v6144 = vmax.f32 %v5865, %v6016
    %v6145 = vmax.f32 %v5095, %v6017
    %v6146 = vmax.f32 %v5097, %v6018
    %v6147 = vmax.f32 %v5867, %v6019
    %v6148 = vmax.f32 %v5869, %v6020
    %v6149 = vmax.f32 %v5101, %v6021
    %v6150 = vmax.f32 %v5103, %v6022
    %v6151 = vmax.f32 %v5873, %v6023
    %v6152 = vmax.f32 %v5875, %v6024
    %v6153 = vmax.f32 %v5105, %v6025
    %v6154 = vmax.f32 %v5107, %v6026
    %v6155 = vmax.f32 %v5877, %v6027
    %v6156 = vmax.f32 %v5879, %v6028
    %v6157 = vmax.f32 %v5111, %v6029
    %v6158 = vmax.f32 %v5113, %v6030
    %v6159 = vmax.f32 %v5883, %v6031
    %v6160 = vmax.f32 %v5885, %v6032
    %v6161 = vmax.f32 %v5115, %v6033
    %v6162 = vmax.f32 %v5117, %v6034
    %v6163 = vmax.f32 %v5887, %v6035
    %v6164 = vmax.f32 %v5889, %v6036
    %v6165 = vmax.f32 %v5121, %v6037
    %v6166 = vmax.f32 %v5123, %v6038
    %v6167 = vmax.f32 %v5893, %v6039
    %v6168 = vmax.f32 %v5895, %v6040
    %v6169 = vmax.f32 %v5125, %v6041
    %v6170 = vmax.f32 %v5127, %v6042
    %v6171 = vmax.f32 %v5897, %v6043
    %v6172 = vmax.f32 %v5899, %v6044
    %v6173 = vmax.f32 %v5131, %v6045
    %v6174 = vmax.f32 %v5133, %v6046
    %v6175 = vmax.f32 %v5903, %v6047
    %v6176 = vmax.f32 %v5905, %v6048
    %v6177 = vmax.f32 %v5135, %v6049
    %v6178 = vmax.f32 %v5137, %v6050
    %v6179 = vmax.f32 %v5907, %v6051
    %v6180 = vmax.f32 %v5909, %v6052
    %v6181 = vmax.f32 %v5141, %v6053
    %v6182 = vmax.f32 %v5143, %v6054
    %v6183 = vmax.f32 %v5913, %v6055
    %v6184 = vmax.f32 %v5915, %v6056
    %v6185 = vmax.f32 %v5145, %v6057
    %v6186 = vmax.f32 %v5147, %v6058
    %v6187 = vmax.f32 %v5917, %v6059
    %v6188 = vmax.f32 %v5919, %v6060
    %v6189 = vmax.f32 %v5151, %v6061
    %v6190 = vmax.f32 %v5153, %v6062
    %v6191 = vmax.f32 %v5923, %v6063
    %v6192 = vmax.f32 %v5925, %v6064
    %v6193 = vmax.f32 %v5155, %v6065
    %v6194 = vmax.f32 %v5157, %v6066
    %v6195 = vmax.f32 %v5927, %v6067
    %v6196 = vmax.f32 %v5929, %v6068
    %v6197 = vmax.f32 %v5161, %v6069
    %v6198 = vmax.f32 %v5163, %v6070
    %v6199 = vmax.f32 %v5933, %v6071
    %v6200 = vmax.f32 %v5935, %v6072
    %v6201 = vmax.f32 %v5165, %v6073
    %v6202 = vmax.f32 %v5167, %v6074
    %v6203 = vmax.f32 %v5937, %v6075
    %v6204 = vmax.f32 %v5939, %v6076
    %v6205 = vmax.f32 %v5171, %v6077
    %v6206 = vmax.f32 %v5173, %v6078
    %v6207 = vmax.f32 %v5943, %v6079
    %v6208 = vmax.f32 %v5945, %v6080
    %v6209 = vmax.f32 %v5175, %v6081
    %v6210 = vmax.f32 %v5177, %v6082
    %v6211 = vmax.f32 %v5947, %v6083
    %v6212 = vmax.f32 %v5949, %v6084
    %v6213 = vmax.f32 %v5181, %v6085
    %v6214 = vmax.f32 %v5183, %v6086
    %v6215 = vmax.f32 %v5953, %v6087
    %v6216 = vmax.f32 %v5955, %v6088
    %v6217 = vmax.f32 %v5185, %v6089
    %v6218 = vmax.f32 %v5187, %v6090
    %v6219 = vmax.f32 %v5957, %v6091
    %v6220 = vmax.f32 %v5959, %v6092
    %v6221 = vmax.f32 %v5191, %v6093
    %v6222 = vmax.f32 %v5193, %v6094
    %v6223 = vmax.f32 %v5963, %v6095
    %v6224 = vmax.f32 %v5965, %v6096
    %v6225 = vmax.f32 %v5195, %v6097
    %v6226 = vmax.f32 %v5197, %v6098
    %v6227 = vmax.f32 %v5967, %v6099
    %v6228 = vmax.f32 %v5969, %v6100
    %v6229 = vmax.f32 %v5201, %v6101
    %v6230 = vmax.f32 %v5203, %v6102
    %v6231 = vmax.f32 %v5973, %v6103
    %v6232 = vmax.f32 %v5975, %v6104
    %v6233 = vmax.f32 %v5205, %v6105
    %v6234 = vmax.f32 %v5207, %v6106
    %v6235 = vmax.f32 %v5977, %v6107
    %v6236 = vmax.f32 %v5979, %v6108
    %v6237 = vpack.c.bf16 %v6113, %v6109
    %v6238 = vpack.c.bf16 %v6114, %v6110
    %v6239 = vpack.c.bf16 %v6115, %v6111
    %v6240 = vpack.c.bf16 %v6116, %v6112
    %v6241 = vpack.c.bf16 %v6121, %v6117
    %v6242 = vpack.c.bf16 %v6122, %v6118
    %v6243 = vpack.c.bf16 %v6123, %v6119
    %v6244 = vpack.c.bf16 %v6124, %v6120
    %v6245 = vpack.c.bf16 %v6129, %v6125
    %v6246 = vpack.c.bf16 %v6130, %v6126
    %v6247 = vpack.c.bf16 %v6131, %v6127
    %v6248 = vpack.c.bf16 %v6132, %v6128
    %v6249 = vpack.c.bf16 %v6137, %v6133
    %v6250 = vpack.c.bf16 %v6138, %v6134
    %v6251 = vpack.c.bf16 %v6139, %v6135
    %v6252 = vpack.c.bf16 %v6140, %v6136
    %v6253 = vpack.c.bf16 %v6145, %v6141
    %v6254 = vpack.c.bf16 %v6146, %v6142
    %v6255 = vpack.c.bf16 %v6147, %v6143
    %v6256 = vpack.c.bf16 %v6148, %v6144
    %v6257 = vpack.c.bf16 %v6153, %v6149
    %v6258 = vpack.c.bf16 %v6154, %v6150
    %v6259 = vpack.c.bf16 %v6155, %v6151
    %v6260 = vpack.c.bf16 %v6156, %v6152
    %v6261 = vpack.c.bf16 %v6161, %v6157
    %v6262 = vpack.c.bf16 %v6162, %v6158
    %v6263 = vpack.c.bf16 %v6163, %v6159
    %v6264 = vpack.c.bf16 %v6164, %v6160
    %v6265 = vpack.c.bf16 %v6169, %v6165
    %v6266 = vpack.c.bf16 %v6170, %v6166
    %v6267 = vpack.c.bf16 %v6171, %v6167
    %v6268 = vpack.c.bf16 %v6172, %v6168
    %v6269 = vpack.c.bf16 %v6177, %v6173
    %v6270 = vpack.c.bf16 %v6178, %v6174
    %v6271 = vpack.c.bf16 %v6179, %v6175
    %v6272 = vpack.c.bf16 %v6180, %v6176
    %v6273 = vpack.c.bf16 %v6185, %v6181
    %v6274 = vpack.c.bf16 %v6186, %v6182
    %v6275 = vpack.c.bf16 %v6187, %v6183
    %v6276 = vpack.c.bf16 %v6188, %v6184
    %v6277 = vpack.c.bf16 %v6193, %v6189
    %v6278 = vpack.c.bf16 %v6194, %v6190
    %v6279 = vpack.c.bf16 %v6195, %v6191
    %v6280 = vpack.c.bf16 %v6196, %v6192
    %v6281 = vpack.c.bf16 %v6201, %v6197
    %v6282 = vpack.c.bf16 %v6202, %v6198
    %v6283 = vpack.c.bf16 %v6203, %v6199
    %v6284 = vpack.c.bf16 %v6204, %v6200
    %v6285 = vpack.c.bf16 %v6209, %v6205
    %v6286 = vpack.c.bf16 %v6210, %v6206
    %v6287 = vpack.c.bf16 %v6211, %v6207
    %v6288 = vpack.c.bf16 %v6212, %v6208
    %v6289 = vpack.c.bf16 %v6217, %v6213
    %v6290 = vpack.c.bf16 %v6218, %v6214
    %v6291 = vpack.c.bf16 %v6219, %v6215
    %v6292 = vpack.c.bf16 %v6220, %v6216
    %v6293 = vpack.c.bf16 %v6225, %v6221
    %v6294 = vpack.c.bf16 %v6226, %v6222
    %v6295 = vpack.c.bf16 %v6227, %v6223
    %v6296 = vpack.c.bf16 %v6228, %v6224
    %v6297 = vpack.c.bf16 %v6233, %v6229
    %v6298 = vpack.c.bf16 %v6234, %v6230
    %v6299 = vpack.c.bf16 %v6235, %v6231
    %v6300 = vpack.c.bf16 %v6236, %v6232
    %v6301 = vld [vmem:[#allocation7] sm:$0xff]
    %v6302 = vld [vmem:[#allocation7 + $0x8] sm:$0xff]
    %v6303 = vld [vmem:[#allocation7 + $0x10] sm:$0xff]
    %v6304 = vld [vmem:[#allocation7 + $0x18] sm:$0xff]
    %v6305 = vld [vmem:[#allocation7 + $0x20] sm:$0xff]
    %v6306 = vld [vmem:[#allocation7 + $0x28] sm:$0xff]
    %v6307 = vld [vmem:[#allocation7 + $0x30] sm:$0xff]
    %v6308 = vld [vmem:[#allocation7 + $0x38] sm:$0xff]
    %v6309 = vld [vmem:[#allocation7 + $0x40] sm:$0xff]
    %v6310 = vld [vmem:[#allocation7 + $0x48] sm:$0xff]
    %v6311 = vld [vmem:[#allocation7 + $0x50] sm:$0xff]
    %v6312 = vld [vmem:[#allocation7 + $0x58] sm:$0xff]
    %v6313 = vld [vmem:[#allocation7 + $0x60] sm:$0xff]
    %v6314 = vld [vmem:[#allocation7 + $0x68] sm:$0xff]
    %v6315 = vld [vmem:[#allocation7 + $0x70] sm:$0xff]
    %v6316 = vld [vmem:[#allocation7 + $0x78] sm:$0xff]
    %v6317 = vld [vmem:[#allocation7 + $0x80] sm:$0xff]
    %v6318 = vld [vmem:[#allocation7 + $0x88] sm:$0xff]
    %v6319 = vld [vmem:[#allocation7 + $0x90] sm:$0xff]
    %v6320 = vld [vmem:[#allocation7 + $0x98] sm:$0xff]
    %v6321 = vld [vmem:[#allocation7 + $0xa0] sm:$0xff]
    %v6322 = vld [vmem:[#allocation7 + $0xa8] sm:$0xff]
    %v6323 = vld [vmem:[#allocation7 + $0xb0] sm:$0xff]
    %v6324 = vld [vmem:[#allocation7 + $0xb8] sm:$0xff]
    %v6325 = vld [vmem:[#allocation7 + $0xc0] sm:$0xff]
    %v6326 = vld [vmem:[#allocation7 + $0xc8] sm:$0xff]
    %v6327 = vld [vmem:[#allocation7 + $0xd0] sm:$0xff]
    %v6328 = vld [vmem:[#allocation7 + $0xd8] sm:$0xff]
    %v6329 = vld [vmem:[#allocation7 + $0xe0] sm:$0xff]
    %v6330 = vld [vmem:[#allocation7 + $0xe8] sm:$0xff]
    %v6331 = vld [vmem:[#allocation7 + $0xf0] sm:$0xff]
    %v6332 = vld [vmem:[#allocation7 + $0xf8] sm:$0xff]
    %v6333 = vld [vmem:[#allocation7 + $0x100] sm:$0xff]
    %v6334 = vld [vmem:[#allocation7 + $0x108] sm:$0xff]
    %v6335 = vld [vmem:[#allocation7 + $0x110] sm:$0xff]
    %v6336 = vld [vmem:[#allocation7 + $0x118] sm:$0xff]
    %v6337 = vld [vmem:[#allocation7 + $0x120] sm:$0xff]
    %v6338 = vld [vmem:[#allocation7 + $0x128] sm:$0xff]
    %v6339 = vld [vmem:[#allocation7 + $0x130] sm:$0xff]
    %v6340 = vld [vmem:[#allocation7 + $0x138] sm:$0xff]
    %v6341 = vld [vmem:[#allocation7 + $0x140] sm:$0xff]
    %v6342 = vld [vmem:[#allocation7 + $0x148] sm:$0xff]
    %v6343 = vld [vmem:[#allocation7 + $0x150] sm:$0xff]
    %v6344 = vld [vmem:[#allocation7 + $0x158] sm:$0xff]
    %v6345 = vld [vmem:[#allocation7 + $0x160] sm:$0xff]
    %v6346 = vld [vmem:[#allocation7 + $0x168] sm:$0xff]
    %v6347 = vld [vmem:[#allocation7 + $0x170] sm:$0xff]
    %v6348 = vld [vmem:[#allocation7 + $0x178] sm:$0xff]
    %v6349 = vld [vmem:[#allocation7 + $0x180] sm:$0xff]
    %v6350 = vld [vmem:[#allocation7 + $0x188] sm:$0xff]
    %v6351 = vld [vmem:[#allocation7 + $0x190] sm:$0xff]
    %v6352 = vld [vmem:[#allocation7 + $0x198] sm:$0xff]
    %v6353 = vld [vmem:[#allocation7 + $0x1a0] sm:$0xff]
    %v6354 = vld [vmem:[#allocation7 + $0x1a8] sm:$0xff]
    %v6355 = vld [vmem:[#allocation7 + $0x1b0] sm:$0xff]
    %v6356 = vld [vmem:[#allocation7 + $0x1b8] sm:$0xff]
    %v6357 = vld [vmem:[#allocation7 + $0x1c0] sm:$0xff]
    %v6358 = vld [vmem:[#allocation7 + $0x1c8] sm:$0xff]
    %v6359 = vld [vmem:[#allocation7 + $0x1d0] sm:$0xff]
    %v6360 = vld [vmem:[#allocation7 + $0x1d8] sm:$0xff]
    %v6361 = vld [vmem:[#allocation7 + $0x1e0] sm:$0xff]
    %v6362 = vld [vmem:[#allocation7 + $0x1e8] sm:$0xff]
    %v6363 = vld [vmem:[#allocation7 + $0x1f0] sm:$0xff]
    %v6364 = vld [vmem:[#allocation7 + $0x1f8] sm:$0xff]
    %v6365 = vld [vmem:[%s4] sm:$0x3]
    %v6367 = vlaneseq
    %v6368 = vshrl.u32 %v6367, 7
    %v6369 = vsub.s32 0, %v6368
    %v6370 = vrot.slane %v6365, %v6369
    %v6371 = vlaneseq
    %v6372 = vshrl.u32 %v6371, 7
    %v6373 = vsub.s32 1, %v6372
    %v6374 = vrot.slane %v6365, %v6373
    %v6441 = vunpack.c.l.b16 %v6301
    %v6442 = vunpack.c.h.b16 %v6301
    %v6443 = vunpack.c.l.b16 %v6302
    %v6444 = vunpack.c.h.b16 %v6302
    %v6445 = vunpack.c.l.b16 %v6303
    %v6446 = vunpack.c.h.b16 %v6303
    %v6447 = vunpack.c.l.b16 %v6304
    %v6448 = vunpack.c.h.b16 %v6304
    %v6449 = vunpack.c.l.b16 %v6305
    %v6450 = vunpack.c.h.b16 %v6305
    %v6451 = vunpack.c.l.b16 %v6306
    %v6452 = vunpack.c.h.b16 %v6306
    %v6453 = vunpack.c.l.b16 %v6307
    %v6454 = vunpack.c.h.b16 %v6307
    %v6455 = vunpack.c.l.b16 %v6308
    %v6456 = vunpack.c.h.b16 %v6308
    %v6457 = vunpack.c.l.b16 %v6309
    %v6458 = vunpack.c.h.b16 %v6309
    %v6459 = vunpack.c.l.b16 %v6310
    %v6460 = vunpack.c.h.b16 %v6310
    %v6461 = vunpack.c.l.b16 %v6311
    %v6462 = vunpack.c.h.b16 %v6311
    %v6463 = vunpack.c.l.b16 %v6312
    %v6464 = vunpack.c.h.b16 %v6312
    %v6465 = vunpack.c.l.b16 %v6313
    %v6466 = vunpack.c.h.b16 %v6313
    %v6467 = vunpack.c.l.b16 %v6314
    %v6468 = vunpack.c.h.b16 %v6314
    %v6469 = vunpack.c.l.b16 %v6315
    %v6470 = vunpack.c.h.b16 %v6315
    %v6471 = vunpack.c.l.b16 %v6316
    %v6472 = vunpack.c.h.b16 %v6316
    %v6473 = vunpack.c.l.b16 %v6317
    %v6474 = vunpack.c.h.b16 %v6317
    %v6475 = vunpack.c.l.b16 %v6318
    %v6476 = vunpack.c.h.b16 %v6318
    %v6477 = vunpack.c.l.b16 %v6319
    %v6478 = vunpack.c.h.b16 %v6319
    %v6479 = vunpack.c.l.b16 %v6320
    %v6480 = vunpack.c.h.b16 %v6320
    %v6481 = vunpack.c.l.b16 %v6321
    %v6482 = vunpack.c.h.b16 %v6321
    %v6483 = vunpack.c.l.b16 %v6322
    %v6484 = vunpack.c.h.b16 %v6322
    %v6485 = vunpack.c.l.b16 %v6323
    %v6486 = vunpack.c.h.b16 %v6323
    %v6487 = vunpack.c.l.b16 %v6324
    %v6488 = vunpack.c.h.b16 %v6324
    %v6489 = vunpack.c.l.b16 %v6325
    %v6490 = vunpack.c.h.b16 %v6325
    %v6491 = vunpack.c.l.b16 %v6326
    %v6492 = vunpack.c.h.b16 %v6326
    %v6493 = vunpack.c.l.b16 %v6327
    %v6494 = vunpack.c.h.b16 %v6327
    %v6495 = vunpack.c.l.b16 %v6328
    %v6496 = vunpack.c.h.b16 %v6328
    %v6497 = vunpack.c.l.b16 %v6329
    %v6498 = vunpack.c.h.b16 %v6329
    %v6499 = vunpack.c.l.b16 %v6330
    %v6500 = vunpack.c.h.b16 %v6330
    %v6501 = vunpack.c.l.b16 %v6331
    %v6502 = vunpack.c.h.b16 %v6331
    %v6503 = vunpack.c.l.b16 %v6332
    %v6504 = vunpack.c.h.b16 %v6332
    %v6505 = vunpack.c.l.b16 %v6333
    %v6506 = vunpack.c.h.b16 %v6333
    %v6507 = vunpack.c.l.b16 %v6334
    %v6508 = vunpack.c.h.b16 %v6334
    %v6509 = vunpack.c.l.b16 %v6335
    %v6510 = vunpack.c.h.b16 %v6335
    %v6511 = vunpack.c.l.b16 %v6336
    %v6512 = vunpack.c.h.b16 %v6336
    %v6513 = vunpack.c.l.b16 %v6337
    %v6514 = vunpack.c.h.b16 %v6337
    %v6515 = vunpack.c.l.b16 %v6338
    %v6516 = vunpack.c.h.b16 %v6338
    %v6517 = vunpack.c.l.b16 %v6339
    %v6518 = vunpack.c.h.b16 %v6339
    %v6519 = vunpack.c.l.b16 %v6340
    %v6520 = vunpack.c.h.b16 %v6340
    %v6521 = vunpack.c.l.b16 %v6341
    %v6522 = vunpack.c.h.b16 %v6341
    %v6523 = vunpack.c.l.b16 %v6342
    %v6524 = vunpack.c.h.b16 %v6342
    %v6525 = vunpack.c.l.b16 %v6343
    %v6526 = vunpack.c.h.b16 %v6343
    %v6527 = vunpack.c.l.b16 %v6344
    %v6528 = vunpack.c.h.b16 %v6344
    %v6529 = vunpack.c.l.b16 %v6345
    %v6530 = vunpack.c.h.b16 %v6345
    %v6531 = vunpack.c.l.b16 %v6346
    %v6532 = vunpack.c.h.b16 %v6346
    %v6533 = vunpack.c.l.b16 %v6347
    %v6534 = vunpack.c.h.b16 %v6347
    %v6535 = vunpack.c.l.b16 %v6348
    %v6536 = vunpack.c.h.b16 %v6348
    %v6537 = vunpack.c.l.b16 %v6349
    %v6538 = vunpack.c.h.b16 %v6349
    %v6539 = vunpack.c.l.b16 %v6350
    %v6540 = vunpack.c.h.b16 %v6350
    %v6541 = vunpack.c.l.b16 %v6351
    %v6542 = vunpack.c.h.b16 %v6351
    %v6543 = vunpack.c.l.b16 %v6352
    %v6544 = vunpack.c.h.b16 %v6352
    %v6545 = vunpack.c.l.b16 %v6353
    %v6546 = vunpack.c.h.b16 %v6353
    %v6547 = vunpack.c.l.b16 %v6354
    %v6548 = vunpack.c.h.b16 %v6354
    %v6549 = vunpack.c.l.b16 %v6355
    %v6550 = vunpack.c.h.b16 %v6355
    %v6551 = vunpack.c.l.b16 %v6356
    %v6552 = vunpack.c.h.b16 %v6356
    %v6553 = vunpack.c.l.b16 %v6357
    %v6554 = vunpack.c.h.b16 %v6357
    %v6555 = vunpack.c.l.b16 %v6358
    %v6556 = vunpack.c.h.b16 %v6358
    %v6557 = vunpack.c.l.b16 %v6359
    %v6558 = vunpack.c.h.b16 %v6359
    %v6559 = vunpack.c.l.b16 %v6360
    %v6560 = vunpack.c.h.b16 %v6360
    %v6561 = vunpack.c.l.b16 %v6361
    %v6562 = vunpack.c.h.b16 %v6361
    %v6563 = vunpack.c.l.b16 %v6362
    %v6564 = vunpack.c.h.b16 %v6362
    %v6565 = vunpack.c.l.b16 %v6363
    %v6566 = vunpack.c.h.b16 %v6363
    %v6567 = vunpack.c.l.b16 %v6364
    %v6568 = vunpack.c.h.b16 %v6364
    %v6569 = vpack.c.b16 %v6443, %v6441
    %v6570 = vpack.c.b16 %v6444, %v6442
    %v6571 = vpack.c.b16 %v6447, %v6445
    %v6572 = vpack.c.b16 %v6448, %v6446
    %v6573 = vpack.c.b16 %v6451, %v6449
    %v6574 = vpack.c.b16 %v6452, %v6450
    %v6575 = vpack.c.b16 %v6455, %v6453
    %v6576 = vpack.c.b16 %v6456, %v6454
    %v6577 = vpack.c.b16 %v6459, %v6457
    %v6578 = vpack.c.b16 %v6460, %v6458
    %v6579 = vpack.c.b16 %v6463, %v6461
    %v6580 = vpack.c.b16 %v6464, %v6462
    %v6581 = vpack.c.b16 %v6467, %v6465
    %v6582 = vpack.c.b16 %v6468, %v6466
    %v6583 = vpack.c.b16 %v6471, %v6469
    %v6584 = vpack.c.b16 %v6472, %v6470
    %v6585 = vpack.c.b16 %v6475, %v6473
    %v6586 = vpack.c.b16 %v6476, %v6474
    %v6587 = vpack.c.b16 %v6479, %v6477
    %v6588 = vpack.c.b16 %v6480, %v6478
    %v6589 = vpack.c.b16 %v6483, %v6481
    %v6590 = vpack.c.b16 %v6484, %v6482
    %v6591 = vpack.c.b16 %v6487, %v6485
    %v6592 = vpack.c.b16 %v6488, %v6486
    %v6593 = vpack.c.b16 %v6491, %v6489
    %v6594 = vpack.c.b16 %v6492, %v6490
    %v6595 = vpack.c.b16 %v6495, %v6493
    %v6596 = vpack.c.b16 %v6496, %v6494
    %v6597 = vpack.c.b16 %v6499, %v6497
    %v6598 = vpack.c.b16 %v6500, %v6498
    %v6599 = vpack.c.b16 %v6503, %v6501
    %v6600 = vpack.c.b16 %v6504, %v6502
    %v6601 = vpack.c.b16 %v6507, %v6505
    %v6602 = vpack.c.b16 %v6508, %v6506
    %v6603 = vpack.c.b16 %v6511, %v6509
    %v6604 = vpack.c.b16 %v6512, %v6510
    %v6605 = vpack.c.b16 %v6515, %v6513
    %v6606 = vpack.c.b16 %v6516, %v6514
    %v6607 = vpack.c.b16 %v6519, %v6517
    %v6608 = vpack.c.b16 %v6520, %v6518
    %v6609 = vpack.c.b16 %v6523, %v6521
    %v6610 = vpack.c.b16 %v6524, %v6522
    %v6611 = vpack.c.b16 %v6527, %v6525
    %v6612 = vpack.c.b16 %v6528, %v6526
    %v6613 = vpack.c.b16 %v6531, %v6529
    %v6614 = vpack.c.b16 %v6532, %v6530
    %v6615 = vpack.c.b16 %v6535, %v6533
    %v6616 = vpack.c.b16 %v6536, %v6534
    %v6617 = vpack.c.b16 %v6539, %v6537
    %v6618 = vpack.c.b16 %v6540, %v6538
    %v6619 = vpack.c.b16 %v6543, %v6541
    %v6620 = vpack.c.b16 %v6544, %v6542
    %v6621 = vpack.c.b16 %v6547, %v6545
    %v6622 = vpack.c.b16 %v6548, %v6546
    %v6623 = vpack.c.b16 %v6551, %v6549
    %v6624 = vpack.c.b16 %v6552, %v6550
    %v6625 = vpack.c.b16 %v6555, %v6553
    %v6626 = vpack.c.b16 %v6556, %v6554
    %v6627 = vpack.c.b16 %v6559, %v6557
    %v6628 = vpack.c.b16 %v6560, %v6558
    %v6629 = vpack.c.b16 %v6563, %v6561
    %v6630 = vpack.c.b16 %v6564, %v6562
    %v6631 = vpack.c.b16 %v6567, %v6565
    %v6632 = vpack.c.b16 %v6568, %v6566
    %6697 = vmatprep.subr.bf16.mxu0 %v6584
    %6698 = vmatpush1.bf16.msra.mxu0 %v6583
    %6699 = vmatprep.subr.bf16.mxu0 %v6582
    %6700 = vmatpush1.bf16.msra.mxu0 %v6581
    %6701 = vmatprep.subr.bf16.mxu0 %v6580
    %6702 = vmatpush1.bf16.msra.mxu0 %v6579
    %6703 = vmatprep.subr.bf16.mxu0 %v6578
    %6704 = vmatpush1.bf16.msra.mxu0 %v6577
    %6705 = vmatprep.subr.bf16.mxu0 %v6576
    %6706 = vmatpush1.bf16.msra.mxu0 %v6575
    %6707 = vmatprep.subr.bf16.mxu0 %v6574
    %6708 = vmatpush1.bf16.msra.mxu0 %v6573
    %6709 = vmatprep.subr.bf16.mxu0 %v6572
    %6710 = vmatpush1.bf16.msra.mxu0 %v6571
    %6711 = vmatprep.subr.bf16.mxu0 %v6570
    %6712 = vmatpush1.bf16.msra.mxu0 %v6569
    %6713 = vmatprep.subr.bf16.mxu0 %v6600
    %6714 = vmatpush2.bf16.msra.mxu0 %v6599
    %6715 = vmatprep.subr.bf16.mxu0 %v6598
    %6716 = vmatpush2.bf16.msra.mxu0 %v6597
    %6717 = vmatprep.subr.bf16.mxu0 %v6596
    %6718 = vmatpush2.bf16.msra.mxu0 %v6595
    %6719 = vmatprep.subr.bf16.mxu0 %v6594
    %6720 = vmatpush2.bf16.msra.mxu0 %v6593
    %6721 = vmatprep.subr.bf16.mxu0 %v6592
    %6722 = vmatpush2.bf16.msra.mxu0 %v6591
    %6723 = vmatprep.subr.bf16.mxu0 %v6590
    %6724 = vmatpush2.bf16.msra.mxu0 %v6589
    %6725 = vmatprep.subr.bf16.mxu0 %v6588
    %6726 = vmatpush2.bf16.msra.mxu0 %v6587
    %6727 = vmatprep.subr.bf16.mxu0 %v6586
    %6728 = vmatpush2.bf16.msra.mxu0 %v6585
    %6729 = vmatprep.mubr.bf16.mxu0 %v6238
    %6730 = vmatmul.mubr.bf16.gmra.mxu0 %v6237
    %v6731 = vpop.f32.mrf.mxu0
    %v6732 = vadd.f32 %v6370, %v6731
    %v6733 = vpop.f32.mrf.mxu0
    %v6734 = vadd.f32 %v6374, %v6733
    %v6735 = vpop.f32.mrf.mxu0
    %v6736 = vadd.f32 %v6370, %v6735
    %v6737 = vpop.f32.mrf.mxu0
    %v6738 = vadd.f32 %v6374, %v6737
    %6739 = vmatprep.mubr.bf16.mxu0 %v6242
    %6740 = vmatmul.mubr.bf16.gmra.mxu0 %v6241
    %v6741 = vpop.f32.mrf.mxu0
    %v6742 = vadd.f32 %v6370, %v6741
    %v6743 = vpop.f32.mrf.mxu0
    %v6744 = vadd.f32 %v6374, %v6743
    %v6745 = vpop.f32.mrf.mxu0
    %v6746 = vadd.f32 %v6370, %v6745
    %v6747 = vpop.f32.mrf.mxu0
    %v6748 = vadd.f32 %v6374, %v6747
    %6749 = vmatprep.mubr.bf16.mxu0 %v6246
    %6750 = vmatmul.mubr.bf16.gmra.mxu0 %v6245
    %v6751 = vpop.f32.mrf.mxu0
    %v6752 = vadd.f32 %v6370, %v6751
    %v6753 = vpop.f32.mrf.mxu0
    %v6754 = vadd.f32 %v6374, %v6753
    %v6755 = vpop.f32.mrf.mxu0
    %v6756 = vadd.f32 %v6370, %v6755
    %v6757 = vpop.f32.mrf.mxu0
    %v6758 = vadd.f32 %v6374, %v6757
    %6759 = vmatprep.mubr.bf16.mxu0 %v6250
    %6760 = vmatmul.mubr.bf16.gmra.mxu0 %v6249
    %v6761 = vpop.f32.mrf.mxu0
    %v6762 = vadd.f32 %v6370, %v6761
    %v6763 = vpop.f32.mrf.mxu0
    %v6764 = vadd.f32 %v6374, %v6763
    %v6765 = vpop.f32.mrf.mxu0
    %v6766 = vadd.f32 %v6370, %v6765
    %v6767 = vpop.f32.mrf.mxu0
    %v6768 = vadd.f32 %v6374, %v6767
    %6769 = vmatprep.mubr.bf16.mxu0 %v6254
    %6770 = vmatmul.mubr.bf16.gmra.mxu0 %v6253
    %v6771 = vpop.f32.mrf.mxu0
    %v6772 = vadd.f32 %v6370, %v6771
    %v6773 = vpop.f32.mrf.mxu0
    %v6774 = vadd.f32 %v6374, %v6773
    %v6775 = vpop.f32.mrf.mxu0
    %v6776 = vadd.f32 %v6370, %v6775
    %v6777 = vpop.f32.mrf.mxu0
    %v6778 = vadd.f32 %v6374, %v6777
    %6779 = vmatprep.mubr.bf16.mxu0 %v6258
    %6780 = vmatmul.mubr.bf16.gmra.mxu0 %v6257
    %v6781 = vpop.f32.mrf.mxu0
    %v6782 = vadd.f32 %v6370, %v6781
    %v6783 = vpop.f32.mrf.mxu0
    %v6784 = vadd.f32 %v6374, %v6783
    %v6785 = vpop.f32.mrf.mxu0
    %v6786 = vadd.f32 %v6370, %v6785
    %v6787 = vpop.f32.mrf.mxu0
    %v6788 = vadd.f32 %v6374, %v6787
    %6789 = vmatprep.mubr.bf16.mxu0 %v6262
    %6790 = vmatmul.mubr.bf16.gmra.mxu0 %v6261
    %v6791 = vpop.f32.mrf.mxu0
    %v6792 = vadd.f32 %v6370, %v6791
    %v6793 = vpop.f32.mrf.mxu0
    %v6794 = vadd.f32 %v6374, %v6793
    %v6795 = vpop.f32.mrf.mxu0
    %v6796 = vadd.f32 %v6370, %v6795
    %v6797 = vpop.f32.mrf.mxu0
    %v6798 = vadd.f32 %v6374, %v6797
    %6799 = vmatprep.mubr.bf16.mxu0 %v6266
    %6800 = vmatmul.mubr.bf16.gmra.mxu0 %v6265
    %v6801 = vpop.f32.mrf.mxu0
    %v6802 = vadd.f32 %v6370, %v6801
    %v6803 = vpop.f32.mrf.mxu0
    %v6804 = vadd.f32 %v6374, %v6803
    %v6805 = vpop.f32.mrf.mxu0
    %v6806 = vadd.f32 %v6370, %v6805
    %v6807 = vpop.f32.mrf.mxu0
    %v6808 = vadd.f32 %v6374, %v6807
    %6809 = vmatprep.mubr.bf16.mxu0 %v6270
    %6810 = vmatmul.mubr.bf16.gmra.mxu0 %v6269
    %v6811 = vpop.f32.mrf.mxu0
    %v6812 = vadd.f32 %v6370, %v6811
    %v6813 = vpop.f32.mrf.mxu0
    %v6814 = vadd.f32 %v6374, %v6813
    %v6815 = vpop.f32.mrf.mxu0
    %v6816 = vadd.f32 %v6370, %v6815
    %v6817 = vpop.f32.mrf.mxu0
    %v6818 = vadd.f32 %v6374, %v6817
    %6819 = vmatprep.mubr.bf16.mxu0 %v6274
    %6820 = vmatmul.mubr.bf16.gmra.mxu0 %v6273
    %v6821 = vpop.f32.mrf.mxu0
    %v6822 = vadd.f32 %v6370, %v6821
    %v6823 = vpop.f32.mrf.mxu0
    %v6824 = vadd.f32 %v6374, %v6823
    %v6825 = vpop.f32.mrf.mxu0
    %v6826 = vadd.f32 %v6370, %v6825
    %v6827 = vpop.f32.mrf.mxu0
    %v6828 = vadd.f32 %v6374, %v6827
    %6829 = vmatprep.mubr.bf16.mxu0 %v6278
    %6830 = vmatmul.mubr.bf16.gmra.mxu0 %v6277
    %v6831 = vpop.f32.mrf.mxu0
    %v6832 = vadd.f32 %v6370, %v6831
    %v6833 = vpop.f32.mrf.mxu0
    %v6834 = vadd.f32 %v6374, %v6833
    %v6835 = vpop.f32.mrf.mxu0
    %v6836 = vadd.f32 %v6370, %v6835
    %v6837 = vpop.f32.mrf.mxu0
    %v6838 = vadd.f32 %v6374, %v6837
    %6839 = vmatprep.mubr.bf16.mxu0 %v6282
    %6840 = vmatmul.mubr.bf16.gmra.mxu0 %v6281
    %v6841 = vpop.f32.mrf.mxu0
    %v6842 = vadd.f32 %v6370, %v6841
    %v6843 = vpop.f32.mrf.mxu0
    %v6844 = vadd.f32 %v6374, %v6843
    %v6845 = vpop.f32.mrf.mxu0
    %v6846 = vadd.f32 %v6370, %v6845
    %v6847 = vpop.f32.mrf.mxu0
    %v6848 = vadd.f32 %v6374, %v6847
    %6849 = vmatprep.mubr.bf16.mxu0 %v6286
    %6850 = vmatmul.mubr.bf16.gmra.mxu0 %v6285
    %v6851 = vpop.f32.mrf.mxu0
    %v6852 = vadd.f32 %v6370, %v6851
    %v6853 = vpop.f32.mrf.mxu0
    %v6854 = vadd.f32 %v6374, %v6853
    %v6855 = vpop.f32.mrf.mxu0
    %v6856 = vadd.f32 %v6370, %v6855
    %v6857 = vpop.f32.mrf.mxu0
    %v6858 = vadd.f32 %v6374, %v6857
    %6859 = vmatprep.mubr.bf16.mxu0 %v6290
    %6860 = vmatmul.mubr.bf16.gmra.mxu0 %v6289
    %v6861 = vpop.f32.mrf.mxu0
    %v6862 = vadd.f32 %v6370, %v6861
    %v6863 = vpop.f32.mrf.mxu0
    %v6864 = vadd.f32 %v6374, %v6863
    %v6865 = vpop.f32.mrf.mxu0
    %v6866 = vadd.f32 %v6370, %v6865
    %v6867 = vpop.f32.mrf.mxu0
    %v6868 = vadd.f32 %v6374, %v6867
    %6869 = vmatprep.mubr.bf16.mxu0 %v6294
    %6870 = vmatmul.mubr.bf16.gmra.mxu0 %v6293
    %v6871 = vpop.f32.mrf.mxu0
    %v6872 = vadd.f32 %v6370, %v6871
    %v6873 = vpop.f32.mrf.mxu0
    %v6874 = vadd.f32 %v6374, %v6873
    %v6875 = vpop.f32.mrf.mxu0
    %v6876 = vadd.f32 %v6370, %v6875
    %v6877 = vpop.f32.mrf.mxu0
    %v6878 = vadd.f32 %v6374, %v6877
    %6879 = vmatprep.mubr.bf16.mxu0 %v6298
    %6880 = vmatmul.mubr.bf16.gmra.mxu0 %v6297
    %v6881 = vpop.f32.mrf.mxu0
    %v6882 = vadd.f32 %v6370, %v6881
    %v6883 = vpop.f32.mrf.mxu0
    %v6884 = vadd.f32 %v6374, %v6883
    %v6885 = vpop.f32.mrf.mxu0
    %v6886 = vadd.f32 %v6370, %v6885
    %v6887 = vpop.f32.mrf.mxu0
    %v6888 = vadd.f32 %v6374, %v6887
    %6889 = vdwg.mxu0
    %6890 = vmatprep.subr.bf16.mxu0 %v6616
    %6891 = vmatpush1.bf16.msra.mxu0 %v6615
    %6892 = vmatprep.subr.bf16.mxu0 %v6614
    %6893 = vmatpush1.bf16.msra.mxu0 %v6613
    %6894 = vmatprep.subr.bf16.mxu0 %v6612
    %6895 = vmatpush1.bf16.msra.mxu0 %v6611
    %6896 = vmatprep.subr.bf16.mxu0 %v6610
    %6897 = vmatpush1.bf16.msra.mxu0 %v6609
    %6898 = vmatprep.subr.bf16.mxu0 %v6608
    %6899 = vmatpush1.bf16.msra.mxu0 %v6607
    %6900 = vmatprep.subr.bf16.mxu0 %v6606
    %6901 = vmatpush1.bf16.msra.mxu0 %v6605
    %6902 = vmatprep.subr.bf16.mxu0 %v6604
    %6903 = vmatpush1.bf16.msra.mxu0 %v6603
    %6904 = vmatprep.subr.bf16.mxu0 %v6602
    %6905 = vmatpush1.bf16.msra.mxu0 %v6601
    %6906 = vmatprep.subr.bf16.mxu0 %v6632
    %6907 = vmatpush2.bf16.msra.mxu0 %v6631
    %6908 = vmatprep.subr.bf16.mxu0 %v6630
    %6909 = vmatpush2.bf16.msra.mxu0 %v6629
    %6910 = vmatprep.subr.bf16.mxu0 %v6628
    %6911 = vmatpush2.bf16.msra.mxu0 %v6627
    %6912 = vmatprep.subr.bf16.mxu0 %v6626
    %6913 = vmatpush2.bf16.msra.mxu0 %v6625
    %6914 = vmatprep.subr.bf16.mxu0 %v6624
    %6915 = vmatpush2.bf16.msra.mxu0 %v6623
    %6916 = vmatprep.subr.bf16.mxu0 %v6622
    %6917 = vmatpush2.bf16.msra.mxu0 %v6621
    %6918 = vmatprep.subr.bf16.mxu0 %v6620
    %6919 = vmatpush2.bf16.msra.mxu0 %v6619
    %6920 = vmatprep.subr.bf16.mxu0 %v6618
    %6921 = vmatpush2.bf16.msra.mxu0 %v6617
    %6922 = vmatprep.mubr.bf16.mxu0 %v6240
    %6923 = vmatmul.mubr.bf16.gmra.mxu0 %v6239
    %v6924 = vpop.f32.mrf.mxu0
    %v6925 = vadd.f32 %v6732, %v6924
    %v6926 = vpop.f32.mrf.mxu0
    %v6927 = vadd.f32 %v6734, %v6926
    %v6928 = vpop.f32.mrf.mxu0
    %v6929 = vadd.f32 %v6736, %v6928
    %v6930 = vpop.f32.mrf.mxu0
    %v6931 = vadd.f32 %v6738, %v6930
    %6932 = vmatprep.mubr.bf16.mxu0 %v6244
    %6933 = vmatmul.mubr.bf16.gmra.mxu0 %v6243
    %v6934 = vpop.f32.mrf.mxu0
    %v6935 = vadd.f32 %v6742, %v6934
    %v6936 = vpop.f32.mrf.mxu0
    %v6937 = vadd.f32 %v6744, %v6936
    %v6938 = vpop.f32.mrf.mxu0
    %v6939 = vadd.f32 %v6746, %v6938
    %v6940 = vpop.f32.mrf.mxu0
    %v6941 = vadd.f32 %v6748, %v6940
    %6942 = vmatprep.mubr.bf16.mxu0 %v6248
    %6943 = vmatmul.mubr.bf16.gmra.mxu0 %v6247
    %v6944 = vpop.f32.mrf.mxu0
    %v6945 = vadd.f32 %v6752, %v6944
    %v6946 = vpop.f32.mrf.mxu0
    %v6947 = vadd.f32 %v6754, %v6946
    %v6948 = vpop.f32.mrf.mxu0
    %v6949 = vadd.f32 %v6756, %v6948
    %v6950 = vpop.f32.mrf.mxu0
    %v6951 = vadd.f32 %v6758, %v6950
    %6952 = vmatprep.mubr.bf16.mxu0 %v6252
    %6953 = vmatmul.mubr.bf16.gmra.mxu0 %v6251
    %v6954 = vpop.f32.mrf.mxu0
    %v6955 = vadd.f32 %v6762, %v6954
    %v6956 = vpop.f32.mrf.mxu0
    %v6957 = vadd.f32 %v6764, %v6956
    %v6958 = vpop.f32.mrf.mxu0
    %v6959 = vadd.f32 %v6766, %v6958
    %v6960 = vpop.f32.mrf.mxu0
    %v6961 = vadd.f32 %v6768, %v6960
    %6962 = vmatprep.mubr.bf16.mxu0 %v6256
    %6963 = vmatmul.mubr.bf16.gmra.mxu0 %v6255
    %v6964 = vpop.f32.mrf.mxu0
    %v6965 = vadd.f32 %v6772, %v6964
    %v6966 = vpop.f32.mrf.mxu0
    %v6967 = vadd.f32 %v6774, %v6966
    %v6968 = vpop.f32.mrf.mxu0
    %v6969 = vadd.f32 %v6776, %v6968
    %v6970 = vpop.f32.mrf.mxu0
    %v6971 = vadd.f32 %v6778, %v6970
    %6972 = vmatprep.mubr.bf16.mxu0 %v6260
    %6973 = vmatmul.mubr.bf16.gmra.mxu0 %v6259
    %v6974 = vpop.f32.mrf.mxu0
    %v6975 = vadd.f32 %v6782, %v6974
    %v6976 = vpop.f32.mrf.mxu0
    %v6977 = vadd.f32 %v6784, %v6976
    %v6978 = vpop.f32.mrf.mxu0
    %v6979 = vadd.f32 %v6786, %v6978
    %v6980 = vpop.f32.mrf.mxu0
    %v6981 = vadd.f32 %v6788, %v6980
    %6982 = vmatprep.mubr.bf16.mxu0 %v6264
    %6983 = vmatmul.mubr.bf16.gmra.mxu0 %v6263
    %v6984 = vpop.f32.mrf.mxu0
    %v6985 = vadd.f32 %v6792, %v6984
    %v6986 = vpop.f32.mrf.mxu0
    %v6987 = vadd.f32 %v6794, %v6986
    %v6988 = vpop.f32.mrf.mxu0
    %v6989 = vadd.f32 %v6796, %v6988
    %v6990 = vpop.f32.mrf.mxu0
    %v6991 = vadd.f32 %v6798, %v6990
    %6992 = vmatprep.mubr.bf16.mxu0 %v6268
    %6993 = vmatmul.mubr.bf16.gmra.mxu0 %v6267
    %v6994 = vpop.f32.mrf.mxu0
    %v6995 = vadd.f32 %v6802, %v6994
    %v6996 = vpop.f32.mrf.mxu0
    %v6997 = vadd.f32 %v6804, %v6996
    %v6998 = vpop.f32.mrf.mxu0
    %v6999 = vadd.f32 %v6806, %v6998
    %v7000 = vpop.f32.mrf.mxu0
    %v7001 = vadd.f32 %v6808, %v7000
    %7002 = vmatprep.mubr.bf16.mxu0 %v6272
    %7003 = vmatmul.mubr.bf16.gmra.mxu0 %v6271
    %v7004 = vpop.f32.mrf.mxu0
    %v7005 = vadd.f32 %v6812, %v7004
    %v7006 = vpop.f32.mrf.mxu0
    %v7007 = vadd.f32 %v6814, %v7006
    %v7008 = vpop.f32.mrf.mxu0
    %v7009 = vadd.f32 %v6816, %v7008
    %v7010 = vpop.f32.mrf.mxu0
    %v7011 = vadd.f32 %v6818, %v7010
    %7012 = vmatprep.mubr.bf16.mxu0 %v6276
    %7013 = vmatmul.mubr.bf16.gmra.mxu0 %v6275
    %v7014 = vpop.f32.mrf.mxu0
    %v7015 = vadd.f32 %v6822, %v7014
    %v7016 = vpop.f32.mrf.mxu0
    %v7017 = vadd.f32 %v6824, %v7016
    %v7018 = vpop.f32.mrf.mxu0
    %v7019 = vadd.f32 %v6826, %v7018
    %v7020 = vpop.f32.mrf.mxu0
    %v7021 = vadd.f32 %v6828, %v7020
    %7022 = vmatprep.mubr.bf16.mxu0 %v6280
    %7023 = vmatmul.mubr.bf16.gmra.mxu0 %v6279
    %v7024 = vpop.f32.mrf.mxu0
    %v7025 = vadd.f32 %v6832, %v7024
    %v7026 = vpop.f32.mrf.mxu0
    %v7027 = vadd.f32 %v6834, %v7026
    %v7028 = vpop.f32.mrf.mxu0
    %v7029 = vadd.f32 %v6836, %v7028
    %v7030 = vpop.f32.mrf.mxu0
    %v7031 = vadd.f32 %v6838, %v7030
    %7032 = vmatprep.mubr.bf16.mxu0 %v6284
    %7033 = vmatmul.mubr.bf16.gmra.mxu0 %v6283
    %v7034 = vpop.f32.mrf.mxu0
    %v7035 = vadd.f32 %v6842, %v7034
    %v7036 = vpop.f32.mrf.mxu0
    %v7037 = vadd.f32 %v6844, %v7036
    %v7038 = vpop.f32.mrf.mxu0
    %v7039 = vadd.f32 %v6846, %v7038
    %v7040 = vpop.f32.mrf.mxu0
    %v7041 = vadd.f32 %v6848, %v7040
    %7042 = vmatprep.mubr.bf16.mxu0 %v6288
    %7043 = vmatmul.mubr.bf16.gmra.mxu0 %v6287
    %v7044 = vpop.f32.mrf.mxu0
    %v7045 = vadd.f32 %v6852, %v7044
    %v7046 = vpop.f32.mrf.mxu0
    %v7047 = vadd.f32 %v6854, %v7046
    %v7048 = vpop.f32.mrf.mxu0
    %v7049 = vadd.f32 %v6856, %v7048
    %v7050 = vpop.f32.mrf.mxu0
    %v7051 = vadd.f32 %v6858, %v7050
    %7052 = vmatprep.mubr.bf16.mxu0 %v6292
    %7053 = vmatmul.mubr.bf16.gmra.mxu0 %v6291
    %v7054 = vpop.f32.mrf.mxu0
    %v7055 = vadd.f32 %v6862, %v7054
    %v7056 = vpop.f32.mrf.mxu0
    %v7057 = vadd.f32 %v6864, %v7056
    %v7058 = vpop.f32.mrf.mxu0
    %v7059 = vadd.f32 %v6866, %v7058
    %v7060 = vpop.f32.mrf.mxu0
    %v7061 = vadd.f32 %v6868, %v7060
    %7062 = vmatprep.mubr.bf16.mxu0 %v6296
    %7063 = vmatmul.mubr.bf16.gmra.mxu0 %v6295
    %v7064 = vpop.f32.mrf.mxu0
    %v7065 = vadd.f32 %v6872, %v7064
    %v7066 = vpop.f32.mrf.mxu0
    %v7067 = vadd.f32 %v6874, %v7066
    %v7068 = vpop.f32.mrf.mxu0
    %v7069 = vadd.f32 %v6876, %v7068
    %v7070 = vpop.f32.mrf.mxu0
    %v7071 = vadd.f32 %v6878, %v7070
    %7072 = vmatprep.mubr.bf16.mxu0 %v6300
    %7073 = vmatmul.mubr.bf16.gmra.mxu0 %v6299
    %v7074 = vpop.f32.mrf.mxu0
    %v7075 = vadd.f32 %v6882, %v7074
    %v7076 = vpop.f32.mrf.mxu0
    %v7077 = vadd.f32 %v6884, %v7076
    %v7078 = vpop.f32.mrf.mxu0
    %v7079 = vadd.f32 %v6886, %v7078
    %v7080 = vpop.f32.mrf.mxu0
    %v7081 = vadd.f32 %v6888, %v7080
    %7082 = vdwg.mxu0
    %v7083 = vmul.f32 %v6925, 0.2
    %v7084 = vmul.f32 %v6927, 0.2
    %v7085 = vmul.f32 %v6929, 0.2
    %v7086 = vmul.f32 %v6931, 0.2
    %v7087 = vmul.f32 %v6935, 0.2
    %v7088 = vmul.f32 %v6937, 0.2
    %v7089 = vmul.f32 %v6939, 0.2
    %v7090 = vmul.f32 %v6941, 0.2
    %v7091 = vmul.f32 %v6945, 0.2
    %v7092 = vmul.f32 %v6947, 0.2
    %v7093 = vmul.f32 %v6949, 0.2
    %v7094 = vmul.f32 %v6951, 0.2
    %v7095 = vmul.f32 %v6955, 0.2
    %v7096 = vmul.f32 %v6957, 0.2
    %v7097 = vmul.f32 %v6959, 0.2
    %v7098 = vmul.f32 %v6961, 0.2
    %v7099 = vmul.f32 %v6965, 0.2
    %v7100 = vmul.f32 %v6967, 0.2
    %v7101 = vmul.f32 %v6969, 0.2
    %v7102 = vmul.f32 %v6971, 0.2
    %v7103 = vmul.f32 %v6975, 0.2
    %v7104 = vmul.f32 %v6977, 0.2
    %v7105 = vmul.f32 %v6979, 0.2
    %v7106 = vmul.f32 %v6981, 0.2
    %v7107 = vmul.f32 %v6985, 0.2
    %v7108 = vmul.f32 %v6987, 0.2
    %v7109 = vmul.f32 %v6989, 0.2
    %v7110 = vmul.f32 %v6991, 0.2
    %v7111 = vmul.f32 %v6995, 0.2
    %v7112 = vmul.f32 %v6997, 0.2
    %v7113 = vmul.f32 %v6999, 0.2
    %v7114 = vmul.f32 %v7001, 0.2
    %v7115 = vmul.f32 %v7005, 0.2
    %v7116 = vmul.f32 %v7007, 0.2
    %v7117 = vmul.f32 %v7009, 0.2
    %v7118 = vmul.f32 %v7011, 0.2
    %v7119 = vmul.f32 %v7015, 0.2
    %v7120 = vmul.f32 %v7017, 0.2
    %v7121 = vmul.f32 %v7019, 0.2
    %v7122 = vmul.f32 %v7021, 0.2
    %v7123 = vmul.f32 %v7025, 0.2
    %v7124 = vmul.f32 %v7027, 0.2
    %v7125 = vmul.f32 %v7029, 0.2
    %v7126 = vmul.f32 %v7031, 0.2
    %v7127 = vmul.f32 %v7035, 0.2
    %v7128 = vmul.f32 %v7037, 0.2
    %v7129 = vmul.f32 %v7039, 0.2
    %v7130 = vmul.f32 %v7041, 0.2
    %v7131 = vmul.f32 %v7045, 0.2
    %v7132 = vmul.f32 %v7047, 0.2
    %v7133 = vmul.f32 %v7049, 0.2
    %v7134 = vmul.f32 %v7051, 0.2
    %v7135 = vmul.f32 %v7055, 0.2
    %v7136 = vmul.f32 %v7057, 0.2
    %v7137 = vmul.f32 %v7059, 0.2
    %v7138 = vmul.f32 %v7061, 0.2
    %v7139 = vmul.f32 %v7065, 0.2
    %v7140 = vmul.f32 %v7067, 0.2
    %v7141 = vmul.f32 %v7069, 0.2
    %v7142 = vmul.f32 %v7071, 0.2
    %v7143 = vmul.f32 %v7075, 0.2
    %v7144 = vmul.f32 %v7077, 0.2
    %v7145 = vmul.f32 %v7079, 0.2
    %v7146 = vmul.f32 %v7081, 0.2
    %v7147 = vmax.f32 %v6925, %v7083
    %v7148 = vmax.f32 %v6927, %v7084
    %v7149 = vmax.f32 %v6929, %v7085
    %v7150 = vmax.f32 %v6931, %v7086
    %v7151 = vmax.f32 %v6935, %v7087
    %v7152 = vmax.f32 %v6937, %v7088
    %v7153 = vmax.f32 %v6939, %v7089
    %v7154 = vmax.f32 %v6941, %v7090
    %v7155 = vmax.f32 %v6945, %v7091
    %v7156 = vmax.f32 %v6947, %v7092
    %v7157 = vmax.f32 %v6949, %v7093
    %v7158 = vmax.f32 %v6951, %v7094
    %v7159 = vmax.f32 %v6955, %v7095
    %v7160 = vmax.f32 %v6957, %v7096
    %v7161 = vmax.f32 %v6959, %v7097
    %v7162 = vmax.f32 %v6961, %v7098
    %v7163 = vmax.f32 %v6965, %v7099
    %v7164 = vmax.f32 %v6967, %v7100
    %v7165 = vmax.f32 %v6969, %v7101
    %v7166 = vmax.f32 %v6971, %v7102
    %v7167 = vmax.f32 %v6975, %v7103
    %v7168 = vmax.f32 %v6977, %v7104
    %v7169 = vmax.f32 %v6979, %v7105
    %v7170 = vmax.f32 %v6981, %v7106
    %v7171 = vmax.f32 %v6985, %v7107
    %v7172 = vmax.f32 %v6987, %v7108
    %v7173 = vmax.f32 %v6989, %v7109
    %v7174 = vmax.f32 %v6991, %v7110
    %v7175 = vmax.f32 %v6995, %v7111
    %v7176 = vmax.f32 %v6997, %v7112
    %v7177 = vmax.f32 %v6999, %v7113
    %v7178 = vmax.f32 %v7001, %v7114
    %v7179 = vmax.f32 %v7005, %v7115
    %v7180 = vmax.f32 %v7007, %v7116
    %v7181 = vmax.f32 %v7009, %v7117
    %v7182 = vmax.f32 %v7011, %v7118
    %v7183 = vmax.f32 %v7015, %v7119
    %v7184 = vmax.f32 %v7017, %v7120
    %v7185 = vmax.f32 %v7019, %v7121
    %v7186 = vmax.f32 %v7021, %v7122
    %v7187 = vmax.f32 %v7025, %v7123
    %v7188 = vmax.f32 %v7027, %v7124
    %v7189 = vmax.f32 %v7029, %v7125
    %v7190 = vmax.f32 %v7031, %v7126
    %v7191 = vmax.f32 %v7035, %v7127
    %v7192 = vmax.f32 %v7037, %v7128
    %v7193 = vmax.f32 %v7039, %v7129
    %v7194 = vmax.f32 %v7041, %v7130
    %v7195 = vmax.f32 %v7045, %v7131
    %v7196 = vmax.f32 %v7047, %v7132
    %v7197 = vmax.f32 %v7049, %v7133
    %v7198 = vmax.f32 %v7051, %v7134
    %v7199 = vmax.f32 %v7055, %v7135
    %v7200 = vmax.f32 %v7057, %v7136
    %v7201 = vmax.f32 %v7059, %v7137
    %v7202 = vmax.f32 %v7061, %v7138
    %v7203 = vmax.f32 %v7065, %v7139
    %v7204 = vmax.f32 %v7067, %v7140
    %v7205 = vmax.f32 %v7069, %v7141
    %v7206 = vmax.f32 %v7071, %v7142
    %v7207 = vmax.f32 %v7075, %v7143
    %v7208 = vmax.f32 %v7077, %v7144
    %v7209 = vmax.f32 %v7079, %v7145
    %v7210 = vmax.f32 %v7081, %v7146
    %v7211 = vld [vmem:[%s5] sm:$0x3]
    %v7213 = vlaneseq
    %v7214 = vshrl.u32 %v7213, 7
    %v7215 = vsub.s32 0, %v7214
    %v7216 = vrot.slane %v7211, %v7215
    %v7217 = vlaneseq
    %v7218 = vshrl.u32 %v7217, 7
    %v7219 = vsub.s32 1, %v7218
    %v7220 = vrot.slane %v7211, %v7219
    %v7223 = vmul.f32 %v7147, %v7216
    %v7224 = vmul.f32 %v7148, %v7220
    %v7225 = vmul.f32 %v7149, %v7216
    %v7226 = vmul.f32 %v7150, %v7220
    %v7227 = vmul.f32 %v7151, %v7216
    %v7228 = vmul.f32 %v7152, %v7220
    %v7229 = vmul.f32 %v7153, %v7216
    %v7230 = vmul.f32 %v7154, %v7220
    %v7231 = vmul.f32 %v7155, %v7216
    %v7232 = vmul.f32 %v7156, %v7220
    %v7233 = vmul.f32 %v7157, %v7216
    %v7234 = vmul.f32 %v7158, %v7220
    %v7235 = vmul.f32 %v7159, %v7216
    %v7236 = vmul.f32 %v7160, %v7220
    %v7237 = vmul.f32 %v7161, %v7216
    %v7238 = vmul.f32 %v7162, %v7220
    %v7239 = vmul.f32 %v7163, %v7216
    %v7240 = vmul.f32 %v7164, %v7220
    %v7241 = vmul.f32 %v7165, %v7216
    %v7242 = vmul.f32 %v7166, %v7220
    %v7243 = vmul.f32 %v7167, %v7216
    %v7244 = vmul.f32 %v7168, %v7220
    %v7245 = vmul.f32 %v7169, %v7216
    %v7246 = vmul.f32 %v7170, %v7220
    %v7247 = vmul.f32 %v7171, %v7216
    %v7248 = vmul.f32 %v7172, %v7220
    %v7249 = vmul.f32 %v7173, %v7216
    %v7250 = vmul.f32 %v7174, %v7220
    %v7251 = vmul.f32 %v7175, %v7216
    %v7252 = vmul.f32 %v7176, %v7220
    %v7253 = vmul.f32 %v7177, %v7216
    %v7254 = vmul.f32 %v7178, %v7220
    %v7255 = vmul.f32 %v7179, %v7216
    %v7256 = vmul.f32 %v7180, %v7220
    %v7257 = vmul.f32 %v7181, %v7216
    %v7258 = vmul.f32 %v7182, %v7220
    %v7259 = vmul.f32 %v7183, %v7216
    %v7260 = vmul.f32 %v7184, %v7220
    %v7261 = vmul.f32 %v7185, %v7216
    %v7262 = vmul.f32 %v7186, %v7220
    %v7263 = vmul.f32 %v7187, %v7216
    %v7264 = vmul.f32 %v7188, %v7220
    %v7265 = vmul.f32 %v7189, %v7216
    %v7266 = vmul.f32 %v7190, %v7220
    %v7267 = vmul.f32 %v7191, %v7216
    %v7268 = vmul.f32 %v7192, %v7220
    %v7269 = vmul.f32 %v7193, %v7216
    %v7270 = vmul.f32 %v7194, %v7220
    %v7271 = vmul.f32 %v7195, %v7216
    %v7272 = vmul.f32 %v7196, %v7220
    %v7273 = vmul.f32 %v7197, %v7216
    %v7274 = vmul.f32 %v7198, %v7220
    %v7275 = vmul.f32 %v7199, %v7216
    %v7276 = vmul.f32 %v7200, %v7220
    %v7277 = vmul.f32 %v7201, %v7216
    %v7278 = vmul.f32 %v7202, %v7220
    %v7279 = vmul.f32 %v7203, %v7216
    %v7280 = vmul.f32 %v7204, %v7220
    %v7281 = vmul.f32 %v7205, %v7216
    %v7282 = vmul.f32 %v7206, %v7220
    %v7283 = vmul.f32 %v7207, %v7216
    %v7284 = vmul.f32 %v7208, %v7220
    %v7285 = vmul.f32 %v7209, %v7216
    %v7286 = vmul.f32 %v7210, %v7220
    %v7287 = vadd.f32 %v7223, %v7224
    %7288 = vadd.xlane.f32.xlu0 %v7287
    %v7289 = vpop.xlane.xlu0 %7288
    %v7290 = vadd.f32 %v7225, %v7226
    %7291 = vadd.xlane.f32.xlu0 %v7290
    %v7292 = vpop.xlane.xlu0 %7291
    %v7293 = vadd.f32 %v7227, %v7228
    %7294 = vadd.xlane.f32.xlu0 %v7293
    %v7295 = vpop.xlane.xlu0 %7294
    %v7296 = vadd.f32 %v7229, %v7230
    %7297 = vadd.xlane.f32.xlu0 %v7296
    %v7298 = vpop.xlane.xlu0 %7297
    %v7299 = vadd.f32 %v7231, %v7232
    %7300 = vadd.xlane.f32.xlu0 %v7299
    %v7301 = vpop.xlane.xlu0 %7300
    %v7302 = vadd.f32 %v7233, %v7234
    %7303 = vadd.xlane.f32.xlu0 %v7302
    %v7304 = vpop.xlane.xlu0 %7303
    %v7305 = vadd.f32 %v7235, %v7236
    %7306 = vadd.xlane.f32.xlu0 %v7305
    %v7307 = vpop.xlane.xlu0 %7306
    %v7308 = vadd.f32 %v7237, %v7238
    %7309 = vadd.xlane.f32.xlu0 %v7308
    %v7310 = vpop.xlane.xlu0 %7309
    %v7311 = vadd.f32 %v7239, %v7240
    %7312 = vadd.xlane.f32.xlu0 %v7311
    %v7313 = vpop.xlane.xlu0 %7312
    %v7314 = vadd.f32 %v7241, %v7242
    %7315 = vadd.xlane.f32.xlu0 %v7314
    %v7316 = vpop.xlane.xlu0 %7315
    %v7317 = vadd.f32 %v7243, %v7244
    %7318 = vadd.xlane.f32.xlu0 %v7317
    %v7319 = vpop.xlane.xlu0 %7318
    %v7320 = vadd.f32 %v7245, %v7246
    %7321 = vadd.xlane.f32.xlu0 %v7320
    %v7322 = vpop.xlane.xlu0 %7321
    %v7323 = vadd.f32 %v7247, %v7248
    %7324 = vadd.xlane.f32.xlu0 %v7323
    %v7325 = vpop.xlane.xlu0 %7324
    %v7326 = vadd.f32 %v7249, %v7250
    %7327 = vadd.xlane.f32.xlu0 %v7326
    %v7328 = vpop.xlane.xlu0 %7327
    %v7329 = vadd.f32 %v7251, %v7252
    %7330 = vadd.xlane.f32.xlu0 %v7329
    %v7331 = vpop.xlane.xlu0 %7330
    %v7332 = vadd.f32 %v7253, %v7254
    %7333 = vadd.xlane.f32.xlu0 %v7332
    %v7334 = vpop.xlane.xlu0 %7333
    %v7335 = vadd.f32 %v7255, %v7256
    %7336 = vadd.xlane.f32.xlu0 %v7335
    %v7337 = vpop.xlane.xlu0 %7336
    %v7338 = vadd.f32 %v7257, %v7258
    %7339 = vadd.xlane.f32.xlu0 %v7338
    %v7340 = vpop.xlane.xlu0 %7339
    %v7341 = vadd.f32 %v7259, %v7260
    %7342 = vadd.xlane.f32.xlu0 %v7341
    %v7343 = vpop.xlane.xlu0 %7342
    %v7344 = vadd.f32 %v7261, %v7262
    %7345 = vadd.xlane.f32.xlu0 %v7344
    %v7346 = vpop.xlane.xlu0 %7345
    %v7347 = vadd.f32 %v7263, %v7264
    %7348 = vadd.xlane.f32.xlu0 %v7347
    %v7349 = vpop.xlane.xlu0 %7348
    %v7350 = vadd.f32 %v7265, %v7266
    %7351 = vadd.xlane.f32.xlu0 %v7350
    %v7352 = vpop.xlane.xlu0 %7351
    %v7353 = vadd.f32 %v7267, %v7268
    %7354 = vadd.xlane.f32.xlu0 %v7353
    %v7355 = vpop.xlane.xlu0 %7354
    %v7356 = vadd.f32 %v7269, %v7270
    %7357 = vadd.xlane.f32.xlu0 %v7356
    %v7358 = vpop.xlane.xlu0 %7357
    %v7359 = vadd.f32 %v7271, %v7272
    %7360 = vadd.xlane.f32.xlu0 %v7359
    %v7361 = vpop.xlane.xlu0 %7360
    %v7362 = vadd.f32 %v7273, %v7274
    %7363 = vadd.xlane.f32.xlu0 %v7362
    %v7364 = vpop.xlane.xlu0 %7363
    %v7365 = vadd.f32 %v7275, %v7276
    %7366 = vadd.xlane.f32.xlu0 %v7365
    %v7367 = vpop.xlane.xlu0 %7366
    %v7368 = vadd.f32 %v7277, %v7278
    %7369 = vadd.xlane.f32.xlu0 %v7368
    %v7370 = vpop.xlane.xlu0 %7369
    %v7371 = vadd.f32 %v7279, %v7280
    %7372 = vadd.xlane.f32.xlu0 %v7371
    %v7373 = vpop.xlane.xlu0 %7372
    %v7374 = vadd.f32 %v7281, %v7282
    %7375 = vadd.xlane.f32.xlu0 %v7374
    %v7376 = vpop.xlane.xlu0 %7375
    %v7377 = vadd.f32 %v7283, %v7284
    %7378 = vadd.xlane.f32.xlu0 %v7377
    %v7379 = vpop.xlane.xlu0 %7378
    %v7380 = vadd.f32 %v7285, %v7286
    %7381 = vadd.xlane.f32.xlu0 %v7380
    %v7382 = vpop.xlane.xlu0 %7381
    %v7383 = vld [vmem:[#allocation2] sm:$0x1]
    %v7385 = vlaneseq
    %v7386 = vshrl.u32 %v7385, 7
    %v7387 = vsub.s32 0, %v7386
    %v7388 = vrot.slane %v7383, %v7387
    %v7390 = vadd.f32 %v7289, %v7388
    %v7391 = vadd.f32 %v7292, %v7388
    %v7392 = vadd.f32 %v7295, %v7388
    %v7393 = vadd.f32 %v7298, %v7388
    %v7394 = vadd.f32 %v7301, %v7388
    %v7395 = vadd.f32 %v7304, %v7388
    %v7396 = vadd.f32 %v7307, %v7388
    %v7397 = vadd.f32 %v7310, %v7388
    %v7398 = vadd.f32 %v7313, %v7388
    %v7399 = vadd.f32 %v7316, %v7388
    %v7400 = vadd.f32 %v7319, %v7388
    %v7401 = vadd.f32 %v7322, %v7388
    %v7402 = vadd.f32 %v7325, %v7388
    %v7403 = vadd.f32 %v7328, %v7388
    %v7404 = vadd.f32 %v7331, %v7388
    %v7405 = vadd.f32 %v7334, %v7388
    %v7406 = vadd.f32 %v7337, %v7388
    %v7407 = vadd.f32 %v7340, %v7388
    %v7408 = vadd.f32 %v7343, %v7388
    %v7409 = vadd.f32 %v7346, %v7388
    %v7410 = vadd.f32 %v7349, %v7388
    %v7411 = vadd.f32 %v7352, %v7388
    %v7412 = vadd.f32 %v7355, %v7388
    %v7413 = vadd.f32 %v7358, %v7388
    %v7414 = vadd.f32 %v7361, %v7388
    %v7415 = vadd.f32 %v7364, %v7388
    %v7416 = vadd.f32 %v7367, %v7388
    %v7417 = vadd.f32 %v7370, %v7388
    %v7418 = vadd.f32 %v7373, %v7388
    %v7419 = vadd.f32 %v7376, %v7388
    %v7420 = vadd.f32 %v7379, %v7388
    %v7421 = vadd.f32 %v7382, %v7388
    %v7422 = vxor.u32 %v7390, 2147483648
    %v7423 = vxor.u32 %v7391, 2147483648
    %v7424 = vxor.u32 %v7392, 2147483648
    %v7425 = vxor.u32 %v7393, 2147483648
    %v7426 = vxor.u32 %v7394, 2147483648
    %v7427 = vxor.u32 %v7395, 2147483648
    %v7428 = vxor.u32 %v7396, 2147483648
    %v7429 = vxor.u32 %v7397, 2147483648
    %v7430 = vxor.u32 %v7398, 2147483648
    %v7431 = vxor.u32 %v7399, 2147483648
    %v7432 = vxor.u32 %v7400, 2147483648
    %v7433 = vxor.u32 %v7401, 2147483648
    %v7434 = vxor.u32 %v7402, 2147483648
    %v7435 = vxor.u32 %v7403, 2147483648
    %v7436 = vxor.u32 %v7404, 2147483648
    %v7437 = vxor.u32 %v7405, 2147483648
    %v7438 = vxor.u32 %v7406, 2147483648
    %v7439 = vxor.u32 %v7407, 2147483648
    %v7440 = vxor.u32 %v7408, 2147483648
    %v7441 = vxor.u32 %v7409, 2147483648
    %v7442 = vxor.u32 %v7410, 2147483648
    %v7443 = vxor.u32 %v7411, 2147483648
    %v7444 = vxor.u32 %v7412, 2147483648
    %v7445 = vxor.u32 %v7413, 2147483648
    %v7446 = vxor.u32 %v7414, 2147483648
    %v7447 = vxor.u32 %v7415, 2147483648
    %v7448 = vxor.u32 %v7416, 2147483648
    %v7449 = vxor.u32 %v7417, 2147483648
    %v7450 = vxor.u32 %v7418, 2147483648
    %v7451 = vxor.u32 %v7419, 2147483648
    %v7452 = vxor.u32 %v7420, 2147483648
    %v7453 = vxor.u32 %v7421, 2147483648
    %v7454 = vmul.f32 %v7422, 1.442695
    %v7455 = vpow.pop %v7454
    %v7456 = vmul.f32 %v7423, 1.442695
    %v7457 = vpow.pop %v7456
    %v7458 = vmul.f32 %v7424, 1.442695
    %v7459 = vpow.pop %v7458
    %v7460 = vmul.f32 %v7425, 1.442695
    %v7461 = vpow.pop %v7460
    %v7462 = vmul.f32 %v7426, 1.442695
    %v7463 = vpow.pop %v7462
    %v7464 = vmul.f32 %v7427, 1.442695
    %v7465 = vpow.pop %v7464
    %v7466 = vmul.f32 %v7428, 1.442695
    %v7467 = vpow.pop %v7466
    %v7468 = vmul.f32 %v7429, 1.442695
    %v7469 = vpow.pop %v7468
    %v7470 = vmul.f32 %v7430, 1.442695
    %v7471 = vpow.pop %v7470
    %v7472 = vmul.f32 %v7431, 1.442695
    %v7473 = vpow.pop %v7472
    %v7474 = vmul.f32 %v7432, 1.442695
    %v7475 = vpow.pop %v7474
    %v7476 = vmul.f32 %v7433, 1.442695
    %v7477 = vpow.pop %v7476
    %v7478 = vmul.f32 %v7434, 1.442695
    %v7479 = vpow.pop %v7478
    %v7480 = vmul.f32 %v7435, 1.442695
    %v7481 = vpow.pop %v7480
    %v7482 = vmul.f32 %v7436, 1.442695
    %v7483 = vpow.pop %v7482
    %v7484 = vmul.f32 %v7437, 1.442695
    %v7485 = vpow.pop %v7484
    %v7486 = vmul.f32 %v7438, 1.442695
    %v7487 = vpow.pop %v7486
    %v7488 = vmul.f32 %v7439, 1.442695
    %v7489 = vpow.pop %v7488
    %v7490 = vmul.f32 %v7440, 1.442695
    %v7491 = vpow.pop %v7490
    %v7492 = vmul.f32 %v7441, 1.442695
    %v7493 = vpow.pop %v7492
    %v7494 = vmul.f32 %v7442, 1.442695
    %v7495 = vpow.pop %v7494
    %v7496 = vmul.f32 %v7443, 1.442695
    %v7497 = vpow.pop %v7496
    %v7498 = vmul.f32 %v7444, 1.442695
    %v7499 = vpow.pop %v7498
    %v7500 = vmul.f32 %v7445, 1.442695
    %v7501 = vpow.pop %v7500
    %v7502 = vmul.f32 %v7446, 1.442695
    %v7503 = vpow.pop %v7502
    %v7504 = vmul.f32 %v7447, 1.442695
    %v7505 = vpow.pop %v7504
    %v7506 = vmul.f32 %v7448, 1.442695
    %v7507 = vpow.pop %v7506
    %v7508 = vmul.f32 %v7449, 1.442695
    %v7509 = vpow.pop %v7508
    %v7510 = vmul.f32 %v7450, 1.442695
    %v7511 = vpow.pop %v7510
    %v7512 = vmul.f32 %v7451, 1.442695
    %v7513 = vpow.pop %v7512
    %v7514 = vmul.f32 %v7452, 1.442695
    %v7515 = vpow.pop %v7514
    %v7516 = vmul.f32 %v7453, 1.442695
    %v7517 = vpow.pop %v7516
    %v7518 = vadd.f32 %v7455, 1.0
    %v7519 = vadd.f32 %v7457, 1.0
    %v7520 = vadd.f32 %v7459, 1.0
    %v7521 = vadd.f32 %v7461, 1.0
    %v7522 = vadd.f32 %v7463, 1.0
    %v7523 = vadd.f32 %v7465, 1.0
    %v7524 = vadd.f32 %v7467, 1.0
    %v7525 = vadd.f32 %v7469, 1.0
    %v7526 = vadd.f32 %v7471, 1.0
    %v7527 = vadd.f32 %v7473, 1.0
    %v7528 = vadd.f32 %v7475, 1.0
    %v7529 = vadd.f32 %v7477, 1.0
    %v7530 = vadd.f32 %v7479, 1.0
    %v7531 = vadd.f32 %v7481, 1.0
    %v7532 = vadd.f32 %v7483, 1.0
    %v7533 = vadd.f32 %v7485, 1.0
    %v7534 = vadd.f32 %v7487, 1.0
    %v7535 = vadd.f32 %v7489, 1.0
    %v7536 = vadd.f32 %v7491, 1.0
    %v7537 = vadd.f32 %v7493, 1.0
    %v7538 = vadd.f32 %v7495, 1.0
    %v7539 = vadd.f32 %v7497, 1.0
    %v7540 = vadd.f32 %v7499, 1.0
    %v7541 = vadd.f32 %v7501, 1.0
    %v7542 = vadd.f32 %v7503, 1.0
    %v7543 = vadd.f32 %v7505, 1.0
    %v7544 = vadd.f32 %v7507, 1.0
    %v7545 = vadd.f32 %v7509, 1.0
    %v7546 = vadd.f32 %v7511, 1.0
    %v7547 = vadd.f32 %v7513, 1.0
    %v7548 = vadd.f32 %v7515, 1.0
    %v7549 = vadd.f32 %v7517, 1.0
    %v7550 = vrcp.pop %v7518
    %v7551 = vmul.f32 1.0, %v7550
    %v7552 = vrcp.pop %v7519
    %v7553 = vmul.f32 1.0, %v7552
    %v7554 = vrcp.pop %v7520
    %v7555 = vmul.f32 1.0, %v7554
    %v7556 = vrcp.pop %v7521
    %v7557 = vmul.f32 1.0, %v7556
    %v7558 = vrcp.pop %v7522
    %v7559 = vmul.f32 1.0, %v7558
    %v7560 = vrcp.pop %v7523
    %v7561 = vmul.f32 1.0, %v7560
    %v7562 = vrcp.pop %v7524
    %v7563 = vmul.f32 1.0, %v7562
    %v7564 = vrcp.pop %v7525
    %v7565 = vmul.f32 1.0, %v7564
    %v7566 = vrcp.pop %v7526
    %v7567 = vmul.f32 1.0, %v7566
    %v7568 = vrcp.pop %v7527
    %v7569 = vmul.f32 1.0, %v7568
    %v7570 = vrcp.pop %v7528
    %v7571 = vmul.f32 1.0, %v7570
    %v7572 = vrcp.pop %v7529
    %v7573 = vmul.f32 1.0, %v7572
    %v7574 = vrcp.pop %v7530
    %v7575 = vmul.f32 1.0, %v7574
    %v7576 = vrcp.pop %v7531
    %v7577 = vmul.f32 1.0, %v7576
    %v7578 = vrcp.pop %v7532
    %v7579 = vmul.f32 1.0, %v7578
    %v7580 = vrcp.pop %v7533
    %v7581 = vmul.f32 1.0, %v7580
    %v7582 = vrcp.pop %v7534
    %v7583 = vmul.f32 1.0, %v7582
    %v7584 = vrcp.pop %v7535
    %v7585 = vmul.f32 1.0, %v7584
    %v7586 = vrcp.pop %v7536
    %v7587 = vmul.f32 1.0, %v7586
    %v7588 = vrcp.pop %v7537
    %v7589 = vmul.f32 1.0, %v7588
    %v7590 = vrcp.pop %v7538
    %v7591 = vmul.f32 1.0, %v7590
    %v7592 = vrcp.pop %v7539
    %v7593 = vmul.f32 1.0, %v7592
    %v7594 = vrcp.pop %v7540
    %v7595 = vmul.f32 1.0, %v7594
    %v7596 = vrcp.pop %v7541
    %v7597 = vmul.f32 1.0, %v7596
    %v7598 = vrcp.pop %v7542
    %v7599 = vmul.f32 1.0, %v7598
    %v7600 = vrcp.pop %v7543
    %v7601 = vmul.f32 1.0, %v7600
    %v7602 = vrcp.pop %v7544
    %v7603 = vmul.f32 1.0, %v7602
    %v7604 = vrcp.pop %v7545
    %v7605 = vmul.f32 1.0, %v7604
    %v7606 = vrcp.pop %v7546
    %v7607 = vmul.f32 1.0, %v7606
    %v7608 = vrcp.pop %v7547
    %v7609 = vmul.f32 1.0, %v7608
    %v7610 = vrcp.pop %v7548
    %v7611 = vmul.f32 1.0, %v7610
    %v7612 = vrcp.pop %v7549
    %v7613 = vmul.f32 1.0, %v7612
    %vm7614 = vcmask 7168
    %7615 = vst.msk [vmem:[#allocation8] sm:$0xff] %vm7614, %v7551
    %7616 = vst.msk [vmem:[#allocation8 + $0x8] sm:$0xff] %vm7614, %v7553
    %7617 = vst.msk [vmem:[#allocation8 + $0x10] sm:$0xff] %vm7614, %v7555
    %7618 = vst.msk [vmem:[#allocation8 + $0x18] sm:$0xff] %vm7614, %v7557
    %7619 = vst.msk [vmem:[#allocation8 + $0x20] sm:$0xff] %vm7614, %v7559
    %7620 = vst.msk [vmem:[#allocation8 + $0x28] sm:$0xff] %vm7614, %v7561
    %7621 = vst.msk [vmem:[#allocation8 + $0x30] sm:$0xff] %vm7614, %v7563
    %7622 = vst.msk [vmem:[#allocation8 + $0x38] sm:$0xff] %vm7614, %v7565
    %7623 = vst.msk [vmem:[#allocation8 + $0x40] sm:$0xff] %vm7614, %v7567
    %7624 = vst.msk [vmem:[#allocation8 + $0x48] sm:$0xff] %vm7614, %v7569
    %7625 = vst.msk [vmem:[#allocation8 + $0x50] sm:$0xff] %vm7614, %v7571
    %7626 = vst.msk [vmem:[#allocation8 + $0x58] sm:$0xff] %vm7614, %v7573
    %7627 = vst.msk [vmem:[#allocation8 + $0x60] sm:$0xff] %vm7614, %v7575
    %7628 = vst.msk [vmem:[#allocation8 + $0x68] sm:$0xff] %vm7614, %v7577
    %7629 = vst.msk [vmem:[#allocation8 + $0x70] sm:$0xff] %vm7614, %v7579
    %7630 = vst.msk [vmem:[#allocation8 + $0x78] sm:$0xff] %vm7614, %v7581
    %7631 = vst.msk [vmem:[#allocation8 + $0x80] sm:$0xff] %vm7614, %v7583
    %7632 = vst.msk [vmem:[#allocation8 + $0x88] sm:$0xff] %vm7614, %v7585
    %7633 = vst.msk [vmem:[#allocation8 + $0x90] sm:$0xff] %vm7614, %v7587
    %7634 = vst.msk [vmem:[#allocation8 + $0x98] sm:$0xff] %vm7614, %v7589
    %7635 = vst.msk [vmem:[#allocation8 + $0xa0] sm:$0xff] %vm7614, %v7591
    %7636 = vst.msk [vmem:[#allocation8 + $0xa8] sm:$0xff] %vm7614, %v7593
    %7637 = vst.msk [vmem:[#allocation8 + $0xb0] sm:$0xff] %vm7614, %v7595
    %7638 = vst.msk [vmem:[#allocation8 + $0xb8] sm:$0xff] %vm7614, %v7597
    %7639 = vst.msk [vmem:[#allocation8 + $0xc0] sm:$0xff] %vm7614, %v7599
    %7640 = vst.msk [vmem:[#allocation8 + $0xc8] sm:$0xff] %vm7614, %v7601
    %7641 = vst.msk [vmem:[#allocation8 + $0xd0] sm:$0xff] %vm7614, %v7603
    %7642 = vst.msk [vmem:[#allocation8 + $0xd8] sm:$0xff] %vm7614, %v7605
    %7643 = vst.msk [vmem:[#allocation8 + $0xe0] sm:$0xff] %vm7614, %v7607
    %7644 = vst.msk [vmem:[#allocation8 + $0xe8] sm:$0xff] %vm7614, %v7609
    %7645 = vst.msk [vmem:[#allocation8 + $0xf0] sm:$0xff] %vm7614, %v7611
    %7646 = vst.msk [vmem:[#allocation8 + $0xf8] sm:$0xff] %vm7614, %v7613
    // Predicated region
    $region42: #{tpu_custom_call.1} parent=1 // pred_check
      _
    $region43: #{tpu_custom_call.1} parent=1 // pred_check_branch
      %7648 = sbr.rel (0) target = $region45
    $region44: #{tpu_custom_call.1} parent=1 // pred_region
      // Predicated region
      $region46: #{tpu_custom_call.1} parent=44 // pred_check
        _
      $region47: #{tpu_custom_call.1} parent=44 // pred_check_branch
        %7650 = sbr.rel (0) target = $region49
      $region48: #{tpu_custom_call.1} parent=44 // pred_region
        // Predicated region
        $region50: #{tpu_custom_call.1} parent=48 // pred_check
          _
        $region51: #{tpu_custom_call.1} parent=48 // pred_check_branch
          %7652 = sbr.rel target = $region53
        $region52: #{tpu_custom_call.1} parent=48 // pred_region
          // Predicated region
          $region65: #{tpu_custom_call.1} parent=52 // pred_check
            _
          $region66: #{tpu_custom_call.1} parent=52 // pred_check_branch
            %7668 = sbr.rel (0) target = $region68
          $region67: #{tpu_custom_call.1} parent=52 // pred_region
            %s7670 = ssub.s32 4, 1
            loop: start=0, step=1, limit=1
            $region69: #{tpu_custom_call.1} parent=67 // loop_pre_header
              _
            $region70: #{tpu_custom_call.1} parent=67 // loop_header
              %s7672 = sphi 0, %s7676
              %p7673 = scmp.ge.s32.totalorder %s7672, 1
              %s7677 = sphi [#allocation8], [#allocation8]
              %s7678 = sphi %s7, %s7
            $region71: #{tpu_custom_call.1} parent=67 // loop_header_branch
              %7675 = sbr.rel (%p7673) target = $region75
            $region72: #{tpu_custom_call.1} parent=67 // loop_body
              %v7679 = vld [vmem:[%s7677] sm:%s7670]
              %7680 = vst [vmem:[%s7678] sm:%s7670] %v7679
            $region73: #{tpu_custom_call.1} parent=67 // loop_footer
              %s7676 = sadd.s32 1, %s7672
            $region74: #{tpu_custom_call.1} parent=67 // loop_footer_branch
              %7671 = sbr.rel target = $region70
            $region75: #{tpu_custom_call.1} parent=67 // loop_exit
              _
          $region68: #{tpu_custom_call.1} parent=52 // pred_fallthru
            _
        $region53: #{tpu_custom_call.1} parent=48 // pred_fallthru
          _
        // Predicated region
        $region54: #{tpu_custom_call.1} parent=48 // pred_check
          _
        $region55: #{tpu_custom_call.1} parent=48 // pred_check_branch
          %7654 = sbr.rel (0) target = $region57
        $region56: #{tpu_custom_call.1} parent=48 // pred_region
          %s7656 = ssub.s32 4, 1
          loop: start=0, step=1, limit=1
          $region58: #{tpu_custom_call.1} parent=56 // loop_pre_header
            _
          $region59: #{tpu_custom_call.1} parent=56 // loop_header
            %s7658 = sphi 0, %s7662
            %p7659 = scmp.ge.s32.totalorder %s7658, 1
            %s7663 = sphi [#allocation8], [#allocation8]
            %s7664 = sphi %s7, %s7
          $region60: #{tpu_custom_call.1} parent=56 // loop_header_branch
            %7661 = sbr.rel (%p7659) target = $region64
          $region61: #{tpu_custom_call.1} parent=56 // loop_body
            %v7665 = vld [vmem:[%s7663] sm:%s7656]
            %7666 = vst [vmem:[%s7664] sm:%s7656] %v7665
          $region62: #{tpu_custom_call.1} parent=56 // loop_footer
            %s7662 = sadd.s32 1, %s7658
          $region63: #{tpu_custom_call.1} parent=56 // loop_footer_branch
            %7657 = sbr.rel target = $region59
          $region64: #{tpu_custom_call.1} parent=56 // loop_exit
            _
        $region57: #{tpu_custom_call.1} parent=48 // pred_fallthru
          _
      $region49: #{tpu_custom_call.1} parent=44 // pred_fallthru
        _
      %7681 = vnop
    $region45: #{tpu_custom_call.1} parent=1 // pred_fallthru
      _
    // Predicated region
    $region76: #{tpu_custom_call.1} parent=1 // pred_check
      _
    $region77: #{tpu_custom_call.1} parent=1 // pred_check_branch
      %7683 = sbr.rel (0) target = $region79
    $region78: #{tpu_custom_call.1} parent=1 // pred_region
      _
    $region79: #{tpu_custom_call.1} parent=1 // pred_fallthru
      _
    %7684 = vsyncpa [#allocation4], 1
    %7685 = vsyncpa [#allocation6], 1

</llo_original>
